<compile_context>
chip_gen: v6e
topology: v6e:2x2x1
jax: 0.10.0
libtpu: 0.0.40
codegen_flags: <defaults>
</compile_context>

<pallas_src>
import jax
import jax.numpy as jnp
from jax.experimental import pallas as pl
from jax.experimental.pallas import tpu as pltpu

# ---------------- model dims (from FastPitch.__init__) ----------------
D_MODEL = 384      # symbols_embedding_dim / in_fft_output_size
FILTER = 256       # pitch/energy predictor filter_size
N_MEL = 80         # n_mel_channels
N_MEL_PAD = 128    # lane-dense padded mel width (sliced back to 80 outside)
N_SYM = 148        # n_symbols
KSIZE = 3          # predictor / pitch_emb / energy_emb kernel size
M_TILE = 512       # mel frames per grid step (VMEM budget / DMA overlap)


# ---------------- fused Pallas kernel ----------------
# grid = (B, num_mel_tiles); the token-level stage runs only at m_tile == 0.
def fastpitch_fused_kernel(enc_ref, mask_ref, tgt_ref, cums_ref,
                           pw1_ref, pw2_ref, pvec_ref,
                           ew1_ref, ew2_ref, evec_ref,
                           pemb_ref, eemb_ref, projw_ref, projb_ref,
                           mel_ref, pred_ref, proj_sc):
    f32 = jnp.float32
    bf16 = jnp.bfloat16
    m_tile = pl.program_id(1)
    T = enc_ref.shape[1]

    # ---------------- token-level stage (once per batch row) ----------------
    @pl.when(m_tile == 0)
    def _token_stage():
        enc0_bf = enc_ref[0]                   # (T, D) bf16 (HBM stream halved)
        enc0 = enc0_bf.astype(f32)             # f32 residual base
        mask_f = mask_ref[0]                   # (T, 1) f32

        # hoisted edge masks: one (T,1) 0/1 column per conv edge
        row = jax.lax.broadcasted_iota(jnp.int32, (T, 1), 0)
        nf = (row != 0).astype(f32)            # zero t==0 after a +1 roll
        nl = (row != T - 1).astype(f32)        # zero t==T-1 after a -1 roll

        def shift_prev(x):                     # result[t] = x[t-1], 0 at t==0
            return pltpu.roll(x, shift=1, axis=0) * nf

        def shift_next(x):                     # result[t] = x[t+1], 0 at t==T-1
            return pltpu.roll(x, shift=T - 1, axis=0) * nl

        def conv1d_same_k3(x, w_ref):
            # x: (T, Cin) f32; w_ref[k] = W_torch[:, :, k].T (bf16, per-tap load)
            y = jnp.dot(shift_prev(x).astype(bf16), w_ref[0],
                        preferred_element_type=f32)
            y = y + jnp.dot(x.astype(bf16), w_ref[1], preferred_element_type=f32)
            y = y + jnp.dot(shift_next(x).astype(bf16), w_ref[2],
                            preferred_element_type=f32)
            return y

        def layernorm(x, g, b, eps=1e-5):      # f32 on the VPU (v5e-safe)
            mu = jnp.mean(x, axis=-1, keepdims=True)
            var = jnp.mean((x - mu) * (x - mu), axis=-1, keepdims=True)
            return (x - mu) * jax.lax.rsqrt(var + eps) * g + b

        def temporal_predictor(x, w1_ref, w2_ref, vec):
            # vec rows: [b1, g1, be1, b2, g2, be2, fc_w, fc_b]  (8, FILTER) f32
            h = x * mask_f
            h = conv1d_same_k3(h, w1_ref) + vec[0:1]
            h = jnp.maximum(h, 0.0)
            h = layernorm(h, vec[1:2], vec[2:3])
            h = conv1d_same_k3(h, w2_ref) + vec[3:4]
            h = jnp.maximum(h, 0.0)
            h = layernorm(h, vec[4:5], vec[5:6])
            # FC (FILTER -> 1): VPU multiply + lane reduce (no N=1 matmul)
            y = jnp.sum(h * vec[6:7], axis=-1, keepdims=True) + vec[7:8, 0:1]
            return y * mask_f                  # (T, 1) f32

        # ---- pitch predictor on the pre-conditioning encoder output ----
        pitch_pred = temporal_predictor(enc0, pw1_ref, pw2_ref, pvec_ref[...])

        # ---- pitch / energy embedding convs (Cin=1 -> VPU broadcast mul-add);
        #      one pair of (T,2) rolls shared by both convs ----
        tgt = tgt_ref[0]                       # (T,2): [pitch_tgt, log1p(energy_tgt)]
        tgt_prev = shift_prev(tgt)
        tgt_next = shift_next(tgt)
        pemb = pemb_ref[...]                   # (4, D): taps 0..2 + bias
        eemb = eemb_ref[...]

        enc1 = enc0 + (tgt_prev[:, 0:1] * pemb[0:1] + tgt[:, 0:1] * pemb[1:2]
                       + tgt_next[:, 0:1] * pemb[2:3] + pemb[3:4])

        # ---- energy predictor on the pitch-conditioned encoder output ----
        energy_pred = temporal_predictor(enc1, ew1_ref, ew2_ref, evec_ref[...])
        pred_ref[0] = jnp.concatenate([pitch_pred, energy_pred],
                                      axis=1).astype(pred_ref.dtype)

        enc2 = enc1 + (tgt_prev[:, 1:2] * eemb[0:1] + tgt[:, 1:2] * eemb[1:2]
                       + tgt_next[:, 1:2] * eemb[2:3] + eemb[3:4])

        # ---- mel projection FIRST: (mult @ enc2) @ W == mult @ (enc2 @ W),
        #      so len_regulated never exists.  Carried across M-tiles in VMEM.
        # TODO(synk): decoder FFTransformer not provided -> identity here.
        proj_sc[...] = jnp.dot(enc2.astype(bf16), projw_ref[...],
                               preferred_element_type=f32).astype(bf16)

    # ---------------- per-M-tile length regulation + writeback ----------------
    cums = cums_ref[0]                          # (1, T+1) int32 cumulative reps
    Mt = mel_ref.shape[1]
    m_idx = m_tile * Mt + jax.lax.broadcasted_iota(jnp.int32, (Mt, T), 0)
    mult = ((cums[:, :T] <= m_idx) & (cums[:, 1:T + 1] > m_idx)).astype(jnp.bfloat16)
    mel = jnp.dot(mult, proj_sc[...], preferred_element_type=jnp.float32) + projb_ref[...]
    mel_ref[0] = mel.astype(mel_ref.dtype)      # bf16, lane-dense (128)


# ---------------- pallas_call wrapper ----------------
def _row_spec(a):
    nd = a.ndim
    return pl.BlockSpec((1,) + a.shape[1:], lambda b, m: (b,) + (0,) * (nd - 1))


def _const_spec(a):
    nd = a.ndim
    # constant index_map across the grid -> DMA'd only once (no re-fetch)
    return pl.BlockSpec(a.shape, lambda b, m: (0,) * nd)


def fastpitch_fused(enc_out_bf, enc_mask, tgt_te, cums, params, mel_max_len):
    B, T, D = enc_out_bf.shape
    p = params
    args = (enc_out_bf, enc_mask, tgt_te, cums,
            p["pitch_w1"], p["pitch_w2"], p["pitch_vec"],
            p["energy_w1"], p["energy_w2"], p["energy_vec"],
            p["pitch_emb"], p["energy_emb"], p["proj_w"], p["proj_b"])
    in_specs = [_row_spec(a) for a in args[:4]] + [_const_spec(a) for a in args[4:]]

    m_tile = M_TILE if mel_max_len > M_TILE else mel_max_len
    n_m = int(pl.cdiv(mel_max_len, m_tile))
    m_pad = n_m * m_tile

    out_shape = (
        jax.ShapeDtypeStruct((B, m_pad, N_MEL_PAD), jnp.bfloat16),  # mel (padded lanes)
        jax.ShapeDtypeStruct((B, T, 2), jnp.float32),               # [pitch_pred, energy_pred]
    )
    out_specs = (
        pl.BlockSpec((1, m_tile, N_MEL_PAD), lambda b, m: (b, m, 0)),
        pl.BlockSpec((1, T, 2), lambda b, m: (b, 0, 0)),
    )

    # advisory cost hint so XLA can overlap the call with surrounding ops
    flops = B * (2 * (2 * T * 3 * D * FILTER + 2 * T * 3 * FILTER * FILTER)   # predictor convs
                 + 2 * T * D * N_MEL_PAD                                       # mel projection
                 + 2 * m_pad * T * N_MEL_PAD)                                  # length regulation
    in_bytes = sum(int(a.size) * a.dtype.itemsize for a in args)
    out_bytes = 2 * B * m_pad * N_MEL_PAD + 4 * B * T * 2
    cost = pl.CostEstimate(flops=int(flops), transcendentals=int(B * 4 * T),
                           bytes_accessed=int(in_bytes + out_bytes))

    return pl.pallas_call(
        fastpitch_fused_kernel,
        out_shape=out_shape,
        grid=(B, n_m),
        in_specs=in_specs,
        out_specs=out_specs,
        scratch_shapes=[pltpu.VMEM((T, N_MEL_PAD), jnp.bfloat16)],   # enc2 @ W, per row
        compiler_params=pltpu.CompilerParams(
            dimension_semantics=("parallel", "arbitrary"),   # batch rows -> both TCs
            vmem_limit_bytes=32 * 1024 * 1024),
        cost_estimate=cost,
    )(*args)


# ---------------- parameters ----------------
def init_params(key):
    keys = iter(jax.random.split(key, 16))
    f32, bf16 = jnp.float32, jnp.bfloat16

    def nrm(shape, scale=0.02):
        return (jax.random.normal(next(keys), shape) * scale).astype(f32)

    def predictor(cin):
        # w[k] = W_torch[:, :, k].T (tap 0 multiplies x[t-1]); bf16 for the MXU
        w1 = nrm((KSIZE, cin, FILTER)).astype(bf16)
        w2 = nrm((KSIZE, FILTER, FILTER)).astype(bf16)
        vec = jnp.stack([
            jnp.zeros((FILTER,), f32),   # conv1 bias
            jnp.ones((FILTER,), f32),    # ln1 gamma
            jnp.zeros((FILTER,), f32),   # ln1 beta
            jnp.zeros((FILTER,), f32),   # conv2 bias
            jnp.ones((FILTER,), f32),    # ln2 gamma
            jnp.zeros((FILTER,), f32),   # ln2 beta
            nrm((FILTER,)),              # fc weight (FILTER -> 1)
            jnp.zeros((FILTER,), f32),   # fc bias (only [0] used)
        ], axis=0)
        return w1, w2, vec

    def emb_conv():
        # rows [tap0, tap1, tap2, bias] of Conv1d(1, D, k=3, padding=1)
        return jnp.concatenate([nrm((KSIZE, D_MODEL)),
                                jnp.zeros((1, D_MODEL), f32)], axis=0)

    pw1, pw2, pvec = predictor(D_MODEL)
    ew1, ew2, evec = predictor(D_MODEL)

    proj_w = jnp.zeros((D_MODEL, N_MEL_PAD), f32).at[:, :N_MEL].set(nrm((D_MODEL, N_MEL)))
    word_emb = nrm((N_SYM, D_MODEL), 0.1).at[0].set(0.0)   # padding_idx = 0

    return dict(
        word_emb=word_emb,
        pitch_w1=pw1, pitch_w2=pw2, pitch_vec=pvec,
        energy_w1=ew1, energy_w2=ew2, energy_vec=evec,
        pitch_emb=emb_conv(), energy_emb=emb_conv(),
        proj_w=proj_w.astype(jnp.bfloat16),
        proj_b=jnp.zeros((1, N_MEL_PAD), f32),
    )


# ---------------- forward (FastPitch.forward, training_stage==3 path) ----------------
def fastpitch_forward(params, inputs, pitch_dense, energy_dense, durs_padded,
                      mel_max_len, pace=1.0):
    f32 = jnp.float32
    B, T = inputs.shape

    # ---- encoder (TODO(synk): FFT layers not provided; embedding + mask only) ----
    enc_out = params["word_emb"][inputs]                       # (B, T, D) f32
    enc_mask = (inputs != 0).astype(f32)[..., None]            # (B, T, 1)

    dur_tgt = durs_padded.astype(jnp.int32)                    # attn_hard_dur := durs_padded

    # ---- average_pitch for pitch & energy: exact prefix-sum + gather form ----
    pe = jnp.stack([pitch_dense[:, 0, :], energy_dense], axis=-1).astype(f32)  # (B, Tm, 2)
    ends = jnp.cumsum(dur_tgt, axis=1)                          # (B, T)
    starts = jnp.concatenate([jnp.zeros((B, 1), jnp.int32), ends[:, :-1]], axis=1)
    zrow = jnp.zeros((B, 1, 2), f32)
    cs = jnp.concatenate([zrow, jnp.cumsum(pe, axis=1)], axis=1)                     # (B, Tm+1, 2)
    cn = jnp.concatenate([zrow, jnp.cumsum((pe != 0.0).astype(f32), axis=1)], axis=1)
    idx_e = jnp.broadcast_to(ends[..., None], (B, T, 2)).astype(jnp.int32)
    idx_s = jnp.broadcast_to(starts[..., None], (B, T, 2)).astype(jnp.int32)
    sums = jnp.take_along_axis(cs, idx_e, axis=1) - jnp.take_along_axis(cs, idx_s, axis=1)
    nelems = jnp.take_along_axis(cn, idx_e, axis=1) - jnp.take_along_axis(cn, idx_s, axis=1)
    avg = jnp.where(nelems == 0.0, 0.0,
                    sums / jnp.where(nelems == 0.0, 1.0, nelems))                    # (B, T, 2)
    pitch_tgt_row = avg[:, :, 0]                                 # (B, T)
    energy_tgt = jnp.log1p(avg[:, :, 1])                         # (B, T)
    tgt_te = jnp.stack([pitch_tgt_row, energy_tgt], axis=-1)     # (B, T, 2) kernel input

    # ---- regulate_len cumulative repeat counts (int32 compare in kernel) ----
    # (reps + 0.5).long() == trunc for non-negative durations, matching PyTorch.
    reps = jnp.trunc(dur_tgt.astype(f32) * pace + 0.5).astype(jnp.int32)
    dec_lens = jnp.sum(reps, axis=1)
    cums = jnp.concatenate([jnp.zeros((B, 1), jnp.int32),
                            jnp.cumsum(reps, axis=1)], axis=1)[:, None, :]           # (B, 1, T+1)

    mel_pad, pred = fastpitch_fused(enc_out.astype(jnp.bfloat16), enc_mask,
                                    tgt_te, cums, params, mel_max_len)

    mel_out = mel_pad[:, :mel_max_len, :N_MEL].astype(f32)       # (B, M, 80)
    pitch_pred = jnp.transpose(pred[:, :, 0:1], (0, 2, 1))       # (B, 1, T)
    energy_pred = pred[:, :, 1]                                  # (B, T)
    pitch_tgt = pitch_tgt_row[:, None, :]                        # (B, 1, T)

    dec_lens = jnp.minimum(dec_lens, mel_max_len)
    # ---- decoder (TODO(synk): FFT layers not provided; identity + mask) ----
    dec_mask = (jnp.arange(mel_max_len)[None, :] < dec_lens[:, None]).astype(f32)[..., None]

    return mel_out, dec_mask, pitch_pred, pitch_tgt, energy_pred, energy_tgt, dec_lens


# ---------------- main ----------------
if __name__ == "__main__":
    key = jax.random.PRNGKey(0)
    k_in, k_pitch, k_pmask, k_energy, k_par = jax.random.split(key, 5)

    B, TT = 2, 8
    # token ids; batch 1 has two padding positions (id 0)
    inputs = jax.random.randint(k_in, (B, TT), 1, N_SYM).astype(jnp.int32)
    inputs = inputs.at[1, -2:].set(0)
    # ground-truth durations (durs_padded); zero on padded tokens
    durs_padded = jnp.array([[2, 1, 3, 2, 1, 2, 3, 2],
                             [1, 2, 2, 3, 1, 2, 0, 0]], dtype=jnp.int32)
    MEL_MAX = 16  # = max(sum(durs_padded, axis=1)); static for this script

    pitch_dense = jax.random.normal(k_pitch, (B, 1, MEL_MAX)) * 50.0 + 200.0
    pitch_dense = pitch_dense * jax.random.bernoulli(k_pmask, 0.8, (B, 1, MEL_MAX))
    pitch_dense = pitch_dense.astype(jnp.float32)
    energy_dense = jnp.abs(jax.random.normal(k_energy, (B, MEL_MAX))).astype(jnp.float32) * 2.0

    params = init_params(k_par)

    outs = fastpitch_forward(params, inputs, pitch_dense, energy_dense,
                             durs_padded, MEL_MAX, pace=1.0)
    outs = jax.block_until_ready(outs)

    mel_out = outs[0]
    assert mel_out.shape == (B, MEL_MAX, N_MEL)
    assert outs[2].shape == (B, 1, TT) and outs[3].shape == (B, 1, TT)
    assert outs[4].shape == (B, TT) and outs[5].shape == (B, TT)
    print("KERNEL_OK")
</pallas_src>

<mosaic_0001>
module attributes {stable_mosaic.version = 11 : i64} {
  func.func @fastpitch_fused_kernel(%arg0: i32, %arg1: i32, %arg2: memref<1x8x384xbf16, #tpu.memory_space<vmem>>, %arg3: memref<1x8x1xf32, #tpu.memory_space<vmem>>, %arg4: memref<1x8x2xf32, #tpu.memory_space<vmem>>, %arg5: memref<1x1x9xi32, #tpu.memory_space<vmem>>, %arg6: memref<3x384x256xbf16, #tpu.memory_space<vmem>>, %arg7: memref<3x256x256xbf16, #tpu.memory_space<vmem>>, %arg8: memref<8x256xf32, #tpu.memory_space<vmem>>, %arg9: memref<3x384x256xbf16, #tpu.memory_space<vmem>>, %arg10: memref<3x256x256xbf16, #tpu.memory_space<vmem>>, %arg11: memref<8x256xf32, #tpu.memory_space<vmem>>, %arg12: memref<4x384xf32, #tpu.memory_space<vmem>>, %arg13: memref<4x384xf32, #tpu.memory_space<vmem>>, %arg14: memref<384x128xbf16, #tpu.memory_space<vmem>>, %arg15: memref<1x128xf32, #tpu.memory_space<vmem>>, %arg16: memref<1x16x128xbf16, #tpu.memory_space<vmem>>, %arg17: memref<1x8x2xf32, #tpu.memory_space<vmem>>, %arg18: memref<8x128xbf16, #tpu.memory_space<vmem>>) attributes {dimension_semantics = [#tpu.dimension_semantics<parallel>, #tpu.dimension_semantics<arbitrary>], iteration_bounds = array<i64: 2, 1>, scalar_prefetch = 0 : i64, scratch_operands = 1 : i64, tpu.core_type = #tpu.core_type<tc>, window_params = [{transform_indices = @transform_0, window_bounds = array<i64: 1, 8, 384>}, {transform_indices = @transform_1, window_bounds = array<i64: 1, 8, 1>}, {transform_indices = @transform_2, window_bounds = array<i64: 1, 8, 2>}, {transform_indices = @transform_3, window_bounds = array<i64: 1, 1, 9>}, {pipeline_mode = #tpu.pipeline_mode<synchronous>, transform_indices = @transform_4, window_bounds = array<i64: 3, 384, 256>}, {pipeline_mode = #tpu.pipeline_mode<synchronous>, transform_indices = @transform_5, window_bounds = array<i64: 3, 256, 256>}, {pipeline_mode = #tpu.pipeline_mode<synchronous>, transform_indices = @transform_6, window_bounds = array<i64: 8, 256>}, {pipeline_mode = #tpu.pipeline_mode<synchronous>, transform_indices = @transform_7, window_bounds = array<i64: 3, 384, 256>}, {pipeline_mode = #tpu.pipeline_mode<synchronous>, transform_indices = @transform_8, window_bounds = array<i64: 3, 256, 256>}, {pipeline_mode = #tpu.pipeline_mode<synchronous>, transform_indices = @transform_9, window_bounds = array<i64: 8, 256>}, {pipeline_mode = #tpu.pipeline_mode<synchronous>, transform_indices = @transform_10, window_bounds = array<i64: 4, 384>}, {pipeline_mode = #tpu.pipeline_mode<synchronous>, transform_indices = @transform_11, window_bounds = array<i64: 4, 384>}, {pipeline_mode = #tpu.pipeline_mode<synchronous>, transform_indices = @transform_12, window_bounds = array<i64: 384, 128>}, {pipeline_mode = #tpu.pipeline_mode<synchronous>, transform_indices = @transform_13, window_bounds = array<i64: 1, 128>}, {transform_indices = @transform_14, window_bounds = array<i64: 1, 16, 128>}, {transform_indices = @transform_15, window_bounds = array<i64: 1, 8, 2>}]} {
    %c0_i32 = arith.constant 0 : i32
    %0 = arith.cmpi eq, %arg1, %c0_i32 : i32
    %1 = arith.extui %0 : i1 to i32
    %c0_i32_0 = arith.constant 0 : i32
    %2 = arith.cmpi ne, %1, %c0_i32_0 : i32
    scf.if %2 {
      %c0_10 = arith.constant 0 : index
      %c0_11 = arith.constant 0 : index
      %c0_12 = arith.constant 0 : index
      %28 = vector.load %arg2[%c0_10, %c0_11, %c0_12] : memref<1x8x384xbf16, #tpu.memory_space<vmem>>, vector<1x8x384xbf16>
      %29 = vector.shape_cast %28 : vector<1x8x384xbf16> to vector<8x384xbf16>
      %30 = arith.extf %29 : vector<8x384xbf16> to vector<8x384xf32>
      %c0_13 = arith.constant 0 : index
      %c0_14 = arith.constant 0 : index
      %c0_15 = arith.constant 0 : index
      %31 = vector.load %arg3[%c0_13, %c0_14, %c0_15] : memref<1x8x1xf32, #tpu.memory_space<vmem>>, vector<1x8x1xf32>
      %32 = vector.shape_cast %31 : vector<1x8x1xf32> to vector<8x1xf32>
      %33 = tpu.iota {dimensions = array<i32: 0>} : vector<8x1xi32>
      %c0_i32_16 = arith.constant 0 : i32
      %34 = vector.broadcast %c0_i32_16 : i32 to vector<8x1xi32>
      %35 = arith.cmpi ne, %33, %34 : vector<8x1xi32>
      %36 = arith.extui %35 : vector<8x1xi1> to vector<8x1xi32>
      %37 = arith.sitofp %36 : vector<8x1xi32> to vector<8x1xf32>
      %c7_i32 = arith.constant 7 : i32
      %38 = vector.broadcast %c7_i32 : i32 to vector<8x1xi32>
      %39 = arith.cmpi ne, %33, %38 : vector<8x1xi32>
      %40 = arith.extui %39 : vector<8x1xi1> to vector<8x1xi32>
      %41 = arith.sitofp %40 : vector<8x1xi32> to vector<8x1xf32>
      %c0_17 = arith.constant 0 : index
      %c0_18 = arith.constant 0 : index
      %42 = vector.load %arg8[%c0_17, %c0_18] : memref<8x256xf32, #tpu.memory_space<vmem>>, vector<8x256xf32>
      %43 = vector.broadcast %32 : vector<8x1xf32> to vector<8x384xf32>
      %44 = arith.mulf %30, %43 : vector<8x384xf32>
      %c1_i32 = arith.constant 1 : i32
      %45 = tpu.dynamic_rotate %44 by %c1_i32 dim 0 : vector<8x384xf32>, i32 -> vector<8x384xf32>
      %46 = vector.broadcast %37 : vector<8x1xf32> to vector<8x384xf32>
      %47 = arith.mulf %45, %46 : vector<8x384xf32>
      %48 = arith.truncf %47 : vector<8x384xf32> to vector<8x384xbf16>
      %c0_19 = arith.constant 0 : index
      %c0_20 = arith.constant 0 : index
      %c0_21 = arith.constant 0 : index
      %49 = vector.load %arg6[%c0_19, %c0_20, %c0_21] : memref<3x384x256xbf16, #tpu.memory_space<vmem>>, vector<1x384x256xbf16>
      %50 = vector.shape_cast %49 : vector<1x384x256xbf16> to vector<384x256xbf16>
      %cst_22 = arith.constant dense<0.000000e+00> : vector<8x256xf32>
      %51 = tpu.matmul %48, %50, %cst_22 {dimension_numbers = #tpu.dot_dimension_numbers<[1], [0], [0], [1], [0, 0, 1, 1], [], []>} : vector<8x384xbf16>, vector<384x256xbf16>, vector<8x256xf32> -> vector<8x256xf32>
      %52 = arith.truncf %44 : vector<8x384xf32> to vector<8x384xbf16>
      %c1 = arith.constant 1 : index
      %c0_23 = arith.constant 0 : index
      %c0_24 = arith.constant 0 : index
      %53 = vector.load %arg6[%c1, %c0_23, %c0_24] : memref<3x384x256xbf16, #tpu.memory_space<vmem>>, vector<1x384x256xbf16>
      %54 = vector.shape_cast %53 : vector<1x384x256xbf16> to vector<384x256xbf16>
      %cst_25 = arith.constant dense<0.000000e+00> : vector<8x256xf32>
      %55 = tpu.matmul %52, %54, %cst_25 {dimension_numbers = #tpu.dot_dimension_numbers<[1], [0], [0], [1], [0, 0, 1, 1], [], []>} : vector<8x384xbf16>, vector<384x256xbf16>, vector<8x256xf32> -> vector<8x256xf32>
      %56 = arith.addf %51, %55 : vector<8x256xf32>
      %c7_i32_26 = arith.constant 7 : i32
      %57 = tpu.dynamic_rotate %44 by %c7_i32_26 dim 0 : vector<8x384xf32>, i32 -> vector<8x384xf32>
      %58 = vector.broadcast %41 : vector<8x1xf32> to vector<8x384xf32>
      %59 = arith.mulf %57, %58 : vector<8x384xf32>
      %60 = arith.truncf %59 : vector<8x384xf32> to vector<8x384xbf16>
      %c2 = arith.constant 2 : index
      %c0_27 = arith.constant 0 : index
      %c0_28 = arith.constant 0 : index
      %61 = vector.load %arg6[%c2, %c0_27, %c0_28] : memref<3x384x256xbf16, #tpu.memory_space<vmem>>, vector<1x384x256xbf16>
      %62 = vector.shape_cast %61 : vector<1x384x256xbf16> to vector<384x256xbf16>
      %cst_29 = arith.constant dense<0.000000e+00> : vector<8x256xf32>
      %63 = tpu.matmul %60, %62, %cst_29 {dimension_numbers = #tpu.dot_dimension_numbers<[1], [0], [0], [1], [0, 0, 1, 1], [], []>} : vector<8x384xbf16>, vector<384x256xbf16>, vector<8x256xf32> -> vector<8x256xf32>
      %64 = arith.addf %56, %63 : vector<8x256xf32>
      %65 = vector.extract_strided_slice %42 {offsets = [0, 0], sizes = [1, 256], strides = [1, 1]} : vector<8x256xf32> to vector<1x256xf32>
      %66 = vector.broadcast %65 : vector<1x256xf32> to vector<8x256xf32>
      %67 = arith.addf %64, %66 : vector<8x256xf32>
      %cst_30 = arith.constant 0.000000e+00 : f32
      %68 = vector.broadcast %cst_30 : f32 to vector<8x256xf32>
      %69 = arith.maximumf %67, %68 : vector<8x256xf32>
      %70 = vector.extract_strided_slice %42 {offsets = [1, 0], sizes = [1, 256], strides = [1, 1]} : vector<8x256xf32> to vector<1x256xf32>
      %71 = vector.extract_strided_slice %42 {offsets = [2, 0], sizes = [1, 256], strides = [1, 1]} : vector<8x256xf32> to vector<1x256xf32>
      %cst_31 = arith.constant dense<0.000000e+00> : vector<8xf32>
      %72 = vector.multi_reduction <add>, %69, %cst_31 [1] : vector<8x256xf32> to vector<8xf32>
      %73 = vector.shape_cast %72 : vector<8xf32> to vector<8x1xf32>
      %cst_32 = arith.constant 2.560000e+02 : f32
      %74 = vector.broadcast %cst_32 : f32 to vector<8x1xf32>
      %75 = arith.divf %73, %74 : vector<8x1xf32>
      %76 = vector.broadcast %75 : vector<8x1xf32> to vector<8x256xf32>
      %77 = arith.subf %69, %76 : vector<8x256xf32>
      %78 = vector.broadcast %75 : vector<8x1xf32> to vector<8x256xf32>
      %79 = arith.subf %69, %78 : vector<8x256xf32>
      %80 = arith.mulf %77, %79 : vector<8x256xf32>
      %cst_33 = arith.constant dense<0.000000e+00> : vector<8xf32>
      %81 = vector.multi_reduction <add>, %80, %cst_33 [1] : vector<8x256xf32> to vector<8xf32>
      %82 = vector.shape_cast %81 : vector<8xf32> to vector<8x1xf32>
      %cst_34 = arith.constant 2.560000e+02 : f32
      %83 = vector.broadcast %cst_34 : f32 to vector<8x1xf32>
      %84 = arith.divf %82, %83 : vector<8x1xf32>
      %85 = vector.broadcast %75 : vector<8x1xf32> to vector<8x256xf32>
      %86 = arith.subf %69, %85 : vector<8x256xf32>
      %cst_35 = arith.constant 9.99999974E-6 : f32
      %87 = vector.broadcast %cst_35 : f32 to vector<8x1xf32>
      %88 = arith.addf %84, %87 : vector<8x1xf32>
      %89 = math.rsqrt %88 : vector<8x1xf32>
      %90 = vector.broadcast %89 : vector<8x1xf32> to vector<8x256xf32>
      %91 = arith.mulf %86, %90 : vector<8x256xf32>
      %92 = vector.broadcast %70 : vector<1x256xf32> to vector<8x256xf32>
      %93 = arith.mulf %91, %92 : vector<8x256xf32>
      %94 = vector.broadcast %71 : vector<1x256xf32> to vector<8x256xf32>
      %95 = arith.addf %93, %94 : vector<8x256xf32>
      %c1_i32_36 = arith.constant 1 : i32
      %96 = tpu.dynamic_rotate %95 by %c1_i32_36 dim 0 : vector<8x256xf32>, i32 -> vector<8x256xf32>
      %97 = vector.broadcast %37 : vector<8x1xf32> to vector<8x256xf32>
      %98 = arith.mulf %96, %97 : vector<8x256xf32>
      %99 = arith.truncf %98 : vector<8x256xf32> to vector<8x256xbf16>
      %c0_37 = arith.constant 0 : index
      %c0_38 = arith.constant 0 : index
      %c0_39 = arith.constant 0 : index
      %100 = vector.load %arg7[%c0_37, %c0_38, %c0_39] : memref<3x256x256xbf16, #tpu.memory_space<vmem>>, vector<1x256x256xbf16>
      %101 = vector.shape_cast %100 : vector<1x256x256xbf16> to vector<256x256xbf16>
      %cst_40 = arith.constant dense<0.000000e+00> : vector<8x256xf32>
      %102 = tpu.matmul %99, %101, %cst_40 {dimension_numbers = #tpu.dot_dimension_numbers<[1], [0], [0], [1], [0, 0, 1, 1], [], []>} : vector<8x256xbf16>, vector<256x256xbf16>, vector<8x256xf32> -> vector<8x256xf32>
      %103 = arith.truncf %95 : vector<8x256xf32> to vector<8x256xbf16>
      %c1_41 = arith.constant 1 : index
      %c0_42 = arith.constant 0 : index
      %c0_43 = arith.constant 0 : index
      %104 = vector.load %arg7[%c1_41, %c0_42, %c0_43] : memref<3x256x256xbf16, #tpu.memory_space<vmem>>, vector<1x256x256xbf16>
      %105 = vector.shape_cast %104 : vector<1x256x256xbf16> to vector<256x256xbf16>
      %cst_44 = arith.constant dense<0.000000e+00> : vector<8x256xf32>
      %106 = tpu.matmul %103, %105, %cst_44 {dimension_numbers = #tpu.dot_dimension_numbers<[1], [0], [0], [1], [0, 0, 1, 1], [], []>} : vector<8x256xbf16>, vector<256x256xbf16>, vector<8x256xf32> -> vector<8x256xf32>
      %107 = arith.addf %102, %106 : vector<8x256xf32>
      %c7_i32_45 = arith.constant 7 : i32
      %108 = tpu.dynamic_rotate %95 by %c7_i32_45 dim 0 : vector<8x256xf32>, i32 -> vector<8x256xf32>
      %109 = vector.broadcast %41 : vector<8x1xf32> to vector<8x256xf32>
      %110 = arith.mulf %108, %109 : vector<8x256xf32>
      %111 = arith.truncf %110 : vector<8x256xf32> to vector<8x256xbf16>
      %c2_46 = arith.constant 2 : index
      %c0_47 = arith.constant 0 : index
      %c0_48 = arith.constant 0 : index
      %112 = vector.load %arg7[%c2_46, %c0_47, %c0_48] : memref<3x256x256xbf16, #tpu.memory_space<vmem>>, vector<1x256x256xbf16>
      %113 = vector.shape_cast %112 : vector<1x256x256xbf16> to vector<256x256xbf16>
      %cst_49 = arith.constant dense<0.000000e+00> : vector<8x256xf32>
      %114 = tpu.matmul %111, %113, %cst_49 {dimension_numbers = #tpu.dot_dimension_numbers<[1], [0], [0], [1], [0, 0, 1, 1], [], []>} : vector<8x256xbf16>, vector<256x256xbf16>, vector<8x256xf32> -> vector<8x256xf32>
      %115 = arith.addf %107, %114 : vector<8x256xf32>
      %116 = vector.extract_strided_slice %42 {offsets = [3, 0], sizes = [1, 256], strides = [1, 1]} : vector<8x256xf32> to vector<1x256xf32>
      %117 = vector.broadcast %116 : vector<1x256xf32> to vector<8x256xf32>
      %118 = arith.addf %115, %117 : vector<8x256xf32>
      %cst_50 = arith.constant 0.000000e+00 : f32
      %119 = vector.broadcast %cst_50 : f32 to vector<8x256xf32>
      %120 = arith.maximumf %118, %119 : vector<8x256xf32>
      %121 = vector.extract_strided_slice %42 {offsets = [4, 0], sizes = [1, 256], strides = [1, 1]} : vector<8x256xf32> to vector<1x256xf32>
      %122 = vector.extract_strided_slice %42 {offsets = [5, 0], sizes = [1, 256], strides = [1, 1]} : vector<8x256xf32> to vector<1x256xf32>
      %cst_51 = arith.constant dense<0.000000e+00> : vector<8xf32>
      %123 = vector.multi_reduction <add>, %120, %cst_51 [1] : vector<8x256xf32> to vector<8xf32>
      %124 = vector.shape_cast %123 : vector<8xf32> to vector<8x1xf32>
      %cst_52 = arith.constant 2.560000e+02 : f32
      %125 = vector.broadcast %cst_52 : f32 to vector<8x1xf32>
      %126 = arith.divf %124, %125 : vector<8x1xf32>
      %127 = vector.broadcast %126 : vector<8x1xf32> to vector<8x256xf32>
      %128 = arith.subf %120, %127 : vector<8x256xf32>
      %129 = vector.broadcast %126 : vector<8x1xf32> to vector<8x256xf32>
      %130 = arith.subf %120, %129 : vector<8x256xf32>
      %131 = arith.mulf %128, %130 : vector<8x256xf32>
      %cst_53 = arith.constant dense<0.000000e+00> : vector<8xf32>
      %132 = vector.multi_reduction <add>, %131, %cst_53 [1] : vector<8x256xf32> to vector<8xf32>
      %133 = vector.shape_cast %132 : vector<8xf32> to vector<8x1xf32>
      %cst_54 = arith.constant 2.560000e+02 : f32
      %134 = vector.broadcast %cst_54 : f32 to vector<8x1xf32>
      %135 = arith.divf %133, %134 : vector<8x1xf32>
      %136 = vector.broadcast %126 : vector<8x1xf32> to vector<8x256xf32>
      %137 = arith.subf %120, %136 : vector<8x256xf32>
      %cst_55 = arith.constant 9.99999974E-6 : f32
      %138 = vector.broadcast %cst_55 : f32 to vector<8x1xf32>
      %139 = arith.addf %135, %138 : vector<8x1xf32>
      %140 = math.rsqrt %139 : vector<8x1xf32>
      %141 = vector.broadcast %140 : vector<8x1xf32> to vector<8x256xf32>
      %142 = arith.mulf %137, %141 : vector<8x256xf32>
      %143 = vector.broadcast %121 : vector<1x256xf32> to vector<8x256xf32>
      %144 = arith.mulf %142, %143 : vector<8x256xf32>
      %145 = vector.broadcast %122 : vector<1x256xf32> to vector<8x256xf32>
      %146 = arith.addf %144, %145 : vector<8x256xf32>
      %147 = vector.extract_strided_slice %42 {offsets = [6, 0], sizes = [1, 256], strides = [1, 1]} : vector<8x256xf32> to vector<1x256xf32>
      %148 = vector.broadcast %147 : vector<1x256xf32> to vector<8x256xf32>
      %149 = arith.mulf %146, %148 : vector<8x256xf32>
      %cst_56 = arith.constant dense<0.000000e+00> : vector<8xf32>
      %150 = vector.multi_reduction <add>, %149, %cst_56 [1] : vector<8x256xf32> to vector<8xf32>
      %151 = vector.shape_cast %150 : vector<8xf32> to vector<8x1xf32>
      %152 = vector.extract_strided_slice %42 {offsets = [7, 0], sizes = [1, 1], strides = [1, 1]} : vector<8x256xf32> to vector<1x1xf32>
      %153 = vector.broadcast %152 : vector<1x1xf32> to vector<8x1xf32>
      %154 = arith.addf %151, %153 : vector<8x1xf32>
      %155 = arith.mulf %154, %32 : vector<8x1xf32>
      %c0_57 = arith.constant 0 : index
      %c0_58 = arith.constant 0 : index
      %c0_59 = arith.constant 0 : index
      %156 = vector.load %arg4[%c0_57, %c0_58, %c0_59] : memref<1x8x2xf32, #tpu.memory_space<vmem>>, vector<1x8x2xf32>
      %157 = vector.shape_cast %156 : vector<1x8x2xf32> to vector<8x2xf32>
      %c1_i32_60 = arith.constant 1 : i32
      %158 = tpu.dynamic_rotate %157 by %c1_i32_60 dim 0 : vector<8x2xf32>, i32 -> vector<8x2xf32>
      %159 = vector.broadcast %37 : vector<8x1xf32> to vector<8x2xf32>
      %160 = arith.mulf %158, %159 : vector<8x2xf32>
      %c7_i32_61 = arith.constant 7 : i32
      %161 = tpu.dynamic_rotate %157 by %c7_i32_61 dim 0 : vector<8x2xf32>, i32 -> vector<8x2xf32>
      %162 = vector.broadcast %41 : vector<8x1xf32> to vector<8x2xf32>
      %163 = arith.mulf %161, %162 : vector<8x2xf32>
      %c0_62 = arith.constant 0 : index
      %c0_63 = arith.constant 0 : index
      %164 = vector.load %arg12[%c0_62, %c0_63] : memref<4x384xf32, #tpu.memory_space<vmem>>, vector<4x384xf32>
      %c0_64 = arith.constant 0 : index
      %c0_65 = arith.constant 0 : index
      %165 = vector.load %arg13[%c0_64, %c0_65] : memref<4x384xf32, #tpu.memory_space<vmem>>, vector<4x384xf32>
      %166 = vector.extract_strided_slice %160 {offsets = [0, 0], sizes = [8, 1], strides = [1, 1]} : vector<8x2xf32> to vector<8x1xf32>
      %167 = vector.extract_strided_slice %164 {offsets = [0, 0], sizes = [1, 384], strides = [1, 1]} : vector<4x384xf32> to vector<1x384xf32>
      %168 = vector.broadcast %166 : vector<8x1xf32> to vector<8x384xf32>
      %169 = vector.broadcast %167 : vector<1x384xf32> to vector<8x384xf32>
      %170 = arith.mulf %168, %169 : vector<8x384xf32>
      %171 = vector.extract_strided_slice %157 {offsets = [0, 0], sizes = [8, 1], strides = [1, 1]} : vector<8x2xf32> to vector<8x1xf32>
      %172 = vector.extract_strided_slice %164 {offsets = [1, 0], sizes = [1, 384], strides = [1, 1]} : vector<4x384xf32> to vector<1x384xf32>
      %173 = vector.broadcast %171 : vector<8x1xf32> to vector<8x384xf32>
      %174 = vector.broadcast %172 : vector<1x384xf32> to vector<8x384xf32>
      %175 = arith.mulf %173, %174 : vector<8x384xf32>
      %176 = arith.addf %170, %175 : vector<8x384xf32>
      %177 = vector.extract_strided_slice %163 {offsets = [0, 0], sizes = [8, 1], strides = [1, 1]} : vector<8x2xf32> to vector<8x1xf32>
      %178 = vector.extract_strided_slice %164 {offsets = [2, 0], sizes = [1, 384], strides = [1, 1]} : vector<4x384xf32> to vector<1x384xf32>
      %179 = vector.broadcast %177 : vector<8x1xf32> to vector<8x384xf32>
      %180 = vector.broadcast %178 : vector<1x384xf32> to vector<8x384xf32>
      %181 = arith.mulf %179, %180 : vector<8x384xf32>
      %182 = arith.addf %176, %181 : vector<8x384xf32>
      %183 = vector.extract_strided_slice %164 {offsets = [3, 0], sizes = [1, 384], strides = [1, 1]} : vector<4x384xf32> to vector<1x384xf32>
      %184 = vector.broadcast %183 : vector<1x384xf32> to vector<8x384xf32>
      %185 = arith.addf %182, %184 : vector<8x384xf32>
      %186 = arith.addf %30, %185 : vector<8x384xf32>
      %c0_66 = arith.constant 0 : index
      %c0_67 = arith.constant 0 : index
      %187 = vector.load %arg11[%c0_66, %c0_67] : memref<8x256xf32, #tpu.memory_space<vmem>>, vector<8x256xf32>
      %188 = vector.broadcast %32 : vector<8x1xf32> to vector<8x384xf32>
      %189 = arith.mulf %186, %188 : vector<8x384xf32>
      %c1_i32_68 = arith.constant 1 : i32
      %190 = tpu.dynamic_rotate %189 by %c1_i32_68 dim 0 : vector<8x384xf32>, i32 -> vector<8x384xf32>
      %191 = vector.broadcast %37 : vector<8x1xf32> to vector<8x384xf32>
      %192 = arith.mulf %190, %191 : vector<8x384xf32>
      %193 = arith.truncf %192 : vector<8x384xf32> to vector<8x384xbf16>
      %c0_69 = arith.constant 0 : index
      %c0_70 = arith.constant 0 : index
      %c0_71 = arith.constant 0 : index
      %194 = vector.load %arg9[%c0_69, %c0_70, %c0_71] : memref<3x384x256xbf16, #tpu.memory_space<vmem>>, vector<1x384x256xbf16>
      %195 = vector.shape_cast %194 : vector<1x384x256xbf16> to vector<384x256xbf16>
      %cst_72 = arith.constant dense<0.000000e+00> : vector<8x256xf32>
      %196 = tpu.matmul %193, %195, %cst_72 {dimension_numbers = #tpu.dot_dimension_numbers<[1], [0], [0], [1], [0, 0, 1, 1], [], []>} : vector<8x384xbf16>, vector<384x256xbf16>, vector<8x256xf32> -> vector<8x256xf32>
      %197 = arith.truncf %189 : vector<8x384xf32> to vector<8x384xbf16>
      %c1_73 = arith.constant 1 : index
      %c0_74 = arith.constant 0 : index
      %c0_75 = arith.constant 0 : index
      %198 = vector.load %arg9[%c1_73, %c0_74, %c0_75] : memref<3x384x256xbf16, #tpu.memory_space<vmem>>, vector<1x384x256xbf16>
      %199 = vector.shape_cast %198 : vector<1x384x256xbf16> to vector<384x256xbf16>
      %cst_76 = arith.constant dense<0.000000e+00> : vector<8x256xf32>
      %200 = tpu.matmul %197, %199, %cst_76 {dimension_numbers = #tpu.dot_dimension_numbers<[1], [0], [0], [1], [0, 0, 1, 1], [], []>} : vector<8x384xbf16>, vector<384x256xbf16>, vector<8x256xf32> -> vector<8x256xf32>
      %201 = arith.addf %196, %200 : vector<8x256xf32>
      %c7_i32_77 = arith.constant 7 : i32
      %202 = tpu.dynamic_rotate %189 by %c7_i32_77 dim 0 : vector<8x384xf32>, i32 -> vector<8x384xf32>
      %203 = vector.broadcast %41 : vector<8x1xf32> to vector<8x384xf32>
      %204 = arith.mulf %202, %203 : vector<8x384xf32>
      %205 = arith.truncf %204 : vector<8x384xf32> to vector<8x384xbf16>
      %c2_78 = arith.constant 2 : index
      %c0_79 = arith.constant 0 : index
      %c0_80 = arith.constant 0 : index
      %206 = vector.load %arg9[%c2_78, %c0_79, %c0_80] : memref<3x384x256xbf16, #tpu.memory_space<vmem>>, vector<1x384x256xbf16>
      %207 = vector.shape_cast %206 : vector<1x384x256xbf16> to vector<384x256xbf16>
      %cst_81 = arith.constant dense<0.000000e+00> : vector<8x256xf32>
      %208 = tpu.matmul %205, %207, %cst_81 {dimension_numbers = #tpu.dot_dimension_numbers<[1], [0], [0], [1], [0, 0, 1, 1], [], []>} : vector<8x384xbf16>, vector<384x256xbf16>, vector<8x256xf32> -> vector<8x256xf32>
      %209 = arith.addf %201, %208 : vector<8x256xf32>
      %210 = vector.extract_strided_slice %187 {offsets = [0, 0], sizes = [1, 256], strides = [1, 1]} : vector<8x256xf32> to vector<1x256xf32>
      %211 = vector.broadcast %210 : vector<1x256xf32> to vector<8x256xf32>
      %212 = arith.addf %209, %211 : vector<8x256xf32>
      %cst_82 = arith.constant 0.000000e+00 : f32
      %213 = vector.broadcast %cst_82 : f32 to vector<8x256xf32>
      %214 = arith.maximumf %212, %213 : vector<8x256xf32>
      %215 = vector.extract_strided_slice %187 {offsets = [1, 0], sizes = [1, 256], strides = [1, 1]} : vector<8x256xf32> to vector<1x256xf32>
      %216 = vector.extract_strided_slice %187 {offsets = [2, 0], sizes = [1, 256], strides = [1, 1]} : vector<8x256xf32> to vector<1x256xf32>
      %cst_83 = arith.constant dense<0.000000e+00> : vector<8xf32>
      %217 = vector.multi_reduction <add>, %214, %cst_83 [1] : vector<8x256xf32> to vector<8xf32>
      %218 = vector.shape_cast %217 : vector<8xf32> to vector<8x1xf32>
      %cst_84 = arith.constant 2.560000e+02 : f32
      %219 = vector.broadcast %cst_84 : f32 to vector<8x1xf32>
      %220 = arith.divf %218, %219 : vector<8x1xf32>
      %221 = vector.broadcast %220 : vector<8x1xf32> to vector<8x256xf32>
      %222 = arith.subf %214, %221 : vector<8x256xf32>
      %223 = vector.broadcast %220 : vector<8x1xf32> to vector<8x256xf32>
      %224 = arith.subf %214, %223 : vector<8x256xf32>
      %225 = arith.mulf %222, %224 : vector<8x256xf32>
      %cst_85 = arith.constant dense<0.000000e+00> : vector<8xf32>
      %226 = vector.multi_reduction <add>, %225, %cst_85 [1] : vector<8x256xf32> to vector<8xf32>
      %227 = vector.shape_cast %226 : vector<8xf32> to vector<8x1xf32>
      %cst_86 = arith.constant 2.560000e+02 : f32
      %228 = vector.broadcast %cst_86 : f32 to vector<8x1xf32>
      %229 = arith.divf %227, %228 : vector<8x1xf32>
      %230 = vector.broadcast %220 : vector<8x1xf32> to vector<8x256xf32>
      %231 = arith.subf %214, %230 : vector<8x256xf32>
      %cst_87 = arith.constant 9.99999974E-6 : f32
      %232 = vector.broadcast %cst_87 : f32 to vector<8x1xf32>
      %233 = arith.addf %229, %232 : vector<8x1xf32>
      %234 = math.rsqrt %233 : vector<8x1xf32>
      %235 = vector.broadcast %234 : vector<8x1xf32> to vector<8x256xf32>
      %236 = arith.mulf %231, %235 : vector<8x256xf32>
      %237 = vector.broadcast %215 : vector<1x256xf32> to vector<8x256xf32>
      %238 = arith.mulf %236, %237 : vector<8x256xf32>
      %239 = vector.broadcast %216 : vector<1x256xf32> to vector<8x256xf32>
      %240 = arith.addf %238, %239 : vector<8x256xf32>
      %c1_i32_88 = arith.constant 1 : i32
      %241 = tpu.dynamic_rotate %240 by %c1_i32_88 dim 0 : vector<8x256xf32>, i32 -> vector<8x256xf32>
      %242 = vector.broadcast %37 : vector<8x1xf32> to vector<8x256xf32>
      %243 = arith.mulf %241, %242 : vector<8x256xf32>
      %244 = arith.truncf %243 : vector<8x256xf32> to vector<8x256xbf16>
      %c0_89 = arith.constant 0 : index
      %c0_90 = arith.constant 0 : index
      %c0_91 = arith.constant 0 : index
      %245 = vector.load %arg10[%c0_89, %c0_90, %c0_91] : memref<3x256x256xbf16, #tpu.memory_space<vmem>>, vector<1x256x256xbf16>
      %246 = vector.shape_cast %245 : vector<1x256x256xbf16> to vector<256x256xbf16>
      %cst_92 = arith.constant dense<0.000000e+00> : vector<8x256xf32>
      %247 = tpu.matmul %244, %246, %cst_92 {dimension_numbers = #tpu.dot_dimension_numbers<[1], [0], [0], [1], [0, 0, 1, 1], [], []>} : vector<8x256xbf16>, vector<256x256xbf16>, vector<8x256xf32> -> vector<8x256xf32>
      %248 = arith.truncf %240 : vector<8x256xf32> to vector<8x256xbf16>
      %c1_93 = arith.constant 1 : index
      %c0_94 = arith.constant 0 : index
      %c0_95 = arith.constant 0 : index
      %249 = vector.load %arg10[%c1_93, %c0_94, %c0_95] : memref<3x256x256xbf16, #tpu.memory_space<vmem>>, vector<1x256x256xbf16>
      %250 = vector.shape_cast %249 : vector<1x256x256xbf16> to vector<256x256xbf16>
      %cst_96 = arith.constant dense<0.000000e+00> : vector<8x256xf32>
      %251 = tpu.matmul %248, %250, %cst_96 {dimension_numbers = #tpu.dot_dimension_numbers<[1], [0], [0], [1], [0, 0, 1, 1], [], []>} : vector<8x256xbf16>, vector<256x256xbf16>, vector<8x256xf32> -> vector<8x256xf32>
      %252 = arith.addf %247, %251 : vector<8x256xf32>
      %c7_i32_97 = arith.constant 7 : i32
      %253 = tpu.dynamic_rotate %240 by %c7_i32_97 dim 0 : vector<8x256xf32>, i32 -> vector<8x256xf32>
      %254 = vector.broadcast %41 : vector<8x1xf32> to vector<8x256xf32>
      %255 = arith.mulf %253, %254 : vector<8x256xf32>
      %256 = arith.truncf %255 : vector<8x256xf32> to vector<8x256xbf16>
      %c2_98 = arith.constant 2 : index
      %c0_99 = arith.constant 0 : index
      %c0_100 = arith.constant 0 : index
      %257 = vector.load %arg10[%c2_98, %c0_99, %c0_100] : memref<3x256x256xbf16, #tpu.memory_space<vmem>>, vector<1x256x256xbf16>
      %258 = vector.shape_cast %257 : vector<1x256x256xbf16> to vector<256x256xbf16>
      %cst_101 = arith.constant dense<0.000000e+00> : vector<8x256xf32>
      %259 = tpu.matmul %256, %258, %cst_101 {dimension_numbers = #tpu.dot_dimension_numbers<[1], [0], [0], [1], [0, 0, 1, 1], [], []>} : vector<8x256xbf16>, vector<256x256xbf16>, vector<8x256xf32> -> vector<8x256xf32>
      %260 = arith.addf %252, %259 : vector<8x256xf32>
      %261 = vector.extract_strided_slice %187 {offsets = [3, 0], sizes = [1, 256], strides = [1, 1]} : vector<8x256xf32> to vector<1x256xf32>
      %262 = vector.broadcast %261 : vector<1x256xf32> to vector<8x256xf32>
      %263 = arith.addf %260, %262 : vector<8x256xf32>
      %cst_102 = arith.constant 0.000000e+00 : f32
      %264 = vector.broadcast %cst_102 : f32 to vector<8x256xf32>
      %265 = arith.maximumf %263, %264 : vector<8x256xf32>
      %266 = vector.extract_strided_slice %187 {offsets = [4, 0], sizes = [1, 256], strides = [1, 1]} : vector<8x256xf32> to vector<1x256xf32>
      %267 = vector.extract_strided_slice %187 {offsets = [5, 0], sizes = [1, 256], strides = [1, 1]} : vector<8x256xf32> to vector<1x256xf32>
      %cst_103 = arith.constant dense<0.000000e+00> : vector<8xf32>
      %268 = vector.multi_reduction <add>, %265, %cst_103 [1] : vector<8x256xf32> to vector<8xf32>
      %269 = vector.shape_cast %268 : vector<8xf32> to vector<8x1xf32>
      %cst_104 = arith.constant 2.560000e+02 : f32
      %270 = vector.broadcast %cst_104 : f32 to vector<8x1xf32>
      %271 = arith.divf %269, %270 : vector<8x1xf32>
      %272 = vector.broadcast %271 : vector<8x1xf32> to vector<8x256xf32>
      %273 = arith.subf %265, %272 : vector<8x256xf32>
      %274 = vector.broadcast %271 : vector<8x1xf32> to vector<8x256xf32>
      %275 = arith.subf %265, %274 : vector<8x256xf32>
      %276 = arith.mulf %273, %275 : vector<8x256xf32>
      %cst_105 = arith.constant dense<0.000000e+00> : vector<8xf32>
      %277 = vector.multi_reduction <add>, %276, %cst_105 [1] : vector<8x256xf32> to vector<8xf32>
      %278 = vector.shape_cast %277 : vector<8xf32> to vector<8x1xf32>
      %cst_106 = arith.constant 2.560000e+02 : f32
      %279 = vector.broadcast %cst_106 : f32 to vector<8x1xf32>
      %280 = arith.divf %278, %279 : vector<8x1xf32>
      %281 = vector.broadcast %271 : vector<8x1xf32> to vector<8x256xf32>
      %282 = arith.subf %265, %281 : vector<8x256xf32>
      %cst_107 = arith.constant 9.99999974E-6 : f32
      %283 = vector.broadcast %cst_107 : f32 to vector<8x1xf32>
      %284 = arith.addf %280, %283 : vector<8x1xf32>
      %285 = math.rsqrt %284 : vector<8x1xf32>
      %286 = vector.broadcast %285 : vector<8x1xf32> to vector<8x256xf32>
      %287 = arith.mulf %282, %286 : vector<8x256xf32>
      %288 = vector.broadcast %266 : vector<1x256xf32> to vector<8x256xf32>
      %289 = arith.mulf %287, %288 : vector<8x256xf32>
      %290 = vector.broadcast %267 : vector<1x256xf32> to vector<8x256xf32>
      %291 = arith.addf %289, %290 : vector<8x256xf32>
      %292 = vector.extract_strided_slice %187 {offsets = [6, 0], sizes = [1, 256], strides = [1, 1]} : vector<8x256xf32> to vector<1x256xf32>
      %293 = vector.broadcast %292 : vector<1x256xf32> to vector<8x256xf32>
      %294 = arith.mulf %291, %293 : vector<8x256xf32>
      %cst_108 = arith.constant dense<0.000000e+00> : vector<8xf32>
      %295 = vector.multi_reduction <add>, %294, %cst_108 [1] : vector<8x256xf32> to vector<8xf32>
      %296 = vector.shape_cast %295 : vector<8xf32> to vector<8x1xf32>
      %297 = vector.extract_strided_slice %187 {offsets = [7, 0], sizes = [1, 1], strides = [1, 1]} : vector<8x256xf32> to vector<1x1xf32>
      %298 = vector.broadcast %297 : vector<1x1xf32> to vector<8x1xf32>
      %299 = arith.addf %296, %298 : vector<8x1xf32>
      %300 = arith.mulf %299, %32 : vector<8x1xf32>
      %301 = tpu.concatenate %155, %300 in 1 : vector<8x1xf32>, vector<8x1xf32> -> vector<8x2xf32>
      %c0_109 = arith.constant 0 : index
      %c0_110 = arith.constant 0 : index
      %c0_111 = arith.constant 0 : index
      %302 = vector.load %arg17[%c0_109, %c0_110, %c0_111] : memref<1x8x2xf32, #tpu.memory_space<vmem>>, vector<1x8x2xf32>
      %303 = vector.shape_cast %302 : vector<1x8x2xf32> to vector<8x2xf32>
      %304 = vector.shape_cast %301 : vector<8x2xf32> to vector<1x8x2xf32>
      tpu.vector_store %arg17[%c0_109, %c0_110, %c0_111], %304 {strides = array<i32>} : memref<1x8x2xf32, #tpu.memory_space<vmem>>, vector<1x8x2xf32>,
      %305 = vector.extract_strided_slice %160 {offsets = [0, 1], sizes = [8, 1], strides = [1, 1]} : vector<8x2xf32> to vector<8x1xf32>
      %306 = vector.extract_strided_slice %165 {offsets = [0, 0], sizes = [1, 384], strides = [1, 1]} : vector<4x384xf32> to vector<1x384xf32>
      %307 = vector.broadcast %305 : vector<8x1xf32> to vector<8x384xf32>
      %308 = vector.broadcast %306 : vector<1x384xf32> to vector<8x384xf32>
      %309 = arith.mulf %307, %308 : vector<8x384xf32>
      %310 = vector.extract_strided_slice %157 {offsets = [0, 1], sizes = [8, 1], strides = [1, 1]} : vector<8x2xf32> to vector<8x1xf32>
      %311 = vector.extract_strided_slice %165 {offsets = [1, 0], sizes = [1, 384], strides = [1, 1]} : vector<4x384xf32> to vector<1x384xf32>
      %312 = vector.broadcast %310 : vector<8x1xf32> to vector<8x384xf32>
      %313 = vector.broadcast %311 : vector<1x384xf32> to vector<8x384xf32>
      %314 = arith.mulf %312, %313 : vector<8x384xf32>
      %315 = arith.addf %309, %314 : vector<8x384xf32>
      %316 = vector.extract_strided_slice %163 {offsets = [0, 1], sizes = [8, 1], strides = [1, 1]} : vector<8x2xf32> to vector<8x1xf32>
      %317 = vector.extract_strided_slice %165 {offsets = [2, 0], sizes = [1, 384], strides = [1, 1]} : vector<4x384xf32> to vector<1x384xf32>
      %318 = vector.broadcast %316 : vector<8x1xf32> to vector<8x384xf32>
      %319 = vector.broadcast %317 : vector<1x384xf32> to vector<8x384xf32>
      %320 = arith.mulf %318, %319 : vector<8x384xf32>
      %321 = arith.addf %315, %320 : vector<8x384xf32>
      %322 = vector.extract_strided_slice %165 {offsets = [3, 0], sizes = [1, 384], strides = [1, 1]} : vector<4x384xf32> to vector<1x384xf32>
      %323 = vector.broadcast %322 : vector<1x384xf32> to vector<8x384xf32>
      %324 = arith.addf %321, %323 : vector<8x384xf32>
      %325 = arith.addf %186, %324 : vector<8x384xf32>
      %326 = arith.truncf %325 : vector<8x384xf32> to vector<8x384xbf16>
      %c0_112 = arith.constant 0 : index
      %c0_113 = arith.constant 0 : index
      %327 = vector.load %arg14[%c0_112, %c0_113] : memref<384x128xbf16, #tpu.memory_space<vmem>>, vector<384x128xbf16>
      %cst_114 = arith.constant dense<0.000000e+00> : vector<8x128xf32>
      %328 = tpu.matmul %326, %327, %cst_114 {dimension_numbers = #tpu.dot_dimension_numbers<[1], [0], [0], [1], [0, 0, 1, 1], [], []>} : vector<8x384xbf16>, vector<384x128xbf16>, vector<8x128xf32> -> vector<8x128xf32>
      %329 = arith.truncf %328 : vector<8x128xf32> to vector<8x128xbf16>
      %c0_115 = arith.constant 0 : index
      %c0_116 = arith.constant 0 : index
      %330 = vector.load %arg18[%c0_115, %c0_116] : memref<8x128xbf16, #tpu.memory_space<vmem>>, vector<8x128xbf16>
      tpu.vector_store %arg18[%c0_115, %c0_116], %329 {strides = array<i32>} : memref<8x128xbf16, #tpu.memory_space<vmem>>, vector<8x128xbf16>,
    } else {
    }
    %c0 = arith.constant 0 : index
    %c0_1 = arith.constant 0 : index
    %c0_2 = arith.constant 0 : index
    %3 = vector.load %arg5[%c0, %c0_1, %c0_2] : memref<1x1x9xi32, #tpu.memory_space<vmem>>, vector<1x1x9xi32>
    %4 = vector.shape_cast %3 : vector<1x1x9xi32> to vector<1x9xi32>
    %c16_i32 = arith.constant 16 : i32
    %5 = arith.muli %arg1, %c16_i32 : i32
    %6 = tpu.iota {dimensions = array<i32: 0>} : vector<16x8xi32>
    %7 = vector.broadcast %5 : i32 to vector<16x8xi32>
    %8 = arith.addi %7, %6 : vector<16x8xi32>
    %9 = vector.extract_strided_slice %4 {offsets = [0, 0], sizes = [1, 8], strides = [1, 1]} : vector<1x9xi32> to vector<1x8xi32>
    %10 = vector.broadcast %9 : vector<1x8xi32> to vector<16x8xi32>
    %11 = arith.cmpi sle, %10, %8 : vector<16x8xi32>
    %12 = vector.extract_strided_slice %4 {offsets = [0, 1], sizes = [1, 8], strides = [1, 1]} : vector<1x9xi32> to vector<1x8xi32>
    %13 = vector.broadcast %12 : vector<1x8xi32> to vector<16x8xi32>
    %14 = arith.cmpi sgt, %13, %8 : vector<16x8xi32>
    %15 = arith.andi %11, %14 : vector<16x8xi1>
    %16 = arith.extui %15 : vector<16x8xi1> to vector<16x8xi32>
    %17 = arith.sitofp %16 : vector<16x8xi32> to vector<16x8xf32>
    %18 = arith.truncf %17 : vector<16x8xf32> to vector<16x8xbf16>
    %c0_3 = arith.constant 0 : index
    %c0_4 = arith.constant 0 : index
    %19 = vector.load %arg18[%c0_3, %c0_4] : memref<8x128xbf16, #tpu.memory_space<vmem>>, vector<8x128xbf16>
    %cst = arith.constant dense<0.000000e+00> : vector<16x128xf32>
    %20 = tpu.matmul %18, %19, %cst {dimension_numbers = #tpu.dot_dimension_numbers<[1], [0], [0], [1], [0, 0, 1, 1], [], []>} : vector<16x8xbf16>, vector<8x128xbf16>, vector<16x128xf32> -> vector<16x128xf32>
    %c0_5 = arith.constant 0 : index
    %c0_6 = arith.constant 0 : index
    %21 = vector.load %arg15[%c0_5, %c0_6] : memref<1x128xf32, #tpu.memory_space<vmem>>, vector<1x128xf32>
    %22 = vector.broadcast %21 : vector<1x128xf32> to vector<16x128xf32>
    %23 = arith.addf %20, %22 : vector<16x128xf32>
    %24 = arith.truncf %23 : vector<16x128xf32> to vector<16x128xbf16>
    %c0_7 = arith.constant 0 : index
    %c0_8 = arith.constant 0 : index
    %c0_9 = arith.constant 0 : index
    %25 = vector.load %arg16[%c0_7, %c0_8, %c0_9] : memref<1x16x128xbf16, #tpu.memory_space<vmem>>, vector<1x16x128xbf16>
    %26 = vector.shape_cast %25 : vector<1x16x128xbf16> to vector<16x128xbf16>
    %27 = vector.shape_cast %24 : vector<16x128xbf16> to vector<1x16x128xbf16>
    tpu.vector_store %arg16[%c0_7, %c0_8, %c0_9], %27 {strides = array<i32>} : memref<1x16x128xbf16, #tpu.memory_space<vmem>>, vector<1x16x128xbf16>,
    return
  }
  func.func @transform_0(%arg0: i32, %arg1: i32) -> (i32, i32, i32) {
    %c0_i32 = arith.constant 0 : i32
    %c0_i32_0 = arith.constant 0 : i32
    %c0_i32_1 = arith.constant 0 : i32
    return %arg0, %c0_i32, %c0_i32_0 : i32, i32, i32
  }
  func.func @transform_1(%arg0: i32, %arg1: i32) -> (i32, i32, i32) {
    %c0_i32 = arith.constant 0 : i32
    %c0_i32_0 = arith.constant 0 : i32
    %c0_i32_1 = arith.constant 0 : i32
    return %arg0, %c0_i32, %c0_i32_0 : i32, i32, i32
  }
  func.func @transform_2(%arg0: i32, %arg1: i32) -> (i32, i32, i32) {
    %c0_i32 = arith.constant 0 : i32
    %c0_i32_0 = arith.constant 0 : i32
    %c0_i32_1 = arith.constant 0 : i32
    return %arg0, %c0_i32, %c0_i32_0 : i32, i32, i32
  }
  func.func @transform_3(%arg0: i32, %arg1: i32) -> (i32, i32, i32) {
    %c0_i32 = arith.constant 0 : i32
    %c0_i32_0 = arith.constant 0 : i32
    %c0_i32_1 = arith.constant 0 : i32
    return %arg0, %c0_i32, %c0_i32_0 : i32, i32, i32
  }
  func.func @transform_4(%arg0: i32, %arg1: i32) -> (i32, i32, i32) {
    %c0_i32 = arith.constant 0 : i32
    %c0_i32_0 = arith.constant 0 : i32
    %c0_i32_1 = arith.constant 0 : i32
    %c0_i32_2 = arith.constant 0 : i32
    return %c0_i32, %c0_i32_0, %c0_i32_1 : i32, i32, i32
  }
  func.func @transform_5(%arg0: i32, %arg1: i32) -> (i32, i32, i32) {
    %c0_i32 = arith.constant 0 : i32
    %c0_i32_0 = arith.constant 0 : i32
    %c0_i32_1 = arith.constant 0 : i32
    %c0_i32_2 = arith.constant 0 : i32
    return %c0_i32, %c0_i32_0, %c0_i32_1 : i32, i32, i32
  }
  func.func @transform_6(%arg0: i32, %arg1: i32) -> (i32, i32) {
    %c0_i32 = arith.constant 0 : i32
    %c0_i32_0 = arith.constant 0 : i32
    %c0_i32_1 = arith.constant 0 : i32
    return %c0_i32, %c0_i32_0 : i32, i32
  }
  func.func @transform_7(%arg0: i32, %arg1: i32) -> (i32, i32, i32) {
    %c0_i32 = arith.constant 0 : i32
    %c0_i32_0 = arith.constant 0 : i32
    %c0_i32_1 = arith.constant 0 : i32
    %c0_i32_2 = arith.constant 0 : i32
    return %c0_i32, %c0_i32_0, %c0_i32_1 : i32, i32, i32
  }
  func.func @transform_8(%arg0: i32, %arg1: i32) -> (i32, i32, i32) {
    %c0_i32 = arith.constant 0 : i32
    %c0_i32_0 = arith.constant 0 : i32
    %c0_i32_1 = arith.constant 0 : i32
    %c0_i32_2 = arith.constant 0 : i32
    return %c0_i32, %c0_i32_0, %c0_i32_1 : i32, i32, i32
  }
  func.func @transform_9(%arg0: i32, %arg1: i32) -> (i32, i32) {
    %c0_i32 = arith.constant 0 : i32
    %c0_i32_0 = arith.constant 0 : i32
    %c0_i32_1 = arith.constant 0 : i32
    return %c0_i32, %c0_i32_0 : i32, i32
  }
  func.func @transform_10(%arg0: i32, %arg1: i32) -> (i32, i32) {
    %c0_i32 = arith.constant 0 : i32
    %c0_i32_0 = arith.constant 0 : i32
    %c0_i32_1 = arith.constant 0 : i32
    return %c0_i32, %c0_i32_0 : i32, i32
  }
  func.func @transform_11(%arg0: i32, %arg1: i32) -> (i32, i32) {
    %c0_i32 = arith.constant 0 : i32
    %c0_i32_0 = arith.constant 0 : i32
    %c0_i32_1 = arith.constant 0 : i32
    return %c0_i32, %c0_i32_0 : i32, i32
  }
  func.func @transform_12(%arg0: i32, %arg1: i32) -> (i32, i32) {
    %c0_i32 = arith.constant 0 : i32
    %c0_i32_0 = arith.constant 0 : i32
    %c0_i32_1 = arith.constant 0 : i32
    return %c0_i32, %c0_i32_0 : i32, i32
  }
  func.func @transform_13(%arg0: i32, %arg1: i32) -> (i32, i32) {
    %c0_i32 = arith.constant 0 : i32
    %c0_i32_0 = arith.constant 0 : i32
    %c0_i32_1 = arith.constant 0 : i32
    return %c0_i32, %c0_i32_0 : i32, i32
  }
  func.func @transform_14(%arg0: i32, %arg1: i32) -> (i32, i32, i32) {
    %c0_i32 = arith.constant 0 : i32
    %c0_i32_0 = arith.constant 0 : i32
    return %arg0, %arg1, %c0_i32 : i32, i32, i32
  }
  func.func @transform_15(%arg0: i32, %arg1: i32) -> (i32, i32, i32) {
    %c0_i32 = arith.constant 0 : i32
    %c0_i32_0 = arith.constant 0 : i32
    %c0_i32_1 = arith.constant 0 : i32
    return %arg0, %c0_i32, %c0_i32_0 : i32, i32, i32
  }
}

</mosaic_0001>

<llo_original>
// kernel: tpu_custom_call.1
$region0: #{tpu_custom_call.1}
  #allocation0 [shape = 'u32[]', space=smem, size = 0x4, offset = 0x4, fixed_abs, tag = 'smem constant byte address 0x4 - core index']
  #allocation1 [shape = 'u32[144,128]{1,0:T(1,128)}', space=vmem, size = 0x12000, scoped, tag = 'internal scratch']
  #allocation2 [shape = 'bf16[8,128]{1,0:T(8,128)(2,1)}', space=vmem, size = 0x800, scoped, tag = 'scratch operand']
  %s0 = inlined_call_operand.vmem [shape: bf16[2,8,384], index: 0, kind: input, shape index: {}]
  %s1 = inlined_call_operand.vmem [shape: f32[2,8,1], index: 1, kind: input, shape index: {}]
  %s2 = inlined_call_operand.vmem [shape: f32[2,8,2], index: 2, kind: input, shape index: {}]
  %s3 = inlined_call_operand.hbm [shape: s32[2,1,9], index: 3, kind: input, shape index: {}]
  %s4 = inlined_call_operand.hbm [shape: bf16[3,384,256], index: 4, kind: input, shape index: {}]
  %s5 = inlined_call_operand.hbm [shape: bf16[3,256,256], index: 5, kind: input, shape index: {}]
  %s6 = inlined_call_operand.vmem [shape: f32[8,256], index: 6, kind: input, shape index: {}]
  %s7 = inlined_call_operand.hbm [shape: bf16[3,384,256], index: 7, kind: input, shape index: {}]
  %s8 = inlined_call_operand.hbm [shape: bf16[3,256,256], index: 8, kind: input, shape index: {}]
  %s9 = inlined_call_operand.hbm [shape: f32[8,256], index: 9, kind: input, shape index: {}]
  %s10 = inlined_call_operand.vmem [shape: f32[4,384], index: 10, kind: input, shape index: {}]
  %s11 = inlined_call_operand.hbm [shape: f32[4,384], index: 11, kind: input, shape index: {}]
  %s12 = inlined_call_operand.hbm [shape: bf16[384,128], index: 12, kind: input, shape index: {}]
  %s13 = inlined_call_operand.vmem [shape: f32[1,128], index: 13, kind: input, shape index: {}]
  %s14 = inlined_call_operand.hbm [shape: bf16[2,16,128], index: 14, kind: output, shape index: {0}]
  %s15 = inlined_call_operand.vmem [shape: f32[2,8,2], index: 15, kind: output, shape index: {1}]
  %16 = xla_tuple %s14, %s15
  %s17 = sld [smem:[#allocation0]]
  $region133: #{tpu_custom_call.1} parent=0
    _
  %s19 = ssub.s32 1, %s17
  %s20 = scalar_select 0, %s19, %s17
  $region1: #{tpu_custom_call.1} parent=0
    #allocation3 [shape = 'u8[1024]{0}', space=vmem, size = 0x400, scoped, tag = 'input window, operand 3']
    #allocation4 [shape = 's32[2]{0}', space=sflag, size = 0x8, scoped, tag = 'scoped memory for tpu_custom_call.1']
    #allocation5 [shape = 's32[2]{0}', space=sflag, size = 0x8, scoped, tag = 'scoped memory for tpu_custom_call.1']
    #allocation6 [shape = 'u8[589824]{0}', space=vmem, size = 0x90000, scoped, tag = 'input window, operand 4, single buffered']
    #allocation7 [shape = 's32[1]{0}', space=sflag, size = 0x4, scoped, tag = 'scoped memory for tpu_custom_call.1']
    #allocation8 [shape = 'u8[393216]{0}', space=vmem, size = 0x60000, scoped, tag = 'input window, operand 5, single buffered']
    #allocation9 [shape = 'u8[589824]{0}', space=vmem, size = 0x90000, scoped, tag = 'input window, operand 7, single buffered']
    #allocation10 [shape = 's32[1]{0}', space=sflag, size = 0x4, scoped, tag = 'scoped memory for tpu_custom_call.1']
    #allocation11 [shape = 'u8[393216]{0}', space=vmem, size = 0x60000, scoped, tag = 'input window, operand 8, single buffered']
    #allocation12 [shape = 'u8[8192]{0}', space=vmem, size = 0x2000, scoped, tag = 'input window, operand 9, single buffered']
    #allocation13 [shape = 's32[1]{0}', space=sflag, size = 0x4, scoped, tag = 'scoped memory for tpu_custom_call.1']
    #allocation14 [shape = 'u8[6144]{0}', space=vmem, size = 0x1800, scoped, tag = 'input window, operand 11, single buffered']
    #allocation15 [shape = 'u8[98304]{0}', space=vmem, size = 0x18000, scoped, tag = 'input window, operand 12, single buffered']
    #allocation16 [shape = 's32[1]{0}', space=sflag, size = 0x4, scoped, tag = 'scoped memory for tpu_custom_call.1']
    #allocation17 [shape = 'u8[8192]{0}', space=vmem, size = 0x2000, scoped, tag = 'output window, operand 0']
    %21 = vsyncpa [#allocation4], 0
    %s22 = scalar_lea.sflag [#allocation4], 1
    %23 = vsyncpa %s22, 0
    %24 = vsyncpa [#allocation7], 0
    %25 = vsyncpa [#allocation10], 0
    %26 = vsyncpa [#allocation13], 0
    %27 = vsyncpa [#allocation16], 0
    %28 = vsyncpa [#allocation5], 0
    %s29 = scalar_lea.sflag [#allocation5], 1
    %30 = vsyncpa %s29, 0
    loop: start=0, step=1, limit=4
    $region2: #{tpu_custom_call.1} parent=1 // loop_pre_header
      _
    $region3: #{tpu_custom_call.1} parent=1 // loop_header
      %s32 = sphi 0, %s36
      %p33 = scmp.ge.s32.totalorder %s32, 4
      %s39 = sphi 0, %s51
      %s40 = sphi 0, %s47
      %s41 = sphi 0, %s39
      %s42 = sphi 0, %s40
      %s43 = sphi 0, %s41
      %s44 = sphi 0, %s42
      %s54 = sphi 0, %s56
      %s57 = sphi 0, %s54
      %s58 = sphi 0, %s57
      %s74 = sphi 0, %s58
      %s80 = sphi 0, %s82
      %s83 = sphi 0, %s80
      %s84 = sphi 0, %s83
      %s100 = sphi 0, %s84
      %s106 = sphi 0, %s108
      %s109 = sphi 0, %s106
      %s110 = sphi 0, %s109
      %s126 = sphi 0, %s110
      %s132 = sphi 0, %s134
      %s135 = sphi 0, %s132
      %s136 = sphi 0, %s135
      %s152 = sphi 0, %s136
      %s156 = sphi 0, %s156
      %s158 = sphi 0, %s156
      %s159 = sphi 0, %s158
      %s173 = sphi 0, %s159
      %s177 = sphi 0, %s177
      %s179 = sphi 0, %s177
      %s180 = sphi 0, %s179
      %s194 = sphi 0, %s180
      %s198 = sphi 0, %s198
      %s200 = sphi 0, %s198
      %s201 = sphi 0, %s200
      %s215 = sphi 0, %s201
      %s219 = sphi 0, %s219
      %s221 = sphi 0, %s219
      %s222 = sphi 0, %s221
      %s236 = sphi 0, %s222
      %s240 = sphi 0, %s240
      %s242 = sphi 0, %s240
      %s243 = sphi 0, %s242
      %s257 = sphi 0, %s243
      %s261 = sphi 0, %s261
      %s263 = sphi 0, %s261
      %s264 = sphi 0, %s263
      %s278 = sphi 0, %s264
      %s282 = sphi 0, %s282
      %s284 = sphi 0, %s282
      %s285 = sphi 0, %s284
      %s299 = sphi 0, %s285
      %s303 = sphi 0, %s303
      %s305 = sphi 0, %s303
      %s306 = sphi 0, %s305
      %s320 = sphi 0, %s306
      %s324 = sphi 0, %s324
      %s326 = sphi 0, %s324
      %s327 = sphi 0, %s326
      %s341 = sphi 0, %s327
      %s345 = sphi 0, %s345
      %s347 = sphi 0, %s345
      %s348 = sphi 0, %s347
      %s362 = sphi 0, %s348
      %s370 = sphi 0, %s372
      %s373 = sphi 0, %s370
      %s374 = sphi 0, %s373
      %s390 = sphi 0, %s374
      %s396 = sphi 0, %s398
      %s399 = sphi 0, %s396
      %s400 = sphi 0, %s399
      %s416 = sphi 0, %s400
    $region4: #{tpu_custom_call.1} parent=1 // loop_header_branch
      %35 = sbr.rel (%p33) target = $region8
    $region5: #{tpu_custom_call.1} parent=1 // loop_body
      %s37 = ssub.s32 %s32, 1
      %s38 = ssub.s32 %s32, 2
      %s45 = sadd.s32 1, %s40
      %p46 = scmp.ge.s32.totalorder %s45, 1
      %s47 = scalar_select %p46, 0, %s45
      %s48 = sadd.s32 1, %s39
      %s49 = scalar_select %p46, %s48, %s39
      %p50 = scmp.ge.s32.totalorder %s49, 2
      %s51 = scalar_select %p50, 0, %s49
      %s52 = ssub.s32 %s39, %s51
      %p53 = scmp.eq.s32.totalorder %s52, 0
      %s55 = sadd.s32 %s54, 1
      %s56 = scalar_select %p53, %s54, %s55
      %p59 = pneg %p53
      %p60 = scmp.eq.s32.totalorder %s32, 1
      %p61 = por %p59, %p60
      %p62 = scmp.ne.s32.totalorder %s54, %s57
      %p63 = scmp.eq.s32.totalorder %s32, 0
      %p64 = por %p62, %p63
      %p65 = scmp.ne.s32.totalorder %s54, %s57
      %p66 = scmp.eq.s32.totalorder %s37, 1
      %p67 = por %p65, %p66
      %p68 = scmp.ne.s32.totalorder %s57, %s58
      %p69 = scmp.eq.s32.totalorder %s37, 0
      %p70 = por %p68, %p69
      %p71 = scmp.ne.s32.totalorder %s57, %s58
      %p72 = scmp.eq.s32.totalorder %s38, 1
      %p73 = por %p71, %p72
      %p75 = scmp.ne.s32.totalorder %s58, %s74
      %p76 = scmp.eq.s32.totalorder %s38, 0
      %p77 = por %p75, %p76
      %s78 = ssub.s32 %s39, %s51
      %p79 = scmp.eq.s32.totalorder %s78, 0
      %s81 = sadd.s32 %s80, 1
      %s82 = scalar_select %p79, %s80, %s81
      %p85 = pneg %p79
      %p86 = scmp.eq.s32.totalorder %s32, 1
      %p87 = por %p85, %p86
      %p88 = scmp.ne.s32.totalorder %s80, %s83
      %p89 = scmp.eq.s32.totalorder %s32, 0
      %p90 = por %p88, %p89
      %p91 = scmp.ne.s32.totalorder %s80, %s83
      %p92 = scmp.eq.s32.totalorder %s37, 1
      %p93 = por %p91, %p92
      %p94 = scmp.ne.s32.totalorder %s83, %s84
      %p95 = scmp.eq.s32.totalorder %s37, 0
      %p96 = por %p94, %p95
      %p97 = scmp.ne.s32.totalorder %s83, %s84
      %p98 = scmp.eq.s32.totalorder %s38, 1
      %p99 = por %p97, %p98
      %p101 = scmp.ne.s32.totalorder %s84, %s100
      %p102 = scmp.eq.s32.totalorder %s38, 0
      %p103 = por %p101, %p102
      %s104 = ssub.s32 %s39, %s51
      %p105 = scmp.eq.s32.totalorder %s104, 0
      %s107 = sadd.s32 %s106, 1
      %s108 = scalar_select %p105, %s106, %s107
      %p111 = pneg %p105
      %p112 = scmp.eq.s32.totalorder %s32, 1
      %p113 = por %p111, %p112
      %p114 = scmp.ne.s32.totalorder %s106, %s109
      %p115 = scmp.eq.s32.totalorder %s32, 0
      %p116 = por %p114, %p115
      %p117 = scmp.ne.s32.totalorder %s106, %s109
      %p118 = scmp.eq.s32.totalorder %s37, 1
      %p119 = por %p117, %p118
      %p120 = scmp.ne.s32.totalorder %s109, %s110
      %p121 = scmp.eq.s32.totalorder %s37, 0
      %p122 = por %p120, %p121
      %p123 = scmp.ne.s32.totalorder %s109, %s110
      %p124 = scmp.eq.s32.totalorder %s38, 1
      %p125 = por %p123, %p124
      %p127 = scmp.ne.s32.totalorder %s110, %s126
      %p128 = scmp.eq.s32.totalorder %s38, 0
      %p129 = por %p127, %p128
      %s130 = ssub.s32 %s39, %s51
      %p131 = scmp.eq.s32.totalorder %s130, 0
      %s133 = sadd.s32 %s132, 1
      %s134 = scalar_select %p131, %s132, %s133
      %p137 = pneg %p131
      %p138 = scmp.eq.s32.totalorder %s32, 1
      %p139 = por %p137, %p138
      %p140 = scmp.ne.s32.totalorder %s132, %s135
      %p141 = scmp.eq.s32.totalorder %s32, 0
      %p142 = por %p140, %p141
      %p143 = scmp.ne.s32.totalorder %s132, %s135
      %p144 = scmp.eq.s32.totalorder %s37, 1
      %p145 = por %p143, %p144
      %p146 = scmp.ne.s32.totalorder %s135, %s136
      %p147 = scmp.eq.s32.totalorder %s37, 0
      %p148 = por %p146, %p147
      %p149 = scmp.ne.s32.totalorder %s135, %s136
      %p150 = scmp.eq.s32.totalorder %s38, 1
      %p151 = por %p149, %p150
      %p153 = scmp.ne.s32.totalorder %s136, %s152
      %p154 = scmp.eq.s32.totalorder %s38, 0
      %p155 = por %p153, %p154
      %s157 = sadd.s32 %s156, 1
      %p160 = scmp.eq.s32.totalorder %s32, 1
      %p161 = scmp.ne.s32.totalorder %s156, %s158
      %p162 = scmp.eq.s32.totalorder %s32, 0
      %p163 = por %p161, %p162
      %p164 = scmp.ne.s32.totalorder %s156, %s158
      %p165 = scmp.eq.s32.totalorder %s37, 1
      %p166 = por %p164, %p165
      %p167 = scmp.ne.s32.totalorder %s158, %s159
      %p168 = scmp.eq.s32.totalorder %s37, 0
      %p169 = por %p167, %p168
      %p170 = scmp.ne.s32.totalorder %s158, %s159
      %p171 = scmp.eq.s32.totalorder %s38, 1
      %p172 = por %p170, %p171
      %p174 = scmp.ne.s32.totalorder %s159, %s173
      %p175 = scmp.eq.s32.totalorder %s38, 0
      %p176 = por %p174, %p175
      %s178 = sadd.s32 %s177, 1
      %p181 = scmp.eq.s32.totalorder %s32, 1
      %p182 = scmp.ne.s32.totalorder %s177, %s179
      %p183 = scmp.eq.s32.totalorder %s32, 0
      %p184 = por %p182, %p183
      %p185 = scmp.ne.s32.totalorder %s177, %s179
      %p186 = scmp.eq.s32.totalorder %s37, 1
      %p187 = por %p185, %p186
      %p188 = scmp.ne.s32.totalorder %s179, %s180
      %p189 = scmp.eq.s32.totalorder %s37, 0
      %p190 = por %p188, %p189
      %p191 = scmp.ne.s32.totalorder %s179, %s180
      %p192 = scmp.eq.s32.totalorder %s38, 1
      %p193 = por %p191, %p192
      %p195 = scmp.ne.s32.totalorder %s180, %s194
      %p196 = scmp.eq.s32.totalorder %s38, 0
      %p197 = por %p195, %p196
      %s199 = sadd.s32 %s198, 1
      %p202 = scmp.eq.s32.totalorder %s32, 1
      %p203 = scmp.ne.s32.totalorder %s198, %s200
      %p204 = scmp.eq.s32.totalorder %s32, 0
      %p205 = por %p203, %p204
      %p206 = scmp.ne.s32.totalorder %s198, %s200
      %p207 = scmp.eq.s32.totalorder %s37, 1
      %p208 = por %p206, %p207
      %p209 = scmp.ne.s32.totalorder %s200, %s201
      %p210 = scmp.eq.s32.totalorder %s37, 0
      %p211 = por %p209, %p210
      %p212 = scmp.ne.s32.totalorder %s200, %s201
      %p213 = scmp.eq.s32.totalorder %s38, 1
      %p214 = por %p212, %p213
      %p216 = scmp.ne.s32.totalorder %s201, %s215
      %p217 = scmp.eq.s32.totalorder %s38, 0
      %p218 = por %p216, %p217
      %s220 = sadd.s32 %s219, 1
      %p223 = scmp.eq.s32.totalorder %s32, 1
      %p224 = scmp.ne.s32.totalorder %s219, %s221
      %p225 = scmp.eq.s32.totalorder %s32, 0
      %p226 = por %p224, %p225
      %p227 = scmp.ne.s32.totalorder %s219, %s221
      %p228 = scmp.eq.s32.totalorder %s37, 1
      %p229 = por %p227, %p228
      %p230 = scmp.ne.s32.totalorder %s221, %s222
      %p231 = scmp.eq.s32.totalorder %s37, 0
      %p232 = por %p230, %p231
      %p233 = scmp.ne.s32.totalorder %s221, %s222
      %p234 = scmp.eq.s32.totalorder %s38, 1
      %p235 = por %p233, %p234
      %p237 = scmp.ne.s32.totalorder %s222, %s236
      %p238 = scmp.eq.s32.totalorder %s38, 0
      %p239 = por %p237, %p238
      %s241 = sadd.s32 %s240, 1
      %p244 = scmp.eq.s32.totalorder %s32, 1
      %p245 = scmp.ne.s32.totalorder %s240, %s242
      %p246 = scmp.eq.s32.totalorder %s32, 0
      %p247 = por %p245, %p246
      %p248 = scmp.ne.s32.totalorder %s240, %s242
      %p249 = scmp.eq.s32.totalorder %s37, 1
      %p250 = por %p248, %p249
      %p251 = scmp.ne.s32.totalorder %s242, %s243
      %p252 = scmp.eq.s32.totalorder %s37, 0
      %p253 = por %p251, %p252
      %p254 = scmp.ne.s32.totalorder %s242, %s243
      %p255 = scmp.eq.s32.totalorder %s38, 1
      %p256 = por %p254, %p255
      %p258 = scmp.ne.s32.totalorder %s243, %s257
      %p259 = scmp.eq.s32.totalorder %s38, 0
      %p260 = por %p258, %p259
      %s262 = sadd.s32 %s261, 1
      %p265 = scmp.eq.s32.totalorder %s32, 1
      %p266 = scmp.ne.s32.totalorder %s261, %s263
      %p267 = scmp.eq.s32.totalorder %s32, 0
      %p268 = por %p266, %p267
      %p269 = scmp.ne.s32.totalorder %s261, %s263
      %p270 = scmp.eq.s32.totalorder %s37, 1
      %p271 = por %p269, %p270
      %p272 = scmp.ne.s32.totalorder %s263, %s264
      %p273 = scmp.eq.s32.totalorder %s37, 0
      %p274 = por %p272, %p273
      %p275 = scmp.ne.s32.totalorder %s263, %s264
      %p276 = scmp.eq.s32.totalorder %s38, 1
      %p277 = por %p275, %p276
      %p279 = scmp.ne.s32.totalorder %s264, %s278
      %p280 = scmp.eq.s32.totalorder %s38, 0
      %p281 = por %p279, %p280
      %s283 = sadd.s32 %s282, 1
      %p286 = scmp.eq.s32.totalorder %s32, 1
      %p287 = scmp.ne.s32.totalorder %s282, %s284
      %p288 = scmp.eq.s32.totalorder %s32, 0
      %p289 = por %p287, %p288
      %p290 = scmp.ne.s32.totalorder %s282, %s284
      %p291 = scmp.eq.s32.totalorder %s37, 1
      %p292 = por %p290, %p291
      %p293 = scmp.ne.s32.totalorder %s284, %s285
      %p294 = scmp.eq.s32.totalorder %s37, 0
      %p295 = por %p293, %p294
      %p296 = scmp.ne.s32.totalorder %s284, %s285
      %p297 = scmp.eq.s32.totalorder %s38, 1
      %p298 = por %p296, %p297
      %p300 = scmp.ne.s32.totalorder %s285, %s299
      %p301 = scmp.eq.s32.totalorder %s38, 0
      %p302 = por %p300, %p301
      %s304 = sadd.s32 %s303, 1
      %p307 = scmp.eq.s32.totalorder %s32, 1
      %p308 = scmp.ne.s32.totalorder %s303, %s305
      %p309 = scmp.eq.s32.totalorder %s32, 0
      %p310 = por %p308, %p309
      %p311 = scmp.ne.s32.totalorder %s303, %s305
      %p312 = scmp.eq.s32.totalorder %s37, 1
      %p313 = por %p311, %p312
      %p314 = scmp.ne.s32.totalorder %s305, %s306
      %p315 = scmp.eq.s32.totalorder %s37, 0
      %p316 = por %p314, %p315
      %p317 = scmp.ne.s32.totalorder %s305, %s306
      %p318 = scmp.eq.s32.totalorder %s38, 1
      %p319 = por %p317, %p318
      %p321 = scmp.ne.s32.totalorder %s306, %s320
      %p322 = scmp.eq.s32.totalorder %s38, 0
      %p323 = por %p321, %p322
      %s325 = sadd.s32 %s324, 1
      %p328 = scmp.eq.s32.totalorder %s32, 1
      %p329 = scmp.ne.s32.totalorder %s324, %s326
      %p330 = scmp.eq.s32.totalorder %s32, 0
      %p331 = por %p329, %p330
      %p332 = scmp.ne.s32.totalorder %s324, %s326
      %p333 = scmp.eq.s32.totalorder %s37, 1
      %p334 = por %p332, %p333
      %p335 = scmp.ne.s32.totalorder %s326, %s327
      %p336 = scmp.eq.s32.totalorder %s37, 0
      %p337 = por %p335, %p336
      %p338 = scmp.ne.s32.totalorder %s326, %s327
      %p339 = scmp.eq.s32.totalorder %s38, 1
      %p340 = por %p338, %p339
      %p342 = scmp.ne.s32.totalorder %s327, %s341
      %p343 = scmp.eq.s32.totalorder %s38, 0
      %p344 = por %p342, %p343
      %s346 = sadd.s32 %s345, 1
      %p349 = scmp.eq.s32.totalorder %s32, 1
      %p350 = scmp.ne.s32.totalorder %s345, %s347
      %p351 = scmp.eq.s32.totalorder %s32, 0
      %p352 = por %p350, %p351
      %p353 = scmp.ne.s32.totalorder %s345, %s347
      %p354 = scmp.eq.s32.totalorder %s37, 1
      %p355 = por %p353, %p354
      %p356 = scmp.ne.s32.totalorder %s347, %s348
      %p357 = scmp.eq.s32.totalorder %s37, 0
      %p358 = por %p356, %p357
      %p359 = scmp.ne.s32.totalorder %s347, %s348
      %p360 = scmp.eq.s32.totalorder %s38, 1
      %p361 = por %p359, %p360
      %p363 = scmp.ne.s32.totalorder %s348, %s362
      %p364 = scmp.eq.s32.totalorder %s38, 0
      %p365 = por %p363, %p364
      %s366 = ssub.s32 %s39, %s51
      %s367 = ssub.s32 %s40, %s47
      %s368 = sor.u32 %s366, %s367
      %p369 = scmp.eq.s32.totalorder %s368, 0
      %s371 = sadd.s32 %s370, 1
      %s372 = scalar_select %p369, %s370, %s371
      %p375 = pneg %p369
      %p376 = scmp.eq.s32.totalorder %s32, 1
      %p377 = por %p375, %p376
      %p378 = scmp.ne.s32.totalorder %s370, %s373
      %p379 = scmp.eq.s32.totalorder %s32, 0
      %p380 = por %p378, %p379
      %p381 = scmp.ne.s32.totalorder %s370, %s373
      %p382 = scmp.eq.s32.totalorder %s37, 1
      %p383 = por %p381, %p382
      %p384 = scmp.ne.s32.totalorder %s373, %s374
      %p385 = scmp.eq.s32.totalorder %s37, 0
      %p386 = por %p384, %p385
      %p387 = scmp.ne.s32.totalorder %s373, %s374
      %p388 = scmp.eq.s32.totalorder %s38, 1
      %p389 = por %p387, %p388
      %p391 = scmp.ne.s32.totalorder %s374, %s390
      %p392 = scmp.eq.s32.totalorder %s38, 0
      %p393 = por %p391, %p392
      %s394 = ssub.s32 %s39, %s51
      %p395 = scmp.eq.s32.totalorder %s394, 0
      %s397 = sadd.s32 %s396, 1
      %s398 = scalar_select %p395, %s396, %s397
      %p401 = pneg %p395
      %p402 = scmp.eq.s32.totalorder %s32, 1
      %p403 = por %p401, %p402
      %p404 = scmp.ne.s32.totalorder %s396, %s399
      %p405 = scmp.eq.s32.totalorder %s32, 0
      %p406 = por %p404, %p405
      %p407 = scmp.ne.s32.totalorder %s396, %s399
      %p408 = scmp.eq.s32.totalorder %s37, 1
      %p409 = por %p407, %p408
      %p410 = scmp.ne.s32.totalorder %s399, %s400
      %p411 = scmp.eq.s32.totalorder %s37, 0
      %p412 = por %p410, %p411
      %p413 = scmp.ne.s32.totalorder %s399, %s400
      %p414 = scmp.eq.s32.totalorder %s38, 1
      %p415 = por %p413, %p414
      %p417 = scmp.ne.s32.totalorder %s400, %s416
      %p418 = scmp.eq.s32.totalorder %s38, 0
      %p419 = por %p417, %p418
      %p420 = scmp.le.s32.totalorder 1, %s32
      %p421 = scmp.lt.s32.totalorder %s32, 3
      %p422 = pnand %p420, %p421
      %p423 = pneg %p422
      // Predicated region
      $region9: #{tpu_custom_call.1} parent=5 // pred_check
        _
      $region10: #{tpu_custom_call.1} parent=5 // pred_check_branch
        %425 = sbr.rel (%p422) target = $region12
      $region11: #{tpu_custom_call.1} parent=5 // pred_region
        %s426 = ssub.s32 %s32, 1
        // Predicated region
        $region13: #{tpu_custom_call.1} parent=11 // pred_check
          %p427 = pneg %p169
        $region14: #{tpu_custom_call.1} parent=11 // pred_check_branch
          %429 = sbr.rel (%p427) target = $region16
        $region15: #{tpu_custom_call.1} parent=11 // pred_region
          %s431 = ssub.s32 18432, 18432
          %432 = vsyncadd [#allocation7], %s431
          %s433 = sshll.u32 [#allocation6], 4
          %s434 = int_to_ptr.vmem [resolvable:$true] %s433
          %439 = dma.hbm_to_vmem [thread:$0]  %s4, 18432, %s434, [#allocation7], 128, 128, 8
        $region16: #{tpu_custom_call.1} parent=11 // pred_fallthru
          _
        // Predicated region
        $region17: #{tpu_custom_call.1} parent=11 // pred_check
          %p440 = pneg %p190
        $region18: #{tpu_custom_call.1} parent=11 // pred_check_branch
          %442 = sbr.rel (%p440) target = $region20
        $region19: #{tpu_custom_call.1} parent=11 // pred_region
          %s444 = ssub.s32 12288, 12288
          %445 = vsyncadd [#allocation7], %s444
          %s446 = sshll.u32 [#allocation8], 4
          %s447 = int_to_ptr.vmem [resolvable:$true] %s446
          %452 = dma.hbm_to_vmem [thread:$0]  %s5, 12288, %s447, [#allocation7], 128, 128, 8
        $region20: #{tpu_custom_call.1} parent=11 // pred_fallthru
          _
        // Predicated region
        $region21: #{tpu_custom_call.1} parent=11 // pred_check
          %p453 = pneg %p211
        $region22: #{tpu_custom_call.1} parent=11 // pred_check_branch
          %455 = sbr.rel (%p453) target = $region24
        $region23: #{tpu_custom_call.1} parent=11 // pred_region
          _
        $region24: #{tpu_custom_call.1} parent=11 // pred_fallthru
          _
        // Predicated region
        $region25: #{tpu_custom_call.1} parent=11 // pred_check
          %p456 = pneg %p232
        $region26: #{tpu_custom_call.1} parent=11 // pred_check_branch
          %458 = sbr.rel (%p456) target = $region28
        $region27: #{tpu_custom_call.1} parent=11 // pred_region
          %s460 = ssub.s32 18432, 18432
          %461 = vsyncadd [#allocation10], %s460
          %s462 = sshll.u32 [#allocation9], 4
          %s463 = int_to_ptr.vmem [resolvable:$true] %s462
          %468 = dma.hbm_to_vmem [thread:$0]  %s7, 18432, %s463, [#allocation10], 128, 128, 8
        $region28: #{tpu_custom_call.1} parent=11 // pred_fallthru
          _
        // Predicated region
        $region29: #{tpu_custom_call.1} parent=11 // pred_check
          %p469 = pneg %p253
        $region30: #{tpu_custom_call.1} parent=11 // pred_check_branch
          %471 = sbr.rel (%p469) target = $region32
        $region31: #{tpu_custom_call.1} parent=11 // pred_region
          %s473 = ssub.s32 12288, 12288
          %474 = vsyncadd [#allocation10], %s473
          %s475 = sshll.u32 [#allocation11], 4
          %s476 = int_to_ptr.vmem [resolvable:$true] %s475
          %481 = dma.hbm_to_vmem [thread:$0]  %s8, 12288, %s476, [#allocation10], 128, 128, 8
        $region32: #{tpu_custom_call.1} parent=11 // pred_fallthru
          _
        // Predicated region
        $region33: #{tpu_custom_call.1} parent=11 // pred_check
          %p482 = pneg %p274
        $region34: #{tpu_custom_call.1} parent=11 // pred_check_branch
          %484 = sbr.rel (%p482) target = $region36
        $region35: #{tpu_custom_call.1} parent=11 // pred_region
          %s486 = ssub.s32 256, 256
          %487 = vsyncadd [#allocation13], %s486
          %s489 = sshll.u32 [#allocation12], 4
          %s490 = int_to_ptr.vmem [resolvable:$true] %s489
          %492 = dma.hbm_to_vmem [thread:$0]  %s9, 256, %s490, [#allocation13]
        $region36: #{tpu_custom_call.1} parent=11 // pred_fallthru
          _
        // Predicated region
        $region37: #{tpu_custom_call.1} parent=11 // pred_check
          %p493 = pneg %p295
        $region38: #{tpu_custom_call.1} parent=11 // pred_check_branch
          %495 = sbr.rel (%p493) target = $region40
        $region39: #{tpu_custom_call.1} parent=11 // pred_region
          _
        $region40: #{tpu_custom_call.1} parent=11 // pred_fallthru
          _
        // Predicated region
        $region41: #{tpu_custom_call.1} parent=11 // pred_check
          %p496 = pneg %p316
        $region42: #{tpu_custom_call.1} parent=11 // pred_check_branch
          %498 = sbr.rel (%p496) target = $region44
        $region43: #{tpu_custom_call.1} parent=11 // pred_region
          %s500 = ssub.s32 192, 192
          %501 = vsyncadd [#allocation13], %s500
          %s503 = sshll.u32 [#allocation14], 4
          %s504 = int_to_ptr.vmem [resolvable:$true] %s503
          %506 = dma.hbm_to_vmem [thread:$0]  %s11, 192, %s504, [#allocation13]
        $region44: #{tpu_custom_call.1} parent=11 // pred_fallthru
          _
        // Predicated region
        $region45: #{tpu_custom_call.1} parent=11 // pred_check
          %p507 = pneg %p337
        $region46: #{tpu_custom_call.1} parent=11 // pred_check_branch
          %509 = sbr.rel (%p507) target = $region48
        $region47: #{tpu_custom_call.1} parent=11 // pred_region
          %s511 = ssub.s32 3072, 3072
          %512 = vsyncadd [#allocation16], %s511
          %s513 = sshll.u32 [#allocation15], 4
          %s514 = int_to_ptr.vmem [resolvable:$true] %s513
          %519 = dma.hbm_to_vmem [thread:$0]  %s12, 3072, %s514, [#allocation16], 64, 64, 4
        $region48: #{tpu_custom_call.1} parent=11 // pred_fallthru
          _
        // Predicated region
        $region49: #{tpu_custom_call.1} parent=11 // pred_check
          %p520 = pneg %p358
        $region50: #{tpu_custom_call.1} parent=11 // pred_check_branch
          %522 = sbr.rel (%p520) target = $region52
        $region51: #{tpu_custom_call.1} parent=11 // pred_region
          _
        $region52: #{tpu_custom_call.1} parent=11 // pred_fallthru
          _
      $region12: #{tpu_custom_call.1} parent=5 // pred_fallthru
        _
      %p523 = scmp.lt.s32.totalorder %s32, 2
      // Predicated region
      $region53: #{tpu_custom_call.1} parent=5 // pred_check
        %p524 = pneg %p523
      $region54: #{tpu_custom_call.1} parent=5 // pred_check_branch
        %526 = sbr.rel (%p524) target = $region56
      $region55: #{tpu_custom_call.1} parent=5 // pred_region
        // Predicated region
        $region57: #{tpu_custom_call.1} parent=55 // pred_check
          %p527 = pneg %p64
        $region58: #{tpu_custom_call.1} parent=55 // pred_check_branch
          %529 = sbr.rel (%p527) target = $region60
        $region59: #{tpu_custom_call.1} parent=55 // pred_region
          %p530 = scmp.lt.s32.totalorder %s39, 1
          %s531 = scalar_select %p530, %s39, 1
          %s532 = smul.addr %s531, 3
          %s533 = smul.addr %s532, 4
          %s534 = scalar_lea.vmem %s0, %s533
        $region60: #{tpu_custom_call.1} parent=55 // pred_fallthru
          _
        // Predicated region
        $region61: #{tpu_custom_call.1} parent=55 // pred_check
          %p535 = pneg %p90
        $region62: #{tpu_custom_call.1} parent=55 // pred_check_branch
          %537 = sbr.rel (%p535) target = $region64
        $region63: #{tpu_custom_call.1} parent=55 // pred_region
          %p538 = scmp.lt.s32.totalorder %s39, 1
          %s539 = scalar_select %p538, %s39, 1
          %s540 = smul.addr %s539, 8
          %s541 = scalar_lea.vmem %s1, %s540
        $region64: #{tpu_custom_call.1} parent=55 // pred_fallthru
          _
        // Predicated region
        $region65: #{tpu_custom_call.1} parent=55 // pred_check
          %p542 = pneg %p116
        $region66: #{tpu_custom_call.1} parent=55 // pred_check_branch
          %544 = sbr.rel (%p542) target = $region68
        $region67: #{tpu_custom_call.1} parent=55 // pred_region
          %p545 = scmp.lt.s32.totalorder %s39, 1
          %s546 = scalar_select %p545, %s39, 1
          %s547 = smul.addr %s546, 8
          %s548 = scalar_lea.vmem %s2, %s547
        $region68: #{tpu_custom_call.1} parent=55 // pred_fallthru
          _
        // Predicated region
        $region69: #{tpu_custom_call.1} parent=55 // pred_check
          %p549 = pneg %p142
        $region70: #{tpu_custom_call.1} parent=55 // pred_check_branch
          %551 = sbr.rel (%p549) target = $region72
        $region71: #{tpu_custom_call.1} parent=55 // pred_region
          %s552 = sand.u32 %s132, 1
          %s553 = scalar_lea.sflag [#allocation4], %s552
          %s554 = sand.u32 %s132, 1
          %s555 = scalar_lea.vmem [#allocation3], %s554
          %s557 = ssub.s32 16, 16
          %558 = vsyncadd %s553, %s557
          %s559 = smul.addr %s39, 16
          %s560 = scalar_lea.hbm %s3, %s559
          %s562 = sshll.u32 %s555, 4
          %s563 = int_to_ptr.vmem [resolvable:$true] %s562
          %565 = dma.hbm_to_vmem [thread:$0]  %s560, 16, %s563, %s553
        $region72: #{tpu_custom_call.1} parent=55 // pred_fallthru
          _
      $region56: #{tpu_custom_call.1} parent=5 // pred_fallthru
        _
      %p566 = scmp.le.s32.totalorder 1, %s32
      %p567 = scmp.lt.s32.totalorder %s32, 3
      %p568 = pnand %p566, %p567
      %p569 = pneg %p568
      // Predicated region
      $region73: #{tpu_custom_call.1} parent=5 // pred_check
        _
      $region74: #{tpu_custom_call.1} parent=5 // pred_check_branch
        %571 = sbr.rel (%p568) target = $region76
      $region75: #{tpu_custom_call.1} parent=5 // pred_region
        %s572 = ssub.s32 %s32, 1
        %s573 = sand.u32 %s135, 1
        %s574 = scalar_lea.sflag [#allocation4], %s573
        %s575 = sand.u32 %s135, 1
        %s576 = scalar_lea.vmem [#allocation3], %s575
        // Predicated region
        $region77: #{tpu_custom_call.1} parent=75 // pred_check
          %p577 = pneg %p148
        $region78: #{tpu_custom_call.1} parent=75 // pred_check_branch
          %579 = sbr.rel (%p577) target = $region80
        $region79: #{tpu_custom_call.1} parent=75 // pred_region
          %580 = dma.done %s574, 16
        $region80: #{tpu_custom_call.1} parent=75 // pred_fallthru
          _
        // Predicated region
        $region81: #{tpu_custom_call.1} parent=75 // pred_check
          %p581 = pneg %p169
        $region82: #{tpu_custom_call.1} parent=75 // pred_check_branch
          %583 = sbr.rel (%p581) target = $region84
        $region83: #{tpu_custom_call.1} parent=75 // pred_region
          %584 = dma.done [#allocation7], 18432
        $region84: #{tpu_custom_call.1} parent=75 // pred_fallthru
          _
        // Predicated region
        $region85: #{tpu_custom_call.1} parent=75 // pred_check
          %p585 = pneg %p190
        $region86: #{tpu_custom_call.1} parent=75 // pred_check_branch
          %587 = sbr.rel (%p585) target = $region88
        $region87: #{tpu_custom_call.1} parent=75 // pred_region
          %588 = dma.done [#allocation7], 12288
        $region88: #{tpu_custom_call.1} parent=75 // pred_fallthru
          _
        // Predicated region
        $region89: #{tpu_custom_call.1} parent=75 // pred_check
          %p589 = pneg %p232
        $region90: #{tpu_custom_call.1} parent=75 // pred_check_branch
          %591 = sbr.rel (%p589) target = $region92
        $region91: #{tpu_custom_call.1} parent=75 // pred_region
          %592 = dma.done [#allocation10], 18432
        $region92: #{tpu_custom_call.1} parent=75 // pred_fallthru
          _
        // Predicated region
        $region93: #{tpu_custom_call.1} parent=75 // pred_check
          %p593 = pneg %p253
        $region94: #{tpu_custom_call.1} parent=75 // pred_check_branch
          %595 = sbr.rel (%p593) target = $region96
        $region95: #{tpu_custom_call.1} parent=75 // pred_region
          %596 = dma.done [#allocation10], 12288
        $region96: #{tpu_custom_call.1} parent=75 // pred_fallthru
          _
        // Predicated region
        $region97: #{tpu_custom_call.1} parent=75 // pred_check
          %p597 = pneg %p274
        $region98: #{tpu_custom_call.1} parent=75 // pred_check_branch
          %599 = sbr.rel (%p597) target = $region100
        $region99: #{tpu_custom_call.1} parent=75 // pred_region
          %600 = dma.done [#allocation13], 256
        $region100: #{tpu_custom_call.1} parent=75 // pred_fallthru
          _
        // Predicated region
        $region101: #{tpu_custom_call.1} parent=75 // pred_check
          %p601 = pneg %p316
        $region102: #{tpu_custom_call.1} parent=75 // pred_check_branch
          %603 = sbr.rel (%p601) target = $region104
        $region103: #{tpu_custom_call.1} parent=75 // pred_region
          %604 = dma.done [#allocation13], 192
        $region104: #{tpu_custom_call.1} parent=75 // pred_fallthru
          _
        // Predicated region
        $region105: #{tpu_custom_call.1} parent=75 // pred_check
          %p605 = pneg %p337
        $region106: #{tpu_custom_call.1} parent=75 // pred_check_branch
          %607 = sbr.rel (%p605) target = $region108
        $region107: #{tpu_custom_call.1} parent=75 // pred_region
          %608 = dma.done [#allocation16], 3072
        $region108: #{tpu_custom_call.1} parent=75 // pred_fallthru
          _
        %p609 = scmp.lt.s32.totalorder %s41, 1
        %s610 = scalar_select %p609, %s41, 1
        %s611 = smul.addr %s610, 3
        %s612 = smul.addr %s611, 4
        %s613 = scalar_lea.vmem %s0, %s612
        %p614 = pneg %p70
        %p615 = pneg %p67
        %p616 = scmp.lt.s32.totalorder %s41, 1
        %s617 = scalar_select %p616, %s41, 1
        %s618 = smul.addr %s617, 8
        %s619 = scalar_lea.vmem %s1, %s618
        %p620 = pneg %p96
        %p621 = pneg %p93
        %p622 = scmp.lt.s32.totalorder %s41, 1
        %s623 = scalar_select %p622, %s41, 1
        %s624 = smul.addr %s623, 8
        %s625 = scalar_lea.vmem %s2, %s624
        %p626 = pneg %p122
        %p627 = pneg %p119
        %s628 = sand.u32 %s135, 1
        %s629 = scalar_lea.sflag [#allocation4], %s628
        %s630 = sand.u32 %s135, 1
        %s631 = scalar_lea.vmem [#allocation3], %s630
        %p632 = pneg %p148
        %p633 = pneg %p145
        %p634 = pneg %p169
        %p635 = pneg %p166
        %p636 = pneg %p190
        %p637 = pneg %p187
        %p638 = pneg %p211
        %p639 = pneg %p208
        %p640 = pneg %p232
        %p641 = pneg %p229
        %p642 = pneg %p253
        %p643 = pneg %p250
        %p644 = pneg %p274
        %p645 = pneg %p271
        %p646 = pneg %p295
        %p647 = pneg %p292
        %p648 = pneg %p316
        %p649 = pneg %p313
        %p650 = pneg %p337
        %p651 = pneg %p334
        %p652 = pneg %p358
        %p653 = pneg %p355
        %p654 = pneg %p386
        %p655 = pneg %p383
        %s656 = sand.u32 %s373, 1
        %s657 = scalar_lea.sflag [#allocation5], %s656
        %s658 = sand.u32 %s373, 1
        %s659 = smul.addr %s658, 8
        %s660 = scalar_lea.vmem [#allocation17], %s659
        %p661 = pneg %p412
        %p662 = pneg %p409
        %p663 = scmp.lt.s32.totalorder %s41, 1
        %s664 = scalar_select %p663, %s41, 1
        %s665 = smul.addr %s664, 8
        %s666 = scalar_lea.vmem %s15, %s665
        %p667 = scmp.lt.s32.totalorder %s41, 1
        %s668 = scalar_select %p667, %s41, 1
        %s669 = smul.addr %s668, 3
        %s670 = smul.addr %s669, 4
        %s671 = scalar_lea.vmem %s0, %s670
        %p672 = scmp.lt.s32.totalorder %s41, 1
        %s673 = scalar_select %p672, %s41, 1
        %s674 = smul.addr %s673, 8
        %s675 = scalar_lea.vmem %s1, %s674
        %p676 = scmp.lt.s32.totalorder %s41, 1
        %s677 = scalar_select %p676, %s41, 1
        %s678 = smul.addr %s677, 8
        %s679 = scalar_lea.vmem %s2, %s678
        %s680 = smul.u32 2, %s42
        %p681 = scmp.lt.s32.totalorder %s41, 1
        %s682 = scalar_select %p681, %s41, 1
        %s683 = smul.addr %s682, 8
        %s684 = scalar_lea.vmem %s15, %s683
        %p686 = scmp.eq.s32.totalorder %s42, 0
        // Predicated region
        $region109: #{tpu_custom_call.1} parent=75 // pred_check
          %p687 = pneg %p686
        $region110: #{tpu_custom_call.1} parent=75 // pred_check_branch
          %689 = sbr.rel (%p687) target = $region112
        $region111: #{tpu_custom_call.1} parent=75 // pred_region
          %v690 = vld [vmem:[%s671] sm:$0xff]
          %v691 = vld [vmem:[%s671 + $0x8] sm:$0xf]
          %v692 = vunpack.c.l.bf16 %v690
          %v693 = vunpack.c.h.bf16 %v690
          %v694 = vunpack.c.l.bf16 %v691
          %v695 = vld [vmem:[%s675] sm:$0xff]
          %v696 = vlaneseq
          %v697 = vshrl.u32 %v696, 7
          %vm698 = vcmp.ne.s32.totalorder %v697, 0
          %v699 = vsel %vm698, 1, 0
          %v700 = vcvt.s32.f32 %v699
          %vm701 = vcmp.ne.s32.totalorder %v697, 7
          %v702 = vsel %vm701, 1, 0
          %v703 = vcvt.s32.f32 %v702
          %v704 = vld [vmem:[%s6] sm:$0xff]
          %v705 = vld [vmem:[%s6 + $0x8] sm:$0xff]
          %707 = vset.pattern.permute.xlu0 0
          %708 = vperm.xlu0 %707, %v695
          %v709 = vpop.permute.xlu0 %708
          %v711 = vmul.f32 %v692, %v709
          %v712 = vmul.f32 %v693, %v709
          %v713 = vmul.f32 %v694, %v709
          %v714 = vrot.slane %v711, 7
          %v715 = vrot.slane %v712, 7
          %v716 = vrot.slane %v713, 7
          %v717 = vmul.f32 %v714, %v700
          %v718 = vmul.f32 %v715, %v700
          %v719 = vmul.f32 %v716, %v700
          %v720 = vpack.c.bf16 %v717, %v717
          %v721 = vpack.c.bf16 %v718, %v718
          %v722 = vpack.c.bf16 %v719, %v719
          %v723 = vld [vmem:[#allocation6] sm:$0xff]
          %v724 = vld [vmem:[#allocation6 + $0x8] sm:$0xff]
          %v725 = vld [vmem:[#allocation6 + $0x10] sm:$0xff]
          %v726 = vld [vmem:[#allocation6 + $0x18] sm:$0xff]
          %v727 = vld [vmem:[#allocation6 + $0x20] sm:$0xff]
          %v728 = vld [vmem:[#allocation6 + $0x28] sm:$0xff]
          %v729 = vld [vmem:[#allocation6 + $0x30] sm:$0xff]
          %v730 = vld [vmem:[#allocation6 + $0x38] sm:$0xff]
          %v731 = vld [vmem:[#allocation6 + $0x40] sm:$0xff]
          %v732 = vld [vmem:[#allocation6 + $0x48] sm:$0xff]
          %v733 = vld [vmem:[#allocation6 + $0x50] sm:$0xff]
          %v734 = vld [vmem:[#allocation6 + $0x58] sm:$0xff]
          %v735 = vld [vmem:[#allocation6 + $0x60] sm:$0xff]
          %v736 = vld [vmem:[#allocation6 + $0x68] sm:$0xff]
          %v737 = vld [vmem:[#allocation6 + $0x70] sm:$0xff]
          %v738 = vld [vmem:[#allocation6 + $0x78] sm:$0xff]
          %v739 = vld [vmem:[#allocation6 + $0x80] sm:$0xff]
          %v740 = vld [vmem:[#allocation6 + $0x88] sm:$0xff]
          %v741 = vld [vmem:[#allocation6 + $0x90] sm:$0xff]
          %v742 = vld [vmem:[#allocation6 + $0x98] sm:$0xff]
          %v743 = vld [vmem:[#allocation6 + $0xa0] sm:$0xff]
          %v744 = vld [vmem:[#allocation6 + $0xa8] sm:$0xff]
          %v745 = vld [vmem:[#allocation6 + $0xb0] sm:$0xff]
          %v746 = vld [vmem:[#allocation6 + $0xb8] sm:$0xff]
          %v747 = vld [vmem:[#allocation6 + $0xc0] sm:$0xff]
          %v748 = vld [vmem:[#allocation6 + $0xc8] sm:$0xff]
          %v749 = vld [vmem:[#allocation6 + $0xd0] sm:$0xff]
          %v750 = vld [vmem:[#allocation6 + $0xd8] sm:$0xff]
          %v751 = vld [vmem:[#allocation6 + $0xe0] sm:$0xff]
          %v752 = vld [vmem:[#allocation6 + $0xe8] sm:$0xff]
          %v753 = vld [vmem:[#allocation6 + $0xf0] sm:$0xff]
          %v754 = vld [vmem:[#allocation6 + $0xf8] sm:$0xff]
          %v755 = vld [vmem:[#allocation6 + $0x100] sm:$0xff]
          %v756 = vld [vmem:[#allocation6 + $0x108] sm:$0xff]
          %v757 = vld [vmem:[#allocation6 + $0x110] sm:$0xff]
          %v758 = vld [vmem:[#allocation6 + $0x118] sm:$0xff]
          %v759 = vld [vmem:[#allocation6 + $0x120] sm:$0xff]
          %v760 = vld [vmem:[#allocation6 + $0x128] sm:$0xff]
          %v761 = vld [vmem:[#allocation6 + $0x130] sm:$0xff]
          %v762 = vld [vmem:[#allocation6 + $0x138] sm:$0xff]
          %v763 = vld [vmem:[#allocation6 + $0x140] sm:$0xff]
          %v764 = vld [vmem:[#allocation6 + $0x148] sm:$0xff]
          %v765 = vld [vmem:[#allocation6 + $0x150] sm:$0xff]
          %v766 = vld [vmem:[#allocation6 + $0x158] sm:$0xff]
          %v767 = vld [vmem:[#allocation6 + $0x160] sm:$0xff]
          %v768 = vld [vmem:[#allocation6 + $0x168] sm:$0xff]
          %v769 = vld [vmem:[#allocation6 + $0x170] sm:$0xff]
          %v770 = vld [vmem:[#allocation6 + $0x178] sm:$0xff]
          %v771 = vpack.c.bf16 %v711, %v711
          %v772 = vpack.c.bf16 %v712, %v712
          %v773 = vpack.c.bf16 %v713, %v713
          %s774 = scalar_lea.vmem [#allocation6], 384
          %v775 = vld [vmem:[%s774] sm:$0xff]
          %v776 = vld [vmem:[%s774 + $0x8] sm:$0xff]
          %v777 = vld [vmem:[%s774 + $0x10] sm:$0xff]
          %v778 = vld [vmem:[%s774 + $0x18] sm:$0xff]
          %v779 = vld [vmem:[%s774 + $0x20] sm:$0xff]
          %v780 = vld [vmem:[%s774 + $0x28] sm:$0xff]
          %v781 = vld [vmem:[%s774 + $0x30] sm:$0xff]
          %v782 = vld [vmem:[%s774 + $0x38] sm:$0xff]
          %v783 = vld [vmem:[%s774 + $0x40] sm:$0xff]
          %v784 = vld [vmem:[%s774 + $0x48] sm:$0xff]
          %v785 = vld [vmem:[%s774 + $0x50] sm:$0xff]
          %v786 = vld [vmem:[%s774 + $0x58] sm:$0xff]
          %v787 = vld [vmem:[%s774 + $0x60] sm:$0xff]
          %v788 = vld [vmem:[%s774 + $0x68] sm:$0xff]
          %v789 = vld [vmem:[%s774 + $0x70] sm:$0xff]
          %v790 = vld [vmem:[%s774 + $0x78] sm:$0xff]
          %v791 = vld [vmem:[%s774 + $0x80] sm:$0xff]
          %v792 = vld [vmem:[%s774 + $0x88] sm:$0xff]
          %v793 = vld [vmem:[%s774 + $0x90] sm:$0xff]
          %v794 = vld [vmem:[%s774 + $0x98] sm:$0xff]
          %v795 = vld [vmem:[%s774 + $0xa0] sm:$0xff]
          %v796 = vld [vmem:[%s774 + $0xa8] sm:$0xff]
          %v797 = vld [vmem:[%s774 + $0xb0] sm:$0xff]
          %v798 = vld [vmem:[%s774 + $0xb8] sm:$0xff]
          %v799 = vld [vmem:[%s774 + $0xc0] sm:$0xff]
          %v800 = vld [vmem:[%s774 + $0xc8] sm:$0xff]
          %v801 = vld [vmem:[%s774 + $0xd0] sm:$0xff]
          %v802 = vld [vmem:[%s774 + $0xd8] sm:$0xff]
          %v803 = vld [vmem:[%s774 + $0xe0] sm:$0xff]
          %v804 = vld [vmem:[%s774 + $0xe8] sm:$0xff]
          %v805 = vld [vmem:[%s774 + $0xf0] sm:$0xff]
          %v806 = vld [vmem:[%s774 + $0xf8] sm:$0xff]
          %v807 = vld [vmem:[%s774 + $0x100] sm:$0xff]
          %v808 = vld [vmem:[%s774 + $0x108] sm:$0xff]
          %v809 = vld [vmem:[%s774 + $0x110] sm:$0xff]
          %v810 = vld [vmem:[%s774 + $0x118] sm:$0xff]
          %v811 = vld [vmem:[%s774 + $0x120] sm:$0xff]
          %v812 = vld [vmem:[%s774 + $0x128] sm:$0xff]
          %v813 = vld [vmem:[%s774 + $0x130] sm:$0xff]
          %v814 = vld [vmem:[%s774 + $0x138] sm:$0xff]
          %v815 = vld [vmem:[%s774 + $0x140] sm:$0xff]
          %v816 = vld [vmem:[%s774 + $0x148] sm:$0xff]
          %v817 = vld [vmem:[%s774 + $0x150] sm:$0xff]
          %v818 = vld [vmem:[%s774 + $0x158] sm:$0xff]
          %v819 = vld [vmem:[%s774 + $0x160] sm:$0xff]
          %v820 = vld [vmem:[%s774 + $0x168] sm:$0xff]
          %v821 = vld [vmem:[%s774 + $0x170] sm:$0xff]
          %v822 = vld [vmem:[%s774 + $0x178] sm:$0xff]
          %v871 = vunpack.c.l.b16 %v775
          %v872 = vunpack.c.h.b16 %v775
          %v873 = vunpack.c.l.b16 %v776
          %v874 = vunpack.c.h.b16 %v776
          %v875 = vunpack.c.l.b16 %v777
          %v876 = vunpack.c.h.b16 %v777
          %v877 = vunpack.c.l.b16 %v778
          %v878 = vunpack.c.h.b16 %v778
          %v879 = vunpack.c.l.b16 %v779
          %v880 = vunpack.c.h.b16 %v779
          %v881 = vunpack.c.l.b16 %v780
          %v882 = vunpack.c.h.b16 %v780
          %v883 = vunpack.c.l.b16 %v781
          %v884 = vunpack.c.h.b16 %v781
          %v885 = vunpack.c.l.b16 %v782
          %v886 = vunpack.c.h.b16 %v782
          %v887 = vunpack.c.l.b16 %v783
          %v888 = vunpack.c.h.b16 %v783
          %v889 = vunpack.c.l.b16 %v784
          %v890 = vunpack.c.h.b16 %v784
          %v891 = vunpack.c.l.b16 %v785
          %v892 = vunpack.c.h.b16 %v785
          %v893 = vunpack.c.l.b16 %v786
          %v894 = vunpack.c.h.b16 %v786
          %v895 = vunpack.c.l.b16 %v787
          %v896 = vunpack.c.h.b16 %v787
          %v897 = vunpack.c.l.b16 %v788
          %v898 = vunpack.c.h.b16 %v788
          %v899 = vunpack.c.l.b16 %v789
          %v900 = vunpack.c.h.b16 %v789
          %v901 = vunpack.c.l.b16 %v790
          %v902 = vunpack.c.h.b16 %v790
          %v903 = vunpack.c.l.b16 %v791
          %v904 = vunpack.c.h.b16 %v791
          %v905 = vunpack.c.l.b16 %v792
          %v906 = vunpack.c.h.b16 %v792
          %v907 = vunpack.c.l.b16 %v793
          %v908 = vunpack.c.h.b16 %v793
          %v909 = vunpack.c.l.b16 %v794
          %v910 = vunpack.c.h.b16 %v794
          %v911 = vunpack.c.l.b16 %v795
          %v912 = vunpack.c.h.b16 %v795
          %v913 = vunpack.c.l.b16 %v796
          %v914 = vunpack.c.h.b16 %v796
          %v915 = vunpack.c.l.b16 %v797
          %v916 = vunpack.c.h.b16 %v797
          %v917 = vunpack.c.l.b16 %v798
          %v918 = vunpack.c.h.b16 %v798
          %v919 = vunpack.c.l.b16 %v799
          %v920 = vunpack.c.h.b16 %v799
          %v921 = vunpack.c.l.b16 %v800
          %v922 = vunpack.c.h.b16 %v800
          %v923 = vunpack.c.l.b16 %v801
          %v924 = vunpack.c.h.b16 %v801
          %v925 = vunpack.c.l.b16 %v802
          %v926 = vunpack.c.h.b16 %v802
          %v927 = vunpack.c.l.b16 %v803
          %v928 = vunpack.c.h.b16 %v803
          %v929 = vunpack.c.l.b16 %v804
          %v930 = vunpack.c.h.b16 %v804
          %v931 = vunpack.c.l.b16 %v805
          %v932 = vunpack.c.h.b16 %v805
          %v933 = vunpack.c.l.b16 %v806
          %v934 = vunpack.c.h.b16 %v806
          %v935 = vunpack.c.l.b16 %v807
          %v936 = vunpack.c.h.b16 %v807
          %v937 = vunpack.c.l.b16 %v808
          %v938 = vunpack.c.h.b16 %v808
          %v939 = vunpack.c.l.b16 %v809
          %v940 = vunpack.c.h.b16 %v809
          %v941 = vunpack.c.l.b16 %v810
          %v942 = vunpack.c.h.b16 %v810
          %v943 = vunpack.c.l.b16 %v811
          %v944 = vunpack.c.h.b16 %v811
          %v945 = vunpack.c.l.b16 %v812
          %v946 = vunpack.c.h.b16 %v812
          %v947 = vunpack.c.l.b16 %v813
          %v948 = vunpack.c.h.b16 %v813
          %v949 = vunpack.c.l.b16 %v814
          %v950 = vunpack.c.h.b16 %v814
          %v951 = vunpack.c.l.b16 %v815
          %v952 = vunpack.c.h.b16 %v815
          %v953 = vunpack.c.l.b16 %v816
          %v954 = vunpack.c.h.b16 %v816
          %v955 = vunpack.c.l.b16 %v817
          %v956 = vunpack.c.h.b16 %v817
          %v957 = vunpack.c.l.b16 %v818
          %v958 = vunpack.c.h.b16 %v818
          %v959 = vunpack.c.l.b16 %v819
          %v960 = vunpack.c.h.b16 %v819
          %v961 = vunpack.c.l.b16 %v820
          %v962 = vunpack.c.h.b16 %v820
          %v963 = vunpack.c.l.b16 %v821
          %v964 = vunpack.c.h.b16 %v821
          %v965 = vunpack.c.l.b16 %v822
          %v966 = vunpack.c.h.b16 %v822
          %v967 = vpack.c.b16 %v873, %v871
          %v968 = vpack.c.b16 %v874, %v872
          %v969 = vpack.c.b16 %v877, %v875
          %v970 = vpack.c.b16 %v878, %v876
          %v971 = vpack.c.b16 %v881, %v879
          %v972 = vpack.c.b16 %v882, %v880
          %v973 = vpack.c.b16 %v885, %v883
          %v974 = vpack.c.b16 %v886, %v884
          %v975 = vpack.c.b16 %v889, %v887
          %v976 = vpack.c.b16 %v890, %v888
          %v977 = vpack.c.b16 %v893, %v891
          %v978 = vpack.c.b16 %v894, %v892
          %v979 = vpack.c.b16 %v897, %v895
          %v980 = vpack.c.b16 %v898, %v896
          %v981 = vpack.c.b16 %v901, %v899
          %v982 = vpack.c.b16 %v902, %v900
          %v983 = vpack.c.b16 %v905, %v903
          %v984 = vpack.c.b16 %v906, %v904
          %v985 = vpack.c.b16 %v909, %v907
          %v986 = vpack.c.b16 %v910, %v908
          %v987 = vpack.c.b16 %v913, %v911
          %v988 = vpack.c.b16 %v914, %v912
          %v989 = vpack.c.b16 %v917, %v915
          %v990 = vpack.c.b16 %v918, %v916
          %v991 = vpack.c.b16 %v921, %v919
          %v992 = vpack.c.b16 %v922, %v920
          %v993 = vpack.c.b16 %v925, %v923
          %v994 = vpack.c.b16 %v926, %v924
          %v995 = vpack.c.b16 %v929, %v927
          %v996 = vpack.c.b16 %v930, %v928
          %v997 = vpack.c.b16 %v933, %v931
          %v998 = vpack.c.b16 %v934, %v932
          %v999 = vpack.c.b16 %v937, %v935
          %v1000 = vpack.c.b16 %v938, %v936
          %v1001 = vpack.c.b16 %v941, %v939
          %v1002 = vpack.c.b16 %v942, %v940
          %v1003 = vpack.c.b16 %v945, %v943
          %v1004 = vpack.c.b16 %v946, %v944
          %v1005 = vpack.c.b16 %v949, %v947
          %v1006 = vpack.c.b16 %v950, %v948
          %v1007 = vpack.c.b16 %v953, %v951
          %v1008 = vpack.c.b16 %v954, %v952
          %v1009 = vpack.c.b16 %v957, %v955
          %v1010 = vpack.c.b16 %v958, %v956
          %v1011 = vpack.c.b16 %v961, %v959
          %v1012 = vpack.c.b16 %v962, %v960
          %v1013 = vpack.c.b16 %v965, %v963
          %v1014 = vpack.c.b16 %v966, %v964
          %1063 = vmatprep.subr.bf16.mxu0 %v982
          %1064 = vmatpush1.bf16.msra.mxu0 %v981
          %1065 = vmatprep.subr.bf16.mxu0 %v980
          %1066 = vmatpush1.bf16.msra.mxu0 %v979
          %1067 = vmatprep.subr.bf16.mxu0 %v978
          %1068 = vmatpush1.bf16.msra.mxu0 %v977
          %1069 = vmatprep.subr.bf16.mxu0 %v976
          %1070 = vmatpush1.bf16.msra.mxu0 %v975
          %1071 = vmatprep.subr.bf16.mxu0 %v974
          %1072 = vmatpush1.bf16.msra.mxu0 %v973
          %1073 = vmatprep.subr.bf16.mxu0 %v972
          %1074 = vmatpush1.bf16.msra.mxu0 %v971
          %1075 = vmatprep.subr.bf16.mxu0 %v970
          %1076 = vmatpush1.bf16.msra.mxu0 %v969
          %1077 = vmatprep.subr.bf16.mxu0 %v968
          %1078 = vmatpush1.bf16.msra.mxu0 %v967
          %1079 = vmatprep.subr.bf16.mxu0 %v998
          %1080 = vmatpush2.bf16.msra.mxu0 %v997
          %1081 = vmatprep.subr.bf16.mxu0 %v996
          %1082 = vmatpush2.bf16.msra.mxu0 %v995
          %1083 = vmatprep.subr.bf16.mxu0 %v994
          %1084 = vmatpush2.bf16.msra.mxu0 %v993
          %1085 = vmatprep.subr.bf16.mxu0 %v992
          %1086 = vmatpush2.bf16.msra.mxu0 %v991
          %1087 = vmatprep.subr.bf16.mxu0 %v990
          %1088 = vmatpush2.bf16.msra.mxu0 %v989
          %1089 = vmatprep.subr.bf16.mxu0 %v988
          %1090 = vmatpush2.bf16.msra.mxu0 %v987
          %1091 = vmatprep.subr.bf16.mxu0 %v986
          %1092 = vmatpush2.bf16.msra.mxu0 %v985
          %1093 = vmatprep.subr.bf16.mxu0 %v984
          %1094 = vmatpush2.bf16.msra.mxu0 %v983
          %1095 = vmatprep.mubr.bf16.mxu0 %v772
          %1096 = vmatmul.mubr.bf16.gmra.mxu0 %v771
          %v1097 = vpop.f32.mrf.mxu0
          %v1098 = vadd.f32 0.0, %v1097
          %v1099 = vpop.f32.mrf.mxu0
          %v1100 = vadd.f32 0.0, %v1099
          %v1101 = vpop.f32.mrf.mxu0
          %v1102 = vpop.f32.mrf.mxu0
          %1103 = vdwg.mxu0
          %1104 = vmatprep.subr.bf16.mxu0 %v1014
          %1105 = vmatpush1.bf16.msra.mxu0 %v1013
          %1106 = vmatprep.subr.bf16.mxu0 %v1012
          %1107 = vmatpush1.bf16.msra.mxu0 %v1011
          %1108 = vmatprep.subr.bf16.mxu0 %v1010
          %1109 = vmatpush1.bf16.msra.mxu0 %v1009
          %1110 = vmatprep.subr.bf16.mxu0 %v1008
          %1111 = vmatpush1.bf16.msra.mxu0 %v1007
          %1112 = vmatprep.subr.bf16.mxu0 %v1006
          %1113 = vmatpush1.bf16.msra.mxu0 %v1005
          %1114 = vmatprep.subr.bf16.mxu0 %v1004
          %1115 = vmatpush1.bf16.msra.mxu0 %v1003
          %1116 = vmatprep.subr.bf16.mxu0 %v1002
          %1117 = vmatpush1.bf16.msra.mxu0 %v1001
          %1118 = vmatprep.subr.bf16.mxu0 %v1000
          %1119 = vmatpush1.bf16.msra.mxu0 %v999
          %1120 = vmatprep.subr.bf16.mxu0 0
          %1121 = vmatpush2.bf16.msra.mxu0 0
          %1122 = vmatprep.subr.bf16.mxu0 0
          %1123 = vmatpush2.bf16.msra.mxu0 0
          %1124 = vmatprep.subr.bf16.mxu0 0
          %1125 = vmatpush2.bf16.msra.mxu0 0
          %1126 = vmatprep.subr.bf16.mxu0 0
          %1127 = vmatpush2.bf16.msra.mxu0 0
          %1128 = vmatprep.subr.bf16.mxu0 0
          %1129 = vmatpush2.bf16.msra.mxu0 0
          %1130 = vmatprep.subr.bf16.mxu0 0
          %1131 = vmatpush2.bf16.msra.mxu0 0
          %1132 = vmatprep.subr.bf16.mxu0 0
          %1133 = vmatpush2.bf16.msra.mxu0 0
          %1134 = vmatprep.subr.bf16.mxu0 0
          %1135 = vmatpush2.bf16.msra.mxu0 0
          %1136 = vmatprep.mubr.bf16.mxu0 0
          %1137 = vmatmul.mubr.bf16.gmra.mxu0 %v773
          %v1138 = vpop.f32.mrf.mxu0
          %v1139 = vadd.f32 %v1098, %v1138
          %v1140 = vpop.f32.mrf.mxu0
          %v1141 = vadd.f32 %v1100, %v1140
          %v1142 = vpop.f32.mrf.mxu0
          %v1143 = vpop.f32.mrf.mxu0
          %1144 = vdwg.mxu0
          %v1193 = vunpack.c.l.b16 %v723
          %v1194 = vunpack.c.h.b16 %v723
          %v1195 = vunpack.c.l.b16 %v724
          %v1196 = vunpack.c.h.b16 %v724
          %v1197 = vunpack.c.l.b16 %v725
          %v1198 = vunpack.c.h.b16 %v725
          %v1199 = vunpack.c.l.b16 %v726
          %v1200 = vunpack.c.h.b16 %v726
          %v1201 = vunpack.c.l.b16 %v727
          %v1202 = vunpack.c.h.b16 %v727
          %v1203 = vunpack.c.l.b16 %v728
          %v1204 = vunpack.c.h.b16 %v728
          %v1205 = vunpack.c.l.b16 %v729
          %v1206 = vunpack.c.h.b16 %v729
          %v1207 = vunpack.c.l.b16 %v730
          %v1208 = vunpack.c.h.b16 %v730
          %v1209 = vunpack.c.l.b16 %v731
          %v1210 = vunpack.c.h.b16 %v731
          %v1211 = vunpack.c.l.b16 %v732
          %v1212 = vunpack.c.h.b16 %v732
          %v1213 = vunpack.c.l.b16 %v733
          %v1214 = vunpack.c.h.b16 %v733
          %v1215 = vunpack.c.l.b16 %v734
          %v1216 = vunpack.c.h.b16 %v734
          %v1217 = vunpack.c.l.b16 %v735
          %v1218 = vunpack.c.h.b16 %v735
          %v1219 = vunpack.c.l.b16 %v736
          %v1220 = vunpack.c.h.b16 %v736
          %v1221 = vunpack.c.l.b16 %v737
          %v1222 = vunpack.c.h.b16 %v737
          %v1223 = vunpack.c.l.b16 %v738
          %v1224 = vunpack.c.h.b16 %v738
          %v1225 = vunpack.c.l.b16 %v739
          %v1226 = vunpack.c.h.b16 %v739
          %v1227 = vunpack.c.l.b16 %v740
          %v1228 = vunpack.c.h.b16 %v740
          %v1229 = vunpack.c.l.b16 %v741
          %v1230 = vunpack.c.h.b16 %v741
          %v1231 = vunpack.c.l.b16 %v742
          %v1232 = vunpack.c.h.b16 %v742
          %v1233 = vunpack.c.l.b16 %v743
          %v1234 = vunpack.c.h.b16 %v743
          %v1235 = vunpack.c.l.b16 %v744
          %v1236 = vunpack.c.h.b16 %v744
          %v1237 = vunpack.c.l.b16 %v745
          %v1238 = vunpack.c.h.b16 %v745
          %v1239 = vunpack.c.l.b16 %v746
          %v1240 = vunpack.c.h.b16 %v746
          %v1241 = vunpack.c.l.b16 %v747
          %v1242 = vunpack.c.h.b16 %v747
          %v1243 = vunpack.c.l.b16 %v748
          %v1244 = vunpack.c.h.b16 %v748
          %v1245 = vunpack.c.l.b16 %v749
          %v1246 = vunpack.c.h.b16 %v749
          %v1247 = vunpack.c.l.b16 %v750
          %v1248 = vunpack.c.h.b16 %v750
          %v1249 = vunpack.c.l.b16 %v751
          %v1250 = vunpack.c.h.b16 %v751
          %v1251 = vunpack.c.l.b16 %v752
          %v1252 = vunpack.c.h.b16 %v752
          %v1253 = vunpack.c.l.b16 %v753
          %v1254 = vunpack.c.h.b16 %v753
          %v1255 = vunpack.c.l.b16 %v754
          %v1256 = vunpack.c.h.b16 %v754
          %v1257 = vunpack.c.l.b16 %v755
          %v1258 = vunpack.c.h.b16 %v755
          %v1259 = vunpack.c.l.b16 %v756
          %v1260 = vunpack.c.h.b16 %v756
          %v1261 = vunpack.c.l.b16 %v757
          %v1262 = vunpack.c.h.b16 %v757
          %v1263 = vunpack.c.l.b16 %v758
          %v1264 = vunpack.c.h.b16 %v758
          %v1265 = vunpack.c.l.b16 %v759
          %v1266 = vunpack.c.h.b16 %v759
          %v1267 = vunpack.c.l.b16 %v760
          %v1268 = vunpack.c.h.b16 %v760
          %v1269 = vunpack.c.l.b16 %v761
          %v1270 = vunpack.c.h.b16 %v761
          %v1271 = vunpack.c.l.b16 %v762
          %v1272 = vunpack.c.h.b16 %v762
          %v1273 = vunpack.c.l.b16 %v763
          %v1274 = vunpack.c.h.b16 %v763
          %v1275 = vunpack.c.l.b16 %v764
          %v1276 = vunpack.c.h.b16 %v764
          %v1277 = vunpack.c.l.b16 %v765
          %v1278 = vunpack.c.h.b16 %v765
          %v1279 = vunpack.c.l.b16 %v766
          %v1280 = vunpack.c.h.b16 %v766
          %v1281 = vunpack.c.l.b16 %v767
          %v1282 = vunpack.c.h.b16 %v767
          %v1283 = vunpack.c.l.b16 %v768
          %v1284 = vunpack.c.h.b16 %v768
          %v1285 = vunpack.c.l.b16 %v769
          %v1286 = vunpack.c.h.b16 %v769
          %v1287 = vunpack.c.l.b16 %v770
          %v1288 = vunpack.c.h.b16 %v770
          %v1289 = vpack.c.b16 %v1195, %v1193
          %v1290 = vpack.c.b16 %v1196, %v1194
          %v1291 = vpack.c.b16 %v1199, %v1197
          %v1292 = vpack.c.b16 %v1200, %v1198
          %v1293 = vpack.c.b16 %v1203, %v1201
          %v1294 = vpack.c.b16 %v1204, %v1202
          %v1295 = vpack.c.b16 %v1207, %v1205
          %v1296 = vpack.c.b16 %v1208, %v1206
          %v1297 = vpack.c.b16 %v1211, %v1209
          %v1298 = vpack.c.b16 %v1212, %v1210
          %v1299 = vpack.c.b16 %v1215, %v1213
          %v1300 = vpack.c.b16 %v1216, %v1214
          %v1301 = vpack.c.b16 %v1219, %v1217
          %v1302 = vpack.c.b16 %v1220, %v1218
          %v1303 = vpack.c.b16 %v1223, %v1221
          %v1304 = vpack.c.b16 %v1224, %v1222
          %v1305 = vpack.c.b16 %v1227, %v1225
          %v1306 = vpack.c.b16 %v1228, %v1226
          %v1307 = vpack.c.b16 %v1231, %v1229
          %v1308 = vpack.c.b16 %v1232, %v1230
          %v1309 = vpack.c.b16 %v1235, %v1233
          %v1310 = vpack.c.b16 %v1236, %v1234
          %v1311 = vpack.c.b16 %v1239, %v1237
          %v1312 = vpack.c.b16 %v1240, %v1238
          %v1313 = vpack.c.b16 %v1243, %v1241
          %v1314 = vpack.c.b16 %v1244, %v1242
          %v1315 = vpack.c.b16 %v1247, %v1245
          %v1316 = vpack.c.b16 %v1248, %v1246
          %v1317 = vpack.c.b16 %v1251, %v1249
          %v1318 = vpack.c.b16 %v1252, %v1250
          %v1319 = vpack.c.b16 %v1255, %v1253
          %v1320 = vpack.c.b16 %v1256, %v1254
          %v1321 = vpack.c.b16 %v1259, %v1257
          %v1322 = vpack.c.b16 %v1260, %v1258
          %v1323 = vpack.c.b16 %v1263, %v1261
          %v1324 = vpack.c.b16 %v1264, %v1262
          %v1325 = vpack.c.b16 %v1267, %v1265
          %v1326 = vpack.c.b16 %v1268, %v1266
          %v1327 = vpack.c.b16 %v1271, %v1269
          %v1328 = vpack.c.b16 %v1272, %v1270
          %v1329 = vpack.c.b16 %v1275, %v1273
          %v1330 = vpack.c.b16 %v1276, %v1274
          %v1331 = vpack.c.b16 %v1279, %v1277
          %v1332 = vpack.c.b16 %v1280, %v1278
          %v1333 = vpack.c.b16 %v1283, %v1281
          %v1334 = vpack.c.b16 %v1284, %v1282
          %v1335 = vpack.c.b16 %v1287, %v1285
          %v1336 = vpack.c.b16 %v1288, %v1286
          %1385 = vmatprep.subr.bf16.mxu0 %v1304
          %1386 = vmatpush1.bf16.msra.mxu0 %v1303
          %1387 = vmatprep.subr.bf16.mxu0 %v1302
          %1388 = vmatpush1.bf16.msra.mxu0 %v1301
          %1389 = vmatprep.subr.bf16.mxu0 %v1300
          %1390 = vmatpush1.bf16.msra.mxu0 %v1299
          %1391 = vmatprep.subr.bf16.mxu0 %v1298
          %1392 = vmatpush1.bf16.msra.mxu0 %v1297
          %1393 = vmatprep.subr.bf16.mxu0 %v1296
          %1394 = vmatpush1.bf16.msra.mxu0 %v1295
          %1395 = vmatprep.subr.bf16.mxu0 %v1294
          %1396 = vmatpush1.bf16.msra.mxu0 %v1293
          %1397 = vmatprep.subr.bf16.mxu0 %v1292
          %1398 = vmatpush1.bf16.msra.mxu0 %v1291
          %1399 = vmatprep.subr.bf16.mxu0 %v1290
          %1400 = vmatpush1.bf16.msra.mxu0 %v1289
          %1401 = vmatprep.subr.bf16.mxu0 %v1320
          %1402 = vmatpush2.bf16.msra.mxu0 %v1319
          %1403 = vmatprep.subr.bf16.mxu0 %v1318
          %1404 = vmatpush2.bf16.msra.mxu0 %v1317
          %1405 = vmatprep.subr.bf16.mxu0 %v1316
          %1406 = vmatpush2.bf16.msra.mxu0 %v1315
          %1407 = vmatprep.subr.bf16.mxu0 %v1314
          %1408 = vmatpush2.bf16.msra.mxu0 %v1313
          %1409 = vmatprep.subr.bf16.mxu0 %v1312
          %1410 = vmatpush2.bf16.msra.mxu0 %v1311
          %1411 = vmatprep.subr.bf16.mxu0 %v1310
          %1412 = vmatpush2.bf16.msra.mxu0 %v1309
          %1413 = vmatprep.subr.bf16.mxu0 %v1308
          %1414 = vmatpush2.bf16.msra.mxu0 %v1307
          %1415 = vmatprep.subr.bf16.mxu0 %v1306
          %1416 = vmatpush2.bf16.msra.mxu0 %v1305
          %1417 = vmatprep.mubr.bf16.mxu0 %v721
          %1418 = vmatmul.mubr.bf16.gmra.mxu0 %v720
          %v1419 = vpop.f32.mrf.mxu0
          %v1420 = vadd.f32 %v1139, %v1419
          %v1421 = vpop.f32.mrf.mxu0
          %v1422 = vadd.f32 %v1141, %v1421
          %v1423 = vpop.f32.mrf.mxu0
          %v1424 = vpop.f32.mrf.mxu0
          %1425 = vdwg.mxu0
          %1426 = vmatprep.subr.bf16.mxu0 %v1336
          %1427 = vmatpush1.bf16.msra.mxu0 %v1335
          %1428 = vmatprep.subr.bf16.mxu0 %v1334
          %1429 = vmatpush1.bf16.msra.mxu0 %v1333
          %1430 = vmatprep.subr.bf16.mxu0 %v1332
          %1431 = vmatpush1.bf16.msra.mxu0 %v1331
          %1432 = vmatprep.subr.bf16.mxu0 %v1330
          %1433 = vmatpush1.bf16.msra.mxu0 %v1329
          %1434 = vmatprep.subr.bf16.mxu0 %v1328
          %1435 = vmatpush1.bf16.msra.mxu0 %v1327
          %1436 = vmatprep.subr.bf16.mxu0 %v1326
          %1437 = vmatpush1.bf16.msra.mxu0 %v1325
          %1438 = vmatprep.subr.bf16.mxu0 %v1324
          %1439 = vmatpush1.bf16.msra.mxu0 %v1323
          %1440 = vmatprep.subr.bf16.mxu0 %v1322
          %1441 = vmatpush1.bf16.msra.mxu0 %v1321
          %1442 = vmatprep.subr.bf16.mxu0 0
          %1443 = vmatpush2.bf16.msra.mxu0 0
          %1444 = vmatprep.subr.bf16.mxu0 0
          %1445 = vmatpush2.bf16.msra.mxu0 0
          %1446 = vmatprep.subr.bf16.mxu0 0
          %1447 = vmatpush2.bf16.msra.mxu0 0
          %1448 = vmatprep.subr.bf16.mxu0 0
          %1449 = vmatpush2.bf16.msra.mxu0 0
          %1450 = vmatprep.subr.bf16.mxu0 0
          %1451 = vmatpush2.bf16.msra.mxu0 0
          %1452 = vmatprep.subr.bf16.mxu0 0
          %1453 = vmatpush2.bf16.msra.mxu0 0
          %1454 = vmatprep.subr.bf16.mxu0 0
          %1455 = vmatpush2.bf16.msra.mxu0 0
          %1456 = vmatprep.subr.bf16.mxu0 0
          %1457 = vmatpush2.bf16.msra.mxu0 0
          %1458 = vmatprep.mubr.bf16.mxu0 0
          %1459 = vmatmul.mubr.bf16.gmra.mxu0 %v722
          %v1460 = vpop.f32.mrf.mxu0
          %v1461 = vadd.f32 %v1420, %v1460
          %v1462 = vpop.f32.mrf.mxu0
          %v1463 = vadd.f32 %v1422, %v1462
          %v1464 = vpop.f32.mrf.mxu0
          %v1465 = vpop.f32.mrf.mxu0
          %1466 = vdwg.mxu0
          %v1467 = vrot.slane %v711, 1
          %v1468 = vrot.slane %v712, 1
          %v1469 = vrot.slane %v713, 1
          %v1470 = vmul.f32 %v1467, %v703
          %v1471 = vmul.f32 %v1468, %v703
          %v1472 = vmul.f32 %v1469, %v703
          %v1473 = vpack.c.bf16 %v1470, %v1470
          %v1474 = vpack.c.bf16 %v1471, %v1471
          %v1475 = vpack.c.bf16 %v1472, %v1472
          %s1476 = scalar_lea.vmem [#allocation6], 768
          %v1477 = vld [vmem:[%s1476] sm:$0xff]
          %v1478 = vld [vmem:[%s1476 + $0x8] sm:$0xff]
          %v1479 = vld [vmem:[%s1476 + $0x10] sm:$0xff]
          %v1480 = vld [vmem:[%s1476 + $0x18] sm:$0xff]
          %v1481 = vld [vmem:[%s1476 + $0x20] sm:$0xff]
          %v1482 = vld [vmem:[%s1476 + $0x28] sm:$0xff]
          %v1483 = vld [vmem:[%s1476 + $0x30] sm:$0xff]
          %v1484 = vld [vmem:[%s1476 + $0x38] sm:$0xff]
          %v1485 = vld [vmem:[%s1476 + $0x40] sm:$0xff]
          %v1486 = vld [vmem:[%s1476 + $0x48] sm:$0xff]
          %v1487 = vld [vmem:[%s1476 + $0x50] sm:$0xff]
          %v1488 = vld [vmem:[%s1476 + $0x58] sm:$0xff]
          %v1489 = vld [vmem:[%s1476 + $0x60] sm:$0xff]
          %v1490 = vld [vmem:[%s1476 + $0x68] sm:$0xff]
          %v1491 = vld [vmem:[%s1476 + $0x70] sm:$0xff]
          %v1492 = vld [vmem:[%s1476 + $0x78] sm:$0xff]
          %v1493 = vld [vmem:[%s1476 + $0x80] sm:$0xff]
          %v1494 = vld [vmem:[%s1476 + $0x88] sm:$0xff]
          %v1495 = vld [vmem:[%s1476 + $0x90] sm:$0xff]
          %v1496 = vld [vmem:[%s1476 + $0x98] sm:$0xff]
          %v1497 = vld [vmem:[%s1476 + $0xa0] sm:$0xff]
          %v1498 = vld [vmem:[%s1476 + $0xa8] sm:$0xff]
          %v1499 = vld [vmem:[%s1476 + $0xb0] sm:$0xff]
          %v1500 = vld [vmem:[%s1476 + $0xb8] sm:$0xff]
          %v1501 = vld [vmem:[%s1476 + $0xc0] sm:$0xff]
          %v1502 = vld [vmem:[%s1476 + $0xc8] sm:$0xff]
          %v1503 = vld [vmem:[%s1476 + $0xd0] sm:$0xff]
          %v1504 = vld [vmem:[%s1476 + $0xd8] sm:$0xff]
          %v1505 = vld [vmem:[%s1476 + $0xe0] sm:$0xff]
          %v1506 = vld [vmem:[%s1476 + $0xe8] sm:$0xff]
          %v1507 = vld [vmem:[%s1476 + $0xf0] sm:$0xff]
          %v1508 = vld [vmem:[%s1476 + $0xf8] sm:$0xff]
          %v1509 = vld [vmem:[%s1476 + $0x100] sm:$0xff]
          %v1510 = vld [vmem:[%s1476 + $0x108] sm:$0xff]
          %v1511 = vld [vmem:[%s1476 + $0x110] sm:$0xff]
          %v1512 = vld [vmem:[%s1476 + $0x118] sm:$0xff]
          %v1513 = vld [vmem:[%s1476 + $0x120] sm:$0xff]
          %v1514 = vld [vmem:[%s1476 + $0x128] sm:$0xff]
          %v1515 = vld [vmem:[%s1476 + $0x130] sm:$0xff]
          %v1516 = vld [vmem:[%s1476 + $0x138] sm:$0xff]
          %v1517 = vld [vmem:[%s1476 + $0x140] sm:$0xff]
          %v1518 = vld [vmem:[%s1476 + $0x148] sm:$0xff]
          %v1519 = vld [vmem:[%s1476 + $0x150] sm:$0xff]
          %v1520 = vld [vmem:[%s1476 + $0x158] sm:$0xff]
          %v1521 = vld [vmem:[%s1476 + $0x160] sm:$0xff]
          %v1522 = vld [vmem:[%s1476 + $0x168] sm:$0xff]
          %v1523 = vld [vmem:[%s1476 + $0x170] sm:$0xff]
          %v1524 = vld [vmem:[%s1476 + $0x178] sm:$0xff]
          %v1573 = vunpack.c.l.b16 %v1477
          %v1574 = vunpack.c.h.b16 %v1477
          %v1575 = vunpack.c.l.b16 %v1478
          %v1576 = vunpack.c.h.b16 %v1478
          %v1577 = vunpack.c.l.b16 %v1479
          %v1578 = vunpack.c.h.b16 %v1479
          %v1579 = vunpack.c.l.b16 %v1480
          %v1580 = vunpack.c.h.b16 %v1480
          %v1581 = vunpack.c.l.b16 %v1481
          %v1582 = vunpack.c.h.b16 %v1481
          %v1583 = vunpack.c.l.b16 %v1482
          %v1584 = vunpack.c.h.b16 %v1482
          %v1585 = vunpack.c.l.b16 %v1483
          %v1586 = vunpack.c.h.b16 %v1483
          %v1587 = vunpack.c.l.b16 %v1484
          %v1588 = vunpack.c.h.b16 %v1484
          %v1589 = vunpack.c.l.b16 %v1485
          %v1590 = vunpack.c.h.b16 %v1485
          %v1591 = vunpack.c.l.b16 %v1486
          %v1592 = vunpack.c.h.b16 %v1486
          %v1593 = vunpack.c.l.b16 %v1487
          %v1594 = vunpack.c.h.b16 %v1487
          %v1595 = vunpack.c.l.b16 %v1488
          %v1596 = vunpack.c.h.b16 %v1488
          %v1597 = vunpack.c.l.b16 %v1489
          %v1598 = vunpack.c.h.b16 %v1489
          %v1599 = vunpack.c.l.b16 %v1490
          %v1600 = vunpack.c.h.b16 %v1490
          %v1601 = vunpack.c.l.b16 %v1491
          %v1602 = vunpack.c.h.b16 %v1491
          %v1603 = vunpack.c.l.b16 %v1492
          %v1604 = vunpack.c.h.b16 %v1492
          %v1605 = vunpack.c.l.b16 %v1493
          %v1606 = vunpack.c.h.b16 %v1493
          %v1607 = vunpack.c.l.b16 %v1494
          %v1608 = vunpack.c.h.b16 %v1494
          %v1609 = vunpack.c.l.b16 %v1495
          %v1610 = vunpack.c.h.b16 %v1495
          %v1611 = vunpack.c.l.b16 %v1496
          %v1612 = vunpack.c.h.b16 %v1496
          %v1613 = vunpack.c.l.b16 %v1497
          %v1614 = vunpack.c.h.b16 %v1497
          %v1615 = vunpack.c.l.b16 %v1498
          %v1616 = vunpack.c.h.b16 %v1498
          %v1617 = vunpack.c.l.b16 %v1499
          %v1618 = vunpack.c.h.b16 %v1499
          %v1619 = vunpack.c.l.b16 %v1500
          %v1620 = vunpack.c.h.b16 %v1500
          %v1621 = vunpack.c.l.b16 %v1501
          %v1622 = vunpack.c.h.b16 %v1501
          %v1623 = vunpack.c.l.b16 %v1502
          %v1624 = vunpack.c.h.b16 %v1502
          %v1625 = vunpack.c.l.b16 %v1503
          %v1626 = vunpack.c.h.b16 %v1503
          %v1627 = vunpack.c.l.b16 %v1504
          %v1628 = vunpack.c.h.b16 %v1504
          %v1629 = vunpack.c.l.b16 %v1505
          %v1630 = vunpack.c.h.b16 %v1505
          %v1631 = vunpack.c.l.b16 %v1506
          %v1632 = vunpack.c.h.b16 %v1506
          %v1633 = vunpack.c.l.b16 %v1507
          %v1634 = vunpack.c.h.b16 %v1507
          %v1635 = vunpack.c.l.b16 %v1508
          %v1636 = vunpack.c.h.b16 %v1508
          %v1637 = vunpack.c.l.b16 %v1509
          %v1638 = vunpack.c.h.b16 %v1509
          %v1639 = vunpack.c.l.b16 %v1510
          %v1640 = vunpack.c.h.b16 %v1510
          %v1641 = vunpack.c.l.b16 %v1511
          %v1642 = vunpack.c.h.b16 %v1511
          %v1643 = vunpack.c.l.b16 %v1512
          %v1644 = vunpack.c.h.b16 %v1512
          %v1645 = vunpack.c.l.b16 %v1513
          %v1646 = vunpack.c.h.b16 %v1513
          %v1647 = vunpack.c.l.b16 %v1514
          %v1648 = vunpack.c.h.b16 %v1514
          %v1649 = vunpack.c.l.b16 %v1515
          %v1650 = vunpack.c.h.b16 %v1515
          %v1651 = vunpack.c.l.b16 %v1516
          %v1652 = vunpack.c.h.b16 %v1516
          %v1653 = vunpack.c.l.b16 %v1517
          %v1654 = vunpack.c.h.b16 %v1517
          %v1655 = vunpack.c.l.b16 %v1518
          %v1656 = vunpack.c.h.b16 %v1518
          %v1657 = vunpack.c.l.b16 %v1519
          %v1658 = vunpack.c.h.b16 %v1519
          %v1659 = vunpack.c.l.b16 %v1520
          %v1660 = vunpack.c.h.b16 %v1520
          %v1661 = vunpack.c.l.b16 %v1521
          %v1662 = vunpack.c.h.b16 %v1521
          %v1663 = vunpack.c.l.b16 %v1522
          %v1664 = vunpack.c.h.b16 %v1522
          %v1665 = vunpack.c.l.b16 %v1523
          %v1666 = vunpack.c.h.b16 %v1523
          %v1667 = vunpack.c.l.b16 %v1524
          %v1668 = vunpack.c.h.b16 %v1524
          %v1669 = vpack.c.b16 %v1575, %v1573
          %v1670 = vpack.c.b16 %v1576, %v1574
          %v1671 = vpack.c.b16 %v1579, %v1577
          %v1672 = vpack.c.b16 %v1580, %v1578
          %v1673 = vpack.c.b16 %v1583, %v1581
          %v1674 = vpack.c.b16 %v1584, %v1582
          %v1675 = vpack.c.b16 %v1587, %v1585
          %v1676 = vpack.c.b16 %v1588, %v1586
          %v1677 = vpack.c.b16 %v1591, %v1589
          %v1678 = vpack.c.b16 %v1592, %v1590
          %v1679 = vpack.c.b16 %v1595, %v1593
          %v1680 = vpack.c.b16 %v1596, %v1594
          %v1681 = vpack.c.b16 %v1599, %v1597
          %v1682 = vpack.c.b16 %v1600, %v1598
          %v1683 = vpack.c.b16 %v1603, %v1601
          %v1684 = vpack.c.b16 %v1604, %v1602
          %v1685 = vpack.c.b16 %v1607, %v1605
          %v1686 = vpack.c.b16 %v1608, %v1606
          %v1687 = vpack.c.b16 %v1611, %v1609
          %v1688 = vpack.c.b16 %v1612, %v1610
          %v1689 = vpack.c.b16 %v1615, %v1613
          %v1690 = vpack.c.b16 %v1616, %v1614
          %v1691 = vpack.c.b16 %v1619, %v1617
          %v1692 = vpack.c.b16 %v1620, %v1618
          %v1693 = vpack.c.b16 %v1623, %v1621
          %v1694 = vpack.c.b16 %v1624, %v1622
          %v1695 = vpack.c.b16 %v1627, %v1625
          %v1696 = vpack.c.b16 %v1628, %v1626
          %v1697 = vpack.c.b16 %v1631, %v1629
          %v1698 = vpack.c.b16 %v1632, %v1630
          %v1699 = vpack.c.b16 %v1635, %v1633
          %v1700 = vpack.c.b16 %v1636, %v1634
          %v1701 = vpack.c.b16 %v1639, %v1637
          %v1702 = vpack.c.b16 %v1640, %v1638
          %v1703 = vpack.c.b16 %v1643, %v1641
          %v1704 = vpack.c.b16 %v1644, %v1642
          %v1705 = vpack.c.b16 %v1647, %v1645
          %v1706 = vpack.c.b16 %v1648, %v1646
          %v1707 = vpack.c.b16 %v1651, %v1649
          %v1708 = vpack.c.b16 %v1652, %v1650
          %v1709 = vpack.c.b16 %v1655, %v1653
          %v1710 = vpack.c.b16 %v1656, %v1654
          %v1711 = vpack.c.b16 %v1659, %v1657
          %v1712 = vpack.c.b16 %v1660, %v1658
          %v1713 = vpack.c.b16 %v1663, %v1661
          %v1714 = vpack.c.b16 %v1664, %v1662
          %v1715 = vpack.c.b16 %v1667, %v1665
          %v1716 = vpack.c.b16 %v1668, %v1666
          %1765 = vmatprep.subr.bf16.mxu0 %v1684
          %1766 = vmatpush1.bf16.msra.mxu0 %v1683
          %1767 = vmatprep.subr.bf16.mxu0 %v1682
          %1768 = vmatpush1.bf16.msra.mxu0 %v1681
          %1769 = vmatprep.subr.bf16.mxu0 %v1680
          %1770 = vmatpush1.bf16.msra.mxu0 %v1679
          %1771 = vmatprep.subr.bf16.mxu0 %v1678
          %1772 = vmatpush1.bf16.msra.mxu0 %v1677
          %1773 = vmatprep.subr.bf16.mxu0 %v1676
          %1774 = vmatpush1.bf16.msra.mxu0 %v1675
          %1775 = vmatprep.subr.bf16.mxu0 %v1674
          %1776 = vmatpush1.bf16.msra.mxu0 %v1673
          %1777 = vmatprep.subr.bf16.mxu0 %v1672
          %1778 = vmatpush1.bf16.msra.mxu0 %v1671
          %1779 = vmatprep.subr.bf16.mxu0 %v1670
          %1780 = vmatpush1.bf16.msra.mxu0 %v1669
          %1781 = vmatprep.subr.bf16.mxu0 %v1700
          %1782 = vmatpush2.bf16.msra.mxu0 %v1699
          %1783 = vmatprep.subr.bf16.mxu0 %v1698
          %1784 = vmatpush2.bf16.msra.mxu0 %v1697
          %1785 = vmatprep.subr.bf16.mxu0 %v1696
          %1786 = vmatpush2.bf16.msra.mxu0 %v1695
          %1787 = vmatprep.subr.bf16.mxu0 %v1694
          %1788 = vmatpush2.bf16.msra.mxu0 %v1693
          %1789 = vmatprep.subr.bf16.mxu0 %v1692
          %1790 = vmatpush2.bf16.msra.mxu0 %v1691
          %1791 = vmatprep.subr.bf16.mxu0 %v1690
          %1792 = vmatpush2.bf16.msra.mxu0 %v1689
          %1793 = vmatprep.subr.bf16.mxu0 %v1688
          %1794 = vmatpush2.bf16.msra.mxu0 %v1687
          %1795 = vmatprep.subr.bf16.mxu0 %v1686
          %1796 = vmatpush2.bf16.msra.mxu0 %v1685
          %1797 = vmatprep.mubr.bf16.mxu0 %v1474
          %1798 = vmatmul.mubr.bf16.gmra.mxu0 %v1473
          %v1799 = vpop.f32.mrf.mxu0
          %v1800 = vadd.f32 0.0, %v1799
          %v1801 = vpop.f32.mrf.mxu0
          %v1802 = vadd.f32 0.0, %v1801
          %v1803 = vpop.f32.mrf.mxu0
          %v1804 = vpop.f32.mrf.mxu0
          %1805 = vdwg.mxu0
          %1806 = vmatprep.subr.bf16.mxu0 %v1716
          %1807 = vmatpush1.bf16.msra.mxu0 %v1715
          %1808 = vmatprep.subr.bf16.mxu0 %v1714
          %1809 = vmatpush1.bf16.msra.mxu0 %v1713
          %1810 = vmatprep.subr.bf16.mxu0 %v1712
          %1811 = vmatpush1.bf16.msra.mxu0 %v1711
          %1812 = vmatprep.subr.bf16.mxu0 %v1710
          %1813 = vmatpush1.bf16.msra.mxu0 %v1709
          %1814 = vmatprep.subr.bf16.mxu0 %v1708
          %1815 = vmatpush1.bf16.msra.mxu0 %v1707
          %1816 = vmatprep.subr.bf16.mxu0 %v1706
          %1817 = vmatpush1.bf16.msra.mxu0 %v1705
          %1818 = vmatprep.subr.bf16.mxu0 %v1704
          %1819 = vmatpush1.bf16.msra.mxu0 %v1703
          %1820 = vmatprep.subr.bf16.mxu0 %v1702
          %1821 = vmatpush1.bf16.msra.mxu0 %v1701
          %1822 = vmatprep.subr.bf16.mxu0 0
          %1823 = vmatpush2.bf16.msra.mxu0 0
          %1824 = vmatprep.subr.bf16.mxu0 0
          %1825 = vmatpush2.bf16.msra.mxu0 0
          %1826 = vmatprep.subr.bf16.mxu0 0
          %1827 = vmatpush2.bf16.msra.mxu0 0
          %1828 = vmatprep.subr.bf16.mxu0 0
          %1829 = vmatpush2.bf16.msra.mxu0 0
          %1830 = vmatprep.subr.bf16.mxu0 0
          %1831 = vmatpush2.bf16.msra.mxu0 0
          %1832 = vmatprep.subr.bf16.mxu0 0
          %1833 = vmatpush2.bf16.msra.mxu0 0
          %1834 = vmatprep.subr.bf16.mxu0 0
          %1835 = vmatpush2.bf16.msra.mxu0 0
          %1836 = vmatprep.subr.bf16.mxu0 0
          %1837 = vmatpush2.bf16.msra.mxu0 0
          %1838 = vmatprep.mubr.bf16.mxu0 0
          %1839 = vmatmul.mubr.bf16.gmra.mxu0 %v1475
          %v1840 = vpop.f32.mrf.mxu0
          %v1841 = vadd.f32 %v1800, %v1840
          %v1842 = vpop.f32.mrf.mxu0
          %v1843 = vadd.f32 %v1802, %v1842
          %v1844 = vpop.f32.mrf.mxu0
          %v1845 = vpop.f32.mrf.mxu0
          %1846 = vdwg.mxu0
          %v1847 = vadd.f32 %v1461, %v1841
          %v1848 = vadd.f32 %v1463, %v1843
          %v1849 = vlaneseq
          %v1850 = vshrl.u32 %v1849, 7
          %v1851 = vsub.s32 0, %v1850
          %v1852 = vrot.slane %v704, %v1851
          %v1853 = vlaneseq
          %v1854 = vshrl.u32 %v1853, 7
          %v1855 = vsub.s32 0, %v1854
          %v1856 = vrot.slane %v705, %v1855
          %v1857 = vadd.f32 %v1847, %v1852
          %v1858 = vadd.f32 %v1848, %v1856
          %v1859 = vmax.f32 %v1857, 0.0
          %v1860 = vmax.f32 %v1858, 0.0
          %v1861 = vadd.f32 %v1859, %v1860
          %1862 = vadd.xlane.f32.xlu0 %v1861
          %v1863 = vpop.xlane.xlu0 %1862
          %v1864 = vrcp.pop 256.0
          %v1865 = vmul.f32 %v1863, %v1864
          %v1866 = vsub.f32 %v1859, %v1865
          %v1867 = vsub.f32 %v1860, %v1865
          %v1868 = vmul.f32 %v1866, %v1866
          %v1869 = vmul.f32 %v1867, %v1867
          %v1870 = vadd.f32 %v1868, %v1869
          %1871 = vadd.xlane.f32.xlu0 %v1870
          %v1872 = vpop.xlane.xlu0 %1871
          %v1873 = vmul.f32 %v1872, %v1864
          %v1874 = vadd.f32 %v1873, 1e-05
          %v1875 = vrsqrt.pop %v1874
          %v1876 = vmul.f32 %v1866, %v1875
          %v1877 = vmul.f32 %v1867, %v1875
          %v1878 = vlaneseq
          %v1879 = vshrl.u32 %v1878, 7
          %v1880 = vsub.s32 1, %v1879
          %v1881 = vrot.slane %v704, %v1880
          %v1882 = vlaneseq
          %v1883 = vshrl.u32 %v1882, 7
          %v1884 = vsub.s32 1, %v1883
          %v1885 = vrot.slane %v705, %v1884
          %v1886 = vmul.f32 %v1876, %v1881
          %v1887 = vmul.f32 %v1877, %v1885
          %v1888 = vlaneseq
          %v1889 = vshrl.u32 %v1888, 7
          %v1890 = vsub.s32 2, %v1889
          %v1891 = vrot.slane %v704, %v1890
          %v1892 = vlaneseq
          %v1893 = vshrl.u32 %v1892, 7
          %v1894 = vsub.s32 2, %v1893
          %v1895 = vrot.slane %v705, %v1894
          %v1896 = vadd.f32 %v1886, %v1891
          %v1897 = vadd.f32 %v1887, %v1895
          %v1898 = vrot.slane %v1896, 7
          %v1899 = vrot.slane %v1897, 7
          %v1900 = vmul.f32 %v1898, %v700
          %v1901 = vmul.f32 %v1899, %v700
          %v1902 = vpack.c.bf16 %v1900, %v1900
          %v1903 = vpack.c.bf16 %v1901, %v1901
          %v1904 = vld [vmem:[#allocation8] sm:$0xff]
          %v1905 = vld [vmem:[#allocation8 + $0x8] sm:$0xff]
          %v1906 = vld [vmem:[#allocation8 + $0x10] sm:$0xff]
          %v1907 = vld [vmem:[#allocation8 + $0x18] sm:$0xff]
          %v1908 = vld [vmem:[#allocation8 + $0x20] sm:$0xff]
          %v1909 = vld [vmem:[#allocation8 + $0x28] sm:$0xff]
          %v1910 = vld [vmem:[#allocation8 + $0x30] sm:$0xff]
          %v1911 = vld [vmem:[#allocation8 + $0x38] sm:$0xff]
          %v1912 = vld [vmem:[#allocation8 + $0x40] sm:$0xff]
          %v1913 = vld [vmem:[#allocation8 + $0x48] sm:$0xff]
          %v1914 = vld [vmem:[#allocation8 + $0x50] sm:$0xff]
          %v1915 = vld [vmem:[#allocation8 + $0x58] sm:$0xff]
          %v1916 = vld [vmem:[#allocation8 + $0x60] sm:$0xff]
          %v1917 = vld [vmem:[#allocation8 + $0x68] sm:$0xff]
          %v1918 = vld [vmem:[#allocation8 + $0x70] sm:$0xff]
          %v1919 = vld [vmem:[#allocation8 + $0x78] sm:$0xff]
          %v1920 = vld [vmem:[#allocation8 + $0x80] sm:$0xff]
          %v1921 = vld [vmem:[#allocation8 + $0x88] sm:$0xff]
          %v1922 = vld [vmem:[#allocation8 + $0x90] sm:$0xff]
          %v1923 = vld [vmem:[#allocation8 + $0x98] sm:$0xff]
          %v1924 = vld [vmem:[#allocation8 + $0xa0] sm:$0xff]
          %v1925 = vld [vmem:[#allocation8 + $0xa8] sm:$0xff]
          %v1926 = vld [vmem:[#allocation8 + $0xb0] sm:$0xff]
          %v1927 = vld [vmem:[#allocation8 + $0xb8] sm:$0xff]
          %v1928 = vld [vmem:[#allocation8 + $0xc0] sm:$0xff]
          %v1929 = vld [vmem:[#allocation8 + $0xc8] sm:$0xff]
          %v1930 = vld [vmem:[#allocation8 + $0xd0] sm:$0xff]
          %v1931 = vld [vmem:[#allocation8 + $0xd8] sm:$0xff]
          %v1932 = vld [vmem:[#allocation8 + $0xe0] sm:$0xff]
          %v1933 = vld [vmem:[#allocation8 + $0xe8] sm:$0xff]
          %v1934 = vld [vmem:[#allocation8 + $0xf0] sm:$0xff]
          %v1935 = vld [vmem:[#allocation8 + $0xf8] sm:$0xff]
          %v1936 = vpack.c.bf16 %v1896, %v1896
          %v1937 = vpack.c.bf16 %v1897, %v1897
          %s1938 = scalar_lea.vmem [#allocation8], 256
          %v1939 = vld [vmem:[%s1938] sm:$0xff]
          %v1940 = vld [vmem:[%s1938 + $0x8] sm:$0xff]
          %v1941 = vld [vmem:[%s1938 + $0x10] sm:$0xff]
          %v1942 = vld [vmem:[%s1938 + $0x18] sm:$0xff]
          %v1943 = vld [vmem:[%s1938 + $0x20] sm:$0xff]
          %v1944 = vld [vmem:[%s1938 + $0x28] sm:$0xff]
          %v1945 = vld [vmem:[%s1938 + $0x30] sm:$0xff]
          %v1946 = vld [vmem:[%s1938 + $0x38] sm:$0xff]
          %v1947 = vld [vmem:[%s1938 + $0x40] sm:$0xff]
          %v1948 = vld [vmem:[%s1938 + $0x48] sm:$0xff]
          %v1949 = vld [vmem:[%s1938 + $0x50] sm:$0xff]
          %v1950 = vld [vmem:[%s1938 + $0x58] sm:$0xff]
          %v1951 = vld [vmem:[%s1938 + $0x60] sm:$0xff]
          %v1952 = vld [vmem:[%s1938 + $0x68] sm:$0xff]
          %v1953 = vld [vmem:[%s1938 + $0x70] sm:$0xff]
          %v1954 = vld [vmem:[%s1938 + $0x78] sm:$0xff]
          %v1955 = vld [vmem:[%s1938 + $0x80] sm:$0xff]
          %v1956 = vld [vmem:[%s1938 + $0x88] sm:$0xff]
          %v1957 = vld [vmem:[%s1938 + $0x90] sm:$0xff]
          %v1958 = vld [vmem:[%s1938 + $0x98] sm:$0xff]
          %v1959 = vld [vmem:[%s1938 + $0xa0] sm:$0xff]
          %v1960 = vld [vmem:[%s1938 + $0xa8] sm:$0xff]
          %v1961 = vld [vmem:[%s1938 + $0xb0] sm:$0xff]
          %v1962 = vld [vmem:[%s1938 + $0xb8] sm:$0xff]
          %v1963 = vld [vmem:[%s1938 + $0xc0] sm:$0xff]
          %v1964 = vld [vmem:[%s1938 + $0xc8] sm:$0xff]
          %v1965 = vld [vmem:[%s1938 + $0xd0] sm:$0xff]
          %v1966 = vld [vmem:[%s1938 + $0xd8] sm:$0xff]
          %v1967 = vld [vmem:[%s1938 + $0xe0] sm:$0xff]
          %v1968 = vld [vmem:[%s1938 + $0xe8] sm:$0xff]
          %v1969 = vld [vmem:[%s1938 + $0xf0] sm:$0xff]
          %v1970 = vld [vmem:[%s1938 + $0xf8] sm:$0xff]
          %v2003 = vunpack.c.l.b16 %v1939
          %v2004 = vunpack.c.h.b16 %v1939
          %v2005 = vunpack.c.l.b16 %v1940
          %v2006 = vunpack.c.h.b16 %v1940
          %v2007 = vunpack.c.l.b16 %v1941
          %v2008 = vunpack.c.h.b16 %v1941
          %v2009 = vunpack.c.l.b16 %v1942
          %v2010 = vunpack.c.h.b16 %v1942
          %v2011 = vunpack.c.l.b16 %v1943
          %v2012 = vunpack.c.h.b16 %v1943
          %v2013 = vunpack.c.l.b16 %v1944
          %v2014 = vunpack.c.h.b16 %v1944
          %v2015 = vunpack.c.l.b16 %v1945
          %v2016 = vunpack.c.h.b16 %v1945
          %v2017 = vunpack.c.l.b16 %v1946
          %v2018 = vunpack.c.h.b16 %v1946
          %v2019 = vunpack.c.l.b16 %v1947
          %v2020 = vunpack.c.h.b16 %v1947
          %v2021 = vunpack.c.l.b16 %v1948
          %v2022 = vunpack.c.h.b16 %v1948
          %v2023 = vunpack.c.l.b16 %v1949
          %v2024 = vunpack.c.h.b16 %v1949
          %v2025 = vunpack.c.l.b16 %v1950
          %v2026 = vunpack.c.h.b16 %v1950
          %v2027 = vunpack.c.l.b16 %v1951
          %v2028 = vunpack.c.h.b16 %v1951
          %v2029 = vunpack.c.l.b16 %v1952
          %v2030 = vunpack.c.h.b16 %v1952
          %v2031 = vunpack.c.l.b16 %v1953
          %v2032 = vunpack.c.h.b16 %v1953
          %v2033 = vunpack.c.l.b16 %v1954
          %v2034 = vunpack.c.h.b16 %v1954
          %v2035 = vunpack.c.l.b16 %v1955
          %v2036 = vunpack.c.h.b16 %v1955
          %v2037 = vunpack.c.l.b16 %v1956
          %v2038 = vunpack.c.h.b16 %v1956
          %v2039 = vunpack.c.l.b16 %v1957
          %v2040 = vunpack.c.h.b16 %v1957
          %v2041 = vunpack.c.l.b16 %v1958
          %v2042 = vunpack.c.h.b16 %v1958
          %v2043 = vunpack.c.l.b16 %v1959
          %v2044 = vunpack.c.h.b16 %v1959
          %v2045 = vunpack.c.l.b16 %v1960
          %v2046 = vunpack.c.h.b16 %v1960
          %v2047 = vunpack.c.l.b16 %v1961
          %v2048 = vunpack.c.h.b16 %v1961
          %v2049 = vunpack.c.l.b16 %v1962
          %v2050 = vunpack.c.h.b16 %v1962
          %v2051 = vunpack.c.l.b16 %v1963
          %v2052 = vunpack.c.h.b16 %v1963
          %v2053 = vunpack.c.l.b16 %v1964
          %v2054 = vunpack.c.h.b16 %v1964
          %v2055 = vunpack.c.l.b16 %v1965
          %v2056 = vunpack.c.h.b16 %v1965
          %v2057 = vunpack.c.l.b16 %v1966
          %v2058 = vunpack.c.h.b16 %v1966
          %v2059 = vunpack.c.l.b16 %v1967
          %v2060 = vunpack.c.h.b16 %v1967
          %v2061 = vunpack.c.l.b16 %v1968
          %v2062 = vunpack.c.h.b16 %v1968
          %v2063 = vunpack.c.l.b16 %v1969
          %v2064 = vunpack.c.h.b16 %v1969
          %v2065 = vunpack.c.l.b16 %v1970
          %v2066 = vunpack.c.h.b16 %v1970
          %v2067 = vpack.c.b16 %v2005, %v2003
          %v2068 = vpack.c.b16 %v2006, %v2004
          %v2069 = vpack.c.b16 %v2009, %v2007
          %v2070 = vpack.c.b16 %v2010, %v2008
          %v2071 = vpack.c.b16 %v2013, %v2011
          %v2072 = vpack.c.b16 %v2014, %v2012
          %v2073 = vpack.c.b16 %v2017, %v2015
          %v2074 = vpack.c.b16 %v2018, %v2016
          %v2075 = vpack.c.b16 %v2021, %v2019
          %v2076 = vpack.c.b16 %v2022, %v2020
          %v2077 = vpack.c.b16 %v2025, %v2023
          %v2078 = vpack.c.b16 %v2026, %v2024
          %v2079 = vpack.c.b16 %v2029, %v2027
          %v2080 = vpack.c.b16 %v2030, %v2028
          %v2081 = vpack.c.b16 %v2033, %v2031
          %v2082 = vpack.c.b16 %v2034, %v2032
          %v2083 = vpack.c.b16 %v2037, %v2035
          %v2084 = vpack.c.b16 %v2038, %v2036
          %v2085 = vpack.c.b16 %v2041, %v2039
          %v2086 = vpack.c.b16 %v2042, %v2040
          %v2087 = vpack.c.b16 %v2045, %v2043
          %v2088 = vpack.c.b16 %v2046, %v2044
          %v2089 = vpack.c.b16 %v2049, %v2047
          %v2090 = vpack.c.b16 %v2050, %v2048
          %v2091 = vpack.c.b16 %v2053, %v2051
          %v2092 = vpack.c.b16 %v2054, %v2052
          %v2093 = vpack.c.b16 %v2057, %v2055
          %v2094 = vpack.c.b16 %v2058, %v2056
          %v2095 = vpack.c.b16 %v2061, %v2059
          %v2096 = vpack.c.b16 %v2062, %v2060
          %v2097 = vpack.c.b16 %v2065, %v2063
          %v2098 = vpack.c.b16 %v2066, %v2064
          %2131 = vmatprep.subr.bf16.mxu0 %v2082
          %2132 = vmatpush1.bf16.msra.mxu0 %v2081
          %2133 = vmatprep.subr.bf16.mxu0 %v2080
          %2134 = vmatpush1.bf16.msra.mxu0 %v2079
          %2135 = vmatprep.subr.bf16.mxu0 %v2078
          %2136 = vmatpush1.bf16.msra.mxu0 %v2077
          %2137 = vmatprep.subr.bf16.mxu0 %v2076
          %2138 = vmatpush1.bf16.msra.mxu0 %v2075
          %2139 = vmatprep.subr.bf16.mxu0 %v2074
          %2140 = vmatpush1.bf16.msra.mxu0 %v2073
          %2141 = vmatprep.subr.bf16.mxu0 %v2072
          %2142 = vmatpush1.bf16.msra.mxu0 %v2071
          %2143 = vmatprep.subr.bf16.mxu0 %v2070
          %2144 = vmatpush1.bf16.msra.mxu0 %v2069
          %2145 = vmatprep.subr.bf16.mxu0 %v2068
          %2146 = vmatpush1.bf16.msra.mxu0 %v2067
          %2147 = vmatprep.subr.bf16.mxu0 %v2098
          %2148 = vmatpush2.bf16.msra.mxu0 %v2097
          %2149 = vmatprep.subr.bf16.mxu0 %v2096
          %2150 = vmatpush2.bf16.msra.mxu0 %v2095
          %2151 = vmatprep.subr.bf16.mxu0 %v2094
          %2152 = vmatpush2.bf16.msra.mxu0 %v2093
          %2153 = vmatprep.subr.bf16.mxu0 %v2092
          %2154 = vmatpush2.bf16.msra.mxu0 %v2091
          %2155 = vmatprep.subr.bf16.mxu0 %v2090
          %2156 = vmatpush2.bf16.msra.mxu0 %v2089
          %2157 = vmatprep.subr.bf16.mxu0 %v2088
          %2158 = vmatpush2.bf16.msra.mxu0 %v2087
          %2159 = vmatprep.subr.bf16.mxu0 %v2086
          %2160 = vmatpush2.bf16.msra.mxu0 %v2085
          %2161 = vmatprep.subr.bf16.mxu0 %v2084
          %2162 = vmatpush2.bf16.msra.mxu0 %v2083
          %2163 = vmatprep.mubr.bf16.mxu0 %v1937
          %2164 = vmatmul.mubr.bf16.gmra.mxu0 %v1936
          %v2165 = vpop.f32.mrf.mxu0
          %v2166 = vadd.f32 0.0, %v2165
          %v2167 = vpop.f32.mrf.mxu0
          %v2168 = vadd.f32 0.0, %v2167
          %v2169 = vpop.f32.mrf.mxu0
          %v2170 = vpop.f32.mrf.mxu0
          %2171 = vdwg.mxu0
          %v2204 = vunpack.c.l.b16 %v1904
          %v2205 = vunpack.c.h.b16 %v1904
          %v2206 = vunpack.c.l.b16 %v1905
          %v2207 = vunpack.c.h.b16 %v1905
          %v2208 = vunpack.c.l.b16 %v1906
          %v2209 = vunpack.c.h.b16 %v1906
          %v2210 = vunpack.c.l.b16 %v1907
          %v2211 = vunpack.c.h.b16 %v1907
          %v2212 = vunpack.c.l.b16 %v1908
          %v2213 = vunpack.c.h.b16 %v1908
          %v2214 = vunpack.c.l.b16 %v1909
          %v2215 = vunpack.c.h.b16 %v1909
          %v2216 = vunpack.c.l.b16 %v1910
          %v2217 = vunpack.c.h.b16 %v1910
          %v2218 = vunpack.c.l.b16 %v1911
          %v2219 = vunpack.c.h.b16 %v1911
          %v2220 = vunpack.c.l.b16 %v1912
          %v2221 = vunpack.c.h.b16 %v1912
          %v2222 = vunpack.c.l.b16 %v1913
          %v2223 = vunpack.c.h.b16 %v1913
          %v2224 = vunpack.c.l.b16 %v1914
          %v2225 = vunpack.c.h.b16 %v1914
          %v2226 = vunpack.c.l.b16 %v1915
          %v2227 = vunpack.c.h.b16 %v1915
          %v2228 = vunpack.c.l.b16 %v1916
          %v2229 = vunpack.c.h.b16 %v1916
          %v2230 = vunpack.c.l.b16 %v1917
          %v2231 = vunpack.c.h.b16 %v1917
          %v2232 = vunpack.c.l.b16 %v1918
          %v2233 = vunpack.c.h.b16 %v1918
          %v2234 = vunpack.c.l.b16 %v1919
          %v2235 = vunpack.c.h.b16 %v1919
          %v2236 = vunpack.c.l.b16 %v1920
          %v2237 = vunpack.c.h.b16 %v1920
          %v2238 = vunpack.c.l.b16 %v1921
          %v2239 = vunpack.c.h.b16 %v1921
          %v2240 = vunpack.c.l.b16 %v1922
          %v2241 = vunpack.c.h.b16 %v1922
          %v2242 = vunpack.c.l.b16 %v1923
          %v2243 = vunpack.c.h.b16 %v1923
          %v2244 = vunpack.c.l.b16 %v1924
          %v2245 = vunpack.c.h.b16 %v1924
          %v2246 = vunpack.c.l.b16 %v1925
          %v2247 = vunpack.c.h.b16 %v1925
          %v2248 = vunpack.c.l.b16 %v1926
          %v2249 = vunpack.c.h.b16 %v1926
          %v2250 = vunpack.c.l.b16 %v1927
          %v2251 = vunpack.c.h.b16 %v1927
          %v2252 = vunpack.c.l.b16 %v1928
          %v2253 = vunpack.c.h.b16 %v1928
          %v2254 = vunpack.c.l.b16 %v1929
          %v2255 = vunpack.c.h.b16 %v1929
          %v2256 = vunpack.c.l.b16 %v1930
          %v2257 = vunpack.c.h.b16 %v1930
          %v2258 = vunpack.c.l.b16 %v1931
          %v2259 = vunpack.c.h.b16 %v1931
          %v2260 = vunpack.c.l.b16 %v1932
          %v2261 = vunpack.c.h.b16 %v1932
          %v2262 = vunpack.c.l.b16 %v1933
          %v2263 = vunpack.c.h.b16 %v1933
          %v2264 = vunpack.c.l.b16 %v1934
          %v2265 = vunpack.c.h.b16 %v1934
          %v2266 = vunpack.c.l.b16 %v1935
          %v2267 = vunpack.c.h.b16 %v1935
          %v2268 = vpack.c.b16 %v2206, %v2204
          %v2269 = vpack.c.b16 %v2207, %v2205
          %v2270 = vpack.c.b16 %v2210, %v2208
          %v2271 = vpack.c.b16 %v2211, %v2209
          %v2272 = vpack.c.b16 %v2214, %v2212
          %v2273 = vpack.c.b16 %v2215, %v2213
          %v2274 = vpack.c.b16 %v2218, %v2216
          %v2275 = vpack.c.b16 %v2219, %v2217
          %v2276 = vpack.c.b16 %v2222, %v2220
          %v2277 = vpack.c.b16 %v2223, %v2221
          %v2278 = vpack.c.b16 %v2226, %v2224
          %v2279 = vpack.c.b16 %v2227, %v2225
          %v2280 = vpack.c.b16 %v2230, %v2228
          %v2281 = vpack.c.b16 %v2231, %v2229
          %v2282 = vpack.c.b16 %v2234, %v2232
          %v2283 = vpack.c.b16 %v2235, %v2233
          %v2284 = vpack.c.b16 %v2238, %v2236
          %v2285 = vpack.c.b16 %v2239, %v2237
          %v2286 = vpack.c.b16 %v2242, %v2240
          %v2287 = vpack.c.b16 %v2243, %v2241
          %v2288 = vpack.c.b16 %v2246, %v2244
          %v2289 = vpack.c.b16 %v2247, %v2245
          %v2290 = vpack.c.b16 %v2250, %v2248
          %v2291 = vpack.c.b16 %v2251, %v2249
          %v2292 = vpack.c.b16 %v2254, %v2252
          %v2293 = vpack.c.b16 %v2255, %v2253
          %v2294 = vpack.c.b16 %v2258, %v2256
          %v2295 = vpack.c.b16 %v2259, %v2257
          %v2296 = vpack.c.b16 %v2262, %v2260
          %v2297 = vpack.c.b16 %v2263, %v2261
          %v2298 = vpack.c.b16 %v2266, %v2264
          %v2299 = vpack.c.b16 %v2267, %v2265
          %2332 = vmatprep.subr.bf16.mxu0 %v2283
          %2333 = vmatpush1.bf16.msra.mxu0 %v2282
          %2334 = vmatprep.subr.bf16.mxu0 %v2281
          %2335 = vmatpush1.bf16.msra.mxu0 %v2280
          %2336 = vmatprep.subr.bf16.mxu0 %v2279
          %2337 = vmatpush1.bf16.msra.mxu0 %v2278
          %2338 = vmatprep.subr.bf16.mxu0 %v2277
          %2339 = vmatpush1.bf16.msra.mxu0 %v2276
          %2340 = vmatprep.subr.bf16.mxu0 %v2275
          %2341 = vmatpush1.bf16.msra.mxu0 %v2274
          %2342 = vmatprep.subr.bf16.mxu0 %v2273
          %2343 = vmatpush1.bf16.msra.mxu0 %v2272
          %2344 = vmatprep.subr.bf16.mxu0 %v2271
          %2345 = vmatpush1.bf16.msra.mxu0 %v2270
          %2346 = vmatprep.subr.bf16.mxu0 %v2269
          %2347 = vmatpush1.bf16.msra.mxu0 %v2268
          %2348 = vmatprep.subr.bf16.mxu0 %v2299
          %2349 = vmatpush2.bf16.msra.mxu0 %v2298
          %2350 = vmatprep.subr.bf16.mxu0 %v2297
          %2351 = vmatpush2.bf16.msra.mxu0 %v2296
          %2352 = vmatprep.subr.bf16.mxu0 %v2295
          %2353 = vmatpush2.bf16.msra.mxu0 %v2294
          %2354 = vmatprep.subr.bf16.mxu0 %v2293
          %2355 = vmatpush2.bf16.msra.mxu0 %v2292
          %2356 = vmatprep.subr.bf16.mxu0 %v2291
          %2357 = vmatpush2.bf16.msra.mxu0 %v2290
          %2358 = vmatprep.subr.bf16.mxu0 %v2289
          %2359 = vmatpush2.bf16.msra.mxu0 %v2288
          %2360 = vmatprep.subr.bf16.mxu0 %v2287
          %2361 = vmatpush2.bf16.msra.mxu0 %v2286
          %2362 = vmatprep.subr.bf16.mxu0 %v2285
          %2363 = vmatpush2.bf16.msra.mxu0 %v2284
          %2364 = vmatprep.mubr.bf16.mxu0 %v1903
          %2365 = vmatmul.mubr.bf16.gmra.mxu0 %v1902
          %v2366 = vpop.f32.mrf.mxu0
          %v2367 = vadd.f32 %v2166, %v2366
          %v2368 = vpop.f32.mrf.mxu0
          %v2369 = vadd.f32 %v2168, %v2368
          %v2370 = vpop.f32.mrf.mxu0
          %v2371 = vpop.f32.mrf.mxu0
          %2372 = vdwg.mxu0
          %v2373 = vrot.slane %v1896, 1
          %v2374 = vrot.slane %v1897, 1
          %v2375 = vmul.f32 %v2373, %v703
          %v2376 = vmul.f32 %v2374, %v703
          %v2377 = vpack.c.bf16 %v2375, %v2375
          %v2378 = vpack.c.bf16 %v2376, %v2376
          %s2379 = scalar_lea.vmem [#allocation8], 512
          %v2380 = vld [vmem:[%s2379] sm:$0xff]
          %v2381 = vld [vmem:[%s2379 + $0x8] sm:$0xff]
          %v2382 = vld [vmem:[%s2379 + $0x10] sm:$0xff]
          %v2383 = vld [vmem:[%s2379 + $0x18] sm:$0xff]
          %v2384 = vld [vmem:[%s2379 + $0x20] sm:$0xff]
          %v2385 = vld [vmem:[%s2379 + $0x28] sm:$0xff]
          %v2386 = vld [vmem:[%s2379 + $0x30] sm:$0xff]
          %v2387 = vld [vmem:[%s2379 + $0x38] sm:$0xff]
          %v2388 = vld [vmem:[%s2379 + $0x40] sm:$0xff]
          %v2389 = vld [vmem:[%s2379 + $0x48] sm:$0xff]
          %v2390 = vld [vmem:[%s2379 + $0x50] sm:$0xff]
          %v2391 = vld [vmem:[%s2379 + $0x58] sm:$0xff]
          %v2392 = vld [vmem:[%s2379 + $0x60] sm:$0xff]
          %v2393 = vld [vmem:[%s2379 + $0x68] sm:$0xff]
          %v2394 = vld [vmem:[%s2379 + $0x70] sm:$0xff]
          %v2395 = vld [vmem:[%s2379 + $0x78] sm:$0xff]
          %v2396 = vld [vmem:[%s2379 + $0x80] sm:$0xff]
          %v2397 = vld [vmem:[%s2379 + $0x88] sm:$0xff]
          %v2398 = vld [vmem:[%s2379 + $0x90] sm:$0xff]
          %v2399 = vld [vmem:[%s2379 + $0x98] sm:$0xff]
          %v2400 = vld [vmem:[%s2379 + $0xa0] sm:$0xff]
          %v2401 = vld [vmem:[%s2379 + $0xa8] sm:$0xff]
          %v2402 = vld [vmem:[%s2379 + $0xb0] sm:$0xff]
          %v2403 = vld [vmem:[%s2379 + $0xb8] sm:$0xff]
          %v2404 = vld [vmem:[%s2379 + $0xc0] sm:$0xff]
          %v2405 = vld [vmem:[%s2379 + $0xc8] sm:$0xff]
          %v2406 = vld [vmem:[%s2379 + $0xd0] sm:$0xff]
          %v2407 = vld [vmem:[%s2379 + $0xd8] sm:$0xff]
          %v2408 = vld [vmem:[%s2379 + $0xe0] sm:$0xff]
          %v2409 = vld [vmem:[%s2379 + $0xe8] sm:$0xff]
          %v2410 = vld [vmem:[%s2379 + $0xf0] sm:$0xff]
          %v2411 = vld [vmem:[%s2379 + $0xf8] sm:$0xff]
          %v2444 = vunpack.c.l.b16 %v2380
          %v2445 = vunpack.c.h.b16 %v2380
          %v2446 = vunpack.c.l.b16 %v2381
          %v2447 = vunpack.c.h.b16 %v2381
          %v2448 = vunpack.c.l.b16 %v2382
          %v2449 = vunpack.c.h.b16 %v2382
          %v2450 = vunpack.c.l.b16 %v2383
          %v2451 = vunpack.c.h.b16 %v2383
          %v2452 = vunpack.c.l.b16 %v2384
          %v2453 = vunpack.c.h.b16 %v2384
          %v2454 = vunpack.c.l.b16 %v2385
          %v2455 = vunpack.c.h.b16 %v2385
          %v2456 = vunpack.c.l.b16 %v2386
          %v2457 = vunpack.c.h.b16 %v2386
          %v2458 = vunpack.c.l.b16 %v2387
          %v2459 = vunpack.c.h.b16 %v2387
          %v2460 = vunpack.c.l.b16 %v2388
          %v2461 = vunpack.c.h.b16 %v2388
          %v2462 = vunpack.c.l.b16 %v2389
          %v2463 = vunpack.c.h.b16 %v2389
          %v2464 = vunpack.c.l.b16 %v2390
          %v2465 = vunpack.c.h.b16 %v2390
          %v2466 = vunpack.c.l.b16 %v2391
          %v2467 = vunpack.c.h.b16 %v2391
          %v2468 = vunpack.c.l.b16 %v2392
          %v2469 = vunpack.c.h.b16 %v2392
          %v2470 = vunpack.c.l.b16 %v2393
          %v2471 = vunpack.c.h.b16 %v2393
          %v2472 = vunpack.c.l.b16 %v2394
          %v2473 = vunpack.c.h.b16 %v2394
          %v2474 = vunpack.c.l.b16 %v2395
          %v2475 = vunpack.c.h.b16 %v2395
          %v2476 = vunpack.c.l.b16 %v2396
          %v2477 = vunpack.c.h.b16 %v2396
          %v2478 = vunpack.c.l.b16 %v2397
          %v2479 = vunpack.c.h.b16 %v2397
          %v2480 = vunpack.c.l.b16 %v2398
          %v2481 = vunpack.c.h.b16 %v2398
          %v2482 = vunpack.c.l.b16 %v2399
          %v2483 = vunpack.c.h.b16 %v2399
          %v2484 = vunpack.c.l.b16 %v2400
          %v2485 = vunpack.c.h.b16 %v2400
          %v2486 = vunpack.c.l.b16 %v2401
          %v2487 = vunpack.c.h.b16 %v2401
          %v2488 = vunpack.c.l.b16 %v2402
          %v2489 = vunpack.c.h.b16 %v2402
          %v2490 = vunpack.c.l.b16 %v2403
          %v2491 = vunpack.c.h.b16 %v2403
          %v2492 = vunpack.c.l.b16 %v2404
          %v2493 = vunpack.c.h.b16 %v2404
          %v2494 = vunpack.c.l.b16 %v2405
          %v2495 = vunpack.c.h.b16 %v2405
          %v2496 = vunpack.c.l.b16 %v2406
          %v2497 = vunpack.c.h.b16 %v2406
          %v2498 = vunpack.c.l.b16 %v2407
          %v2499 = vunpack.c.h.b16 %v2407
          %v2500 = vunpack.c.l.b16 %v2408
          %v2501 = vunpack.c.h.b16 %v2408
          %v2502 = vunpack.c.l.b16 %v2409
          %v2503 = vunpack.c.h.b16 %v2409
          %v2504 = vunpack.c.l.b16 %v2410
          %v2505 = vunpack.c.h.b16 %v2410
          %v2506 = vunpack.c.l.b16 %v2411
          %v2507 = vunpack.c.h.b16 %v2411
          %v2508 = vpack.c.b16 %v2446, %v2444
          %v2509 = vpack.c.b16 %v2447, %v2445
          %v2510 = vpack.c.b16 %v2450, %v2448
          %v2511 = vpack.c.b16 %v2451, %v2449
          %v2512 = vpack.c.b16 %v2454, %v2452
          %v2513 = vpack.c.b16 %v2455, %v2453
          %v2514 = vpack.c.b16 %v2458, %v2456
          %v2515 = vpack.c.b16 %v2459, %v2457
          %v2516 = vpack.c.b16 %v2462, %v2460
          %v2517 = vpack.c.b16 %v2463, %v2461
          %v2518 = vpack.c.b16 %v2466, %v2464
          %v2519 = vpack.c.b16 %v2467, %v2465
          %v2520 = vpack.c.b16 %v2470, %v2468
          %v2521 = vpack.c.b16 %v2471, %v2469
          %v2522 = vpack.c.b16 %v2474, %v2472
          %v2523 = vpack.c.b16 %v2475, %v2473
          %v2524 = vpack.c.b16 %v2478, %v2476
          %v2525 = vpack.c.b16 %v2479, %v2477
          %v2526 = vpack.c.b16 %v2482, %v2480
          %v2527 = vpack.c.b16 %v2483, %v2481
          %v2528 = vpack.c.b16 %v2486, %v2484
          %v2529 = vpack.c.b16 %v2487, %v2485
          %v2530 = vpack.c.b16 %v2490, %v2488
          %v2531 = vpack.c.b16 %v2491, %v2489
          %v2532 = vpack.c.b16 %v2494, %v2492
          %v2533 = vpack.c.b16 %v2495, %v2493
          %v2534 = vpack.c.b16 %v2498, %v2496
          %v2535 = vpack.c.b16 %v2499, %v2497
          %v2536 = vpack.c.b16 %v2502, %v2500
          %v2537 = vpack.c.b16 %v2503, %v2501
          %v2538 = vpack.c.b16 %v2506, %v2504
          %v2539 = vpack.c.b16 %v2507, %v2505
          %2572 = vmatprep.subr.bf16.mxu0 %v2523
          %2573 = vmatpush1.bf16.msra.mxu0 %v2522
          %2574 = vmatprep.subr.bf16.mxu0 %v2521
          %2575 = vmatpush1.bf16.msra.mxu0 %v2520
          %2576 = vmatprep.subr.bf16.mxu0 %v2519
          %2577 = vmatpush1.bf16.msra.mxu0 %v2518
          %2578 = vmatprep.subr.bf16.mxu0 %v2517
          %2579 = vmatpush1.bf16.msra.mxu0 %v2516
          %2580 = vmatprep.subr.bf16.mxu0 %v2515
          %2581 = vmatpush1.bf16.msra.mxu0 %v2514
          %2582 = vmatprep.subr.bf16.mxu0 %v2513
          %2583 = vmatpush1.bf16.msra.mxu0 %v2512
          %2584 = vmatprep.subr.bf16.mxu0 %v2511
          %2585 = vmatpush1.bf16.msra.mxu0 %v2510
          %2586 = vmatprep.subr.bf16.mxu0 %v2509
          %2587 = vmatpush1.bf16.msra.mxu0 %v2508
          %2588 = vmatprep.subr.bf16.mxu0 %v2539
          %2589 = vmatpush2.bf16.msra.mxu0 %v2538
          %2590 = vmatprep.subr.bf16.mxu0 %v2537
          %2591 = vmatpush2.bf16.msra.mxu0 %v2536
          %2592 = vmatprep.subr.bf16.mxu0 %v2535
          %2593 = vmatpush2.bf16.msra.mxu0 %v2534
          %2594 = vmatprep.subr.bf16.mxu0 %v2533
          %2595 = vmatpush2.bf16.msra.mxu0 %v2532
          %2596 = vmatprep.subr.bf16.mxu0 %v2531
          %2597 = vmatpush2.bf16.msra.mxu0 %v2530
          %2598 = vmatprep.subr.bf16.mxu0 %v2529
          %2599 = vmatpush2.bf16.msra.mxu0 %v2528
          %2600 = vmatprep.subr.bf16.mxu0 %v2527
          %2601 = vmatpush2.bf16.msra.mxu0 %v2526
          %2602 = vmatprep.subr.bf16.mxu0 %v2525
          %2603 = vmatpush2.bf16.msra.mxu0 %v2524
          %2604 = vmatprep.mubr.bf16.mxu0 %v2378
          %2605 = vmatmul.mubr.bf16.gmra.mxu0 %v2377
          %v2606 = vpop.f32.mrf.mxu0
          %v2607 = vadd.f32 0.0, %v2606
          %v2608 = vpop.f32.mrf.mxu0
          %v2609 = vadd.f32 0.0, %v2608
          %v2610 = vpop.f32.mrf.mxu0
          %v2611 = vpop.f32.mrf.mxu0
          %2612 = vdwg.mxu0
          %v2613 = vadd.f32 %v2367, %v2607
          %v2614 = vadd.f32 %v2369, %v2609
          %v2615 = vlaneseq
          %v2616 = vshrl.u32 %v2615, 7
          %v2617 = vsub.s32 3, %v2616
          %v2618 = vrot.slane %v704, %v2617
          %v2619 = vlaneseq
          %v2620 = vshrl.u32 %v2619, 7
          %v2621 = vsub.s32 3, %v2620
          %v2622 = vrot.slane %v705, %v2621
          %v2623 = vadd.f32 %v2613, %v2618
          %v2624 = vadd.f32 %v2614, %v2622
          %v2625 = vmax.f32 %v2623, 0.0
          %v2626 = vmax.f32 %v2624, 0.0
          %v2627 = vadd.f32 %v2625, %v2626
          %2628 = vadd.xlane.f32.xlu0 %v2627
          %v2629 = vpop.xlane.xlu0 %2628
          %v2630 = vmul.f32 %v2629, %v1864
          %v2631 = vsub.f32 %v2625, %v2630
          %v2632 = vsub.f32 %v2626, %v2630
          %v2633 = vmul.f32 %v2631, %v2631
          %v2634 = vmul.f32 %v2632, %v2632
          %v2635 = vadd.f32 %v2633, %v2634
          %2636 = vadd.xlane.f32.xlu0 %v2635
          %v2637 = vpop.xlane.xlu0 %2636
          %v2638 = vmul.f32 %v2637, %v1864
          %v2639 = vadd.f32 %v2638, 1e-05
          %v2640 = vrsqrt.pop %v2639
          %v2641 = vmul.f32 %v2631, %v2640
          %v2642 = vmul.f32 %v2632, %v2640
          %v2643 = vlaneseq
          %v2644 = vshrl.u32 %v2643, 7
          %v2645 = vsub.s32 4, %v2644
          %v2646 = vrot.slane %v704, %v2645
          %v2647 = vlaneseq
          %v2648 = vshrl.u32 %v2647, 7
          %v2649 = vsub.s32 4, %v2648
          %v2650 = vrot.slane %v705, %v2649
          %v2651 = vmul.f32 %v2641, %v2646
          %v2652 = vmul.f32 %v2642, %v2650
          %v2653 = vlaneseq
          %v2654 = vshrl.u32 %v2653, 7
          %v2655 = vsub.s32 5, %v2654
          %v2656 = vrot.slane %v704, %v2655
          %v2657 = vlaneseq
          %v2658 = vshrl.u32 %v2657, 7
          %v2659 = vsub.s32 5, %v2658
          %v2660 = vrot.slane %v705, %v2659
          %v2661 = vadd.f32 %v2651, %v2656
          %v2662 = vadd.f32 %v2652, %v2660
          %v2663 = vlaneseq
          %v2664 = vshrl.u32 %v2663, 7
          %v2665 = vsub.s32 6, %v2664
          %v2666 = vrot.slane %v704, %v2665
          %v2667 = vlaneseq
          %v2668 = vshrl.u32 %v2667, 7
          %v2669 = vsub.s32 6, %v2668
          %v2670 = vrot.slane %v705, %v2669
          %v2671 = vmul.f32 %v2661, %v2666
          %v2672 = vmul.f32 %v2662, %v2670
          %v2673 = vadd.f32 %v2671, %v2672
          %2674 = vadd.xlane.f32.xlu0 %v2673
          %v2675 = vpop.xlane.xlu0 %2674
          %v2676 = vlaneseq
          %v2677 = vshrl.u32 %v2676, 7
          %v2678 = vsub.s32 7, %v2677
          %v2679 = vrot.slane %v704, %v2678
          %v2680 = vadd.f32 %v2675, %v2679
          %v2681 = vmul.f32 %v2680, %v695
          %v2682 = vld [vmem:[%s679] sm:$0xff]
          %v2683 = vrot.slane %v2682, 7
          %v2684 = vmul.f32 %v2683, %v700
          %v2685 = vrot.slane %v2682, 1
          %v2686 = vmul.f32 %v2685, %v703
          %v2687 = vld [vmem:[%s10] sm:$0xff]
          %v2688 = vld [vmem:[%s10 + $0x8] sm:$0xf]
          %v2689 = vld [vmem:[#allocation14] sm:$0xff]
          %v2690 = vld [vmem:[#allocation14 + $0x8] sm:$0xf]
          %2692 = vset.pattern.permute.xlu0 0
          %2693 = vperm.xlu0 %2692, %v2684
          %v2694 = vpop.permute.xlu0 %2693
          %v2698 = vlaneseq
          %v2699 = vshrl.u32 %v2698, 7
          %v2700 = vsub.s32 0, %v2699
          %v2701 = vrot.slane %v2687, %v2700
          %v2702 = vlaneseq
          %v2703 = vshrl.u32 %v2702, 7
          %v2704 = vsub.s32 4, %v2703
          %v2705 = vrot.slane %v2687, %v2704
          %v2706 = vlaneseq
          %v2707 = vshrl.u32 %v2706, 7
          %v2708 = vsub.s32 0, %v2707
          %v2709 = vrot.slane %v2688, %v2708
          %v2713 = vlaneseq
          %v2714 = vshrl.u32 %v2713, 7
          %v2715 = vsub.s32 0, %v2714
          %v2716 = vrot.slane %v2701, %v2715
          %v2717 = vlaneseq
          %v2718 = vshrl.u32 %v2717, 7
          %v2719 = vsub.s32 0, %v2718
          %v2720 = vrot.slane %v2705, %v2719
          %v2721 = vlaneseq
          %v2722 = vshrl.u32 %v2721, 7
          %v2723 = vsub.s32 0, %v2722
          %v2724 = vrot.slane %v2709, %v2723
          %v2725 = vmul.f32 %v2694, %v2716
          %v2726 = vmul.f32 %v2694, %v2720
          %v2727 = vmul.f32 %v2694, %v2724
          %2729 = vset.pattern.permute.xlu0 0
          %2730 = vperm.xlu0 %2729, %v2682
          %v2731 = vpop.permute.xlu0 %2730
          %v2733 = vlaneseq
          %v2734 = vshrl.u32 %v2733, 7
          %v2735 = vsub.s32 1, %v2734
          %v2736 = vrot.slane %v2687, %v2735
          %v2737 = vlaneseq
          %v2738 = vshrl.u32 %v2737, 7
          %v2739 = vsub.s32 5, %v2738
          %v2740 = vrot.slane %v2687, %v2739
          %v2741 = vlaneseq
          %v2742 = vshrl.u32 %v2741, 7
          %v2743 = vsub.s32 1, %v2742
          %v2744 = vrot.slane %v2688, %v2743
          %v2748 = vlaneseq
          %v2749 = vshrl.u32 %v2748, 7
          %v2750 = vsub.s32 1, %v2749
          %v2751 = vrot.slane %v2736, %v2750
          %v2752 = vlaneseq
          %v2753 = vshrl.u32 %v2752, 7
          %v2754 = vsub.s32 1, %v2753
          %v2755 = vrot.slane %v2740, %v2754
          %v2756 = vlaneseq
          %v2757 = vshrl.u32 %v2756, 7
          %v2758 = vsub.s32 1, %v2757
          %v2759 = vrot.slane %v2744, %v2758
          %v2760 = vmul.f32 %v2731, %v2751
          %v2761 = vmul.f32 %v2731, %v2755
          %v2762 = vmul.f32 %v2731, %v2759
          %v2763 = vadd.f32 %v2725, %v2760
          %v2764 = vadd.f32 %v2726, %v2761
          %v2765 = vadd.f32 %v2727, %v2762
          %2767 = vset.pattern.permute.xlu0 0
          %2768 = vperm.xlu0 %2767, %v2686
          %v2769 = vpop.permute.xlu0 %2768
          %v2771 = vlaneseq
          %v2772 = vshrl.u32 %v2771, 7
          %v2773 = vsub.s32 2, %v2772
          %v2774 = vrot.slane %v2687, %v2773
          %v2775 = vlaneseq
          %v2776 = vshrl.u32 %v2775, 7
          %v2777 = vsub.s32 6, %v2776
          %v2778 = vrot.slane %v2687, %v2777
          %v2779 = vlaneseq
          %v2780 = vshrl.u32 %v2779, 7
          %v2781 = vsub.s32 2, %v2780
          %v2782 = vrot.slane %v2688, %v2781
          %v2786 = vlaneseq
          %v2787 = vshrl.u32 %v2786, 7
          %v2788 = vsub.s32 2, %v2787
          %v2789 = vrot.slane %v2774, %v2788
          %v2790 = vlaneseq
          %v2791 = vshrl.u32 %v2790, 7
          %v2792 = vsub.s32 2, %v2791
          %v2793 = vrot.slane %v2778, %v2792
          %v2794 = vlaneseq
          %v2795 = vshrl.u32 %v2794, 7
          %v2796 = vsub.s32 2, %v2795
          %v2797 = vrot.slane %v2782, %v2796
          %v2798 = vmul.f32 %v2769, %v2789
          %v2799 = vmul.f32 %v2769, %v2793
          %v2800 = vmul.f32 %v2769, %v2797
          %v2801 = vadd.f32 %v2763, %v2798
          %v2802 = vadd.f32 %v2764, %v2799
          %v2803 = vadd.f32 %v2765, %v2800
          %v2804 = vlaneseq
          %v2805 = vshrl.u32 %v2804, 7
          %v2806 = vsub.s32 3, %v2805
          %v2807 = vrot.slane %v2687, %v2806
          %v2808 = vlaneseq
          %v2809 = vshrl.u32 %v2808, 7
          %v2810 = vsub.s32 7, %v2809
          %v2811 = vrot.slane %v2687, %v2810
          %v2812 = vlaneseq
          %v2813 = vshrl.u32 %v2812, 7
          %v2814 = vsub.s32 3, %v2813
          %v2815 = vrot.slane %v2688, %v2814
          %v2819 = vlaneseq
          %v2820 = vshrl.u32 %v2819, 7
          %v2821 = vsub.s32 3, %v2820
          %v2822 = vrot.slane %v2807, %v2821
          %v2823 = vlaneseq
          %v2824 = vshrl.u32 %v2823, 7
          %v2825 = vsub.s32 3, %v2824
          %v2826 = vrot.slane %v2811, %v2825
          %v2827 = vlaneseq
          %v2828 = vshrl.u32 %v2827, 7
          %v2829 = vsub.s32 3, %v2828
          %v2830 = vrot.slane %v2815, %v2829
          %v2831 = vadd.f32 %v2801, %v2822
          %v2832 = vadd.f32 %v2802, %v2826
          %v2833 = vadd.f32 %v2803, %v2830
          %v2834 = vadd.f32 %v692, %v2831
          %v2835 = vadd.f32 %v693, %v2832
          %v2836 = vadd.f32 %v694, %v2833
          %v2837 = vld [vmem:[#allocation12] sm:$0xff]
          %v2838 = vld [vmem:[#allocation12 + $0x8] sm:$0xff]
          %v2839 = vmul.f32 %v2834, %v709
          %v2840 = vmul.f32 %v2835, %v709
          %v2841 = vmul.f32 %v2836, %v709
          %v2842 = vrot.slane %v2839, 7
          %v2843 = vrot.slane %v2840, 7
          %v2844 = vrot.slane %v2841, 7
          %v2845 = vmul.f32 %v2842, %v700
          %v2846 = vmul.f32 %v2843, %v700
          %v2847 = vmul.f32 %v2844, %v700
          %v2848 = vpack.c.bf16 %v2845, %v2845
          %v2849 = vpack.c.bf16 %v2846, %v2846
          %v2850 = vpack.c.bf16 %v2847, %v2847
          %v2851 = vld [vmem:[#allocation9] sm:$0xff]
          %v2852 = vld [vmem:[#allocation9 + $0x8] sm:$0xff]
          %v2853 = vld [vmem:[#allocation9 + $0x10] sm:$0xff]
          %v2854 = vld [vmem:[#allocation9 + $0x18] sm:$0xff]
          %v2855 = vld [vmem:[#allocation9 + $0x20] sm:$0xff]
          %v2856 = vld [vmem:[#allocation9 + $0x28] sm:$0xff]
          %v2857 = vld [vmem:[#allocation9 + $0x30] sm:$0xff]
          %v2858 = vld [vmem:[#allocation9 + $0x38] sm:$0xff]
          %v2859 = vld [vmem:[#allocation9 + $0x40] sm:$0xff]
          %v2860 = vld [vmem:[#allocation9 + $0x48] sm:$0xff]
          %v2861 = vld [vmem:[#allocation9 + $0x50] sm:$0xff]
          %v2862 = vld [vmem:[#allocation9 + $0x58] sm:$0xff]
          %v2863 = vld [vmem:[#allocation9 + $0x60] sm:$0xff]
          %v2864 = vld [vmem:[#allocation9 + $0x68] sm:$0xff]
          %v2865 = vld [vmem:[#allocation9 + $0x70] sm:$0xff]
          %v2866 = vld [vmem:[#allocation9 + $0x78] sm:$0xff]
          %v2867 = vld [vmem:[#allocation9 + $0x80] sm:$0xff]
          %v2868 = vld [vmem:[#allocation9 + $0x88] sm:$0xff]
          %v2869 = vld [vmem:[#allocation9 + $0x90] sm:$0xff]
          %v2870 = vld [vmem:[#allocation9 + $0x98] sm:$0xff]
          %v2871 = vld [vmem:[#allocation9 + $0xa0] sm:$0xff]
          %v2872 = vld [vmem:[#allocation9 + $0xa8] sm:$0xff]
          %v2873 = vld [vmem:[#allocation9 + $0xb0] sm:$0xff]
          %v2874 = vld [vmem:[#allocation9 + $0xb8] sm:$0xff]
          %v2875 = vld [vmem:[#allocation9 + $0xc0] sm:$0xff]
          %v2876 = vld [vmem:[#allocation9 + $0xc8] sm:$0xff]
          %v2877 = vld [vmem:[#allocation9 + $0xd0] sm:$0xff]
          %v2878 = vld [vmem:[#allocation9 + $0xd8] sm:$0xff]
          %v2879 = vld [vmem:[#allocation9 + $0xe0] sm:$0xff]
          %v2880 = vld [vmem:[#allocation9 + $0xe8] sm:$0xff]
          %v2881 = vld [vmem:[#allocation9 + $0xf0] sm:$0xff]
          %v2882 = vld [vmem:[#allocation9 + $0xf8] sm:$0xff]
          %v2883 = vld [vmem:[#allocation9 + $0x100] sm:$0xff]
          %v2884 = vld [vmem:[#allocation9 + $0x108] sm:$0xff]
          %v2885 = vld [vmem:[#allocation9 + $0x110] sm:$0xff]
          %v2886 = vld [vmem:[#allocation9 + $0x118] sm:$0xff]
          %v2887 = vld [vmem:[#allocation9 + $0x120] sm:$0xff]
          %v2888 = vld [vmem:[#allocation9 + $0x128] sm:$0xff]
          %v2889 = vld [vmem:[#allocation9 + $0x130] sm:$0xff]
          %v2890 = vld [vmem:[#allocation9 + $0x138] sm:$0xff]
          %v2891 = vld [vmem:[#allocation9 + $0x140] sm:$0xff]
          %v2892 = vld [vmem:[#allocation9 + $0x148] sm:$0xff]
          %v2893 = vld [vmem:[#allocation9 + $0x150] sm:$0xff]
          %v2894 = vld [vmem:[#allocation9 + $0x158] sm:$0xff]
          %v2895 = vld [vmem:[#allocation9 + $0x160] sm:$0xff]
          %v2896 = vld [vmem:[#allocation9 + $0x168] sm:$0xff]
          %v2897 = vld [vmem:[#allocation9 + $0x170] sm:$0xff]
          %v2898 = vld [vmem:[#allocation9 + $0x178] sm:$0xff]
          %v2899 = vpack.c.bf16 %v2839, %v2839
          %v2900 = vpack.c.bf16 %v2840, %v2840
          %v2901 = vpack.c.bf16 %v2841, %v2841
          %s2902 = scalar_lea.vmem [#allocation9], 384
          %v2903 = vld [vmem:[%s2902] sm:$0xff]
          %v2904 = vld [vmem:[%s2902 + $0x8] sm:$0xff]
          %v2905 = vld [vmem:[%s2902 + $0x10] sm:$0xff]
          %v2906 = vld [vmem:[%s2902 + $0x18] sm:$0xff]
          %v2907 = vld [vmem:[%s2902 + $0x20] sm:$0xff]
          %v2908 = vld [vmem:[%s2902 + $0x28] sm:$0xff]
          %v2909 = vld [vmem:[%s2902 + $0x30] sm:$0xff]
          %v2910 = vld [vmem:[%s2902 + $0x38] sm:$0xff]
          %v2911 = vld [vmem:[%s2902 + $0x40] sm:$0xff]
          %v2912 = vld [vmem:[%s2902 + $0x48] sm:$0xff]
          %v2913 = vld [vmem:[%s2902 + $0x50] sm:$0xff]
          %v2914 = vld [vmem:[%s2902 + $0x58] sm:$0xff]
          %v2915 = vld [vmem:[%s2902 + $0x60] sm:$0xff]
          %v2916 = vld [vmem:[%s2902 + $0x68] sm:$0xff]
          %v2917 = vld [vmem:[%s2902 + $0x70] sm:$0xff]
          %v2918 = vld [vmem:[%s2902 + $0x78] sm:$0xff]
          %v2919 = vld [vmem:[%s2902 + $0x80] sm:$0xff]
          %v2920 = vld [vmem:[%s2902 + $0x88] sm:$0xff]
          %v2921 = vld [vmem:[%s2902 + $0x90] sm:$0xff]
          %v2922 = vld [vmem:[%s2902 + $0x98] sm:$0xff]
          %v2923 = vld [vmem:[%s2902 + $0xa0] sm:$0xff]
          %v2924 = vld [vmem:[%s2902 + $0xa8] sm:$0xff]
          %v2925 = vld [vmem:[%s2902 + $0xb0] sm:$0xff]
          %v2926 = vld [vmem:[%s2902 + $0xb8] sm:$0xff]
          %v2927 = vld [vmem:[%s2902 + $0xc0] sm:$0xff]
          %v2928 = vld [vmem:[%s2902 + $0xc8] sm:$0xff]
          %v2929 = vld [vmem:[%s2902 + $0xd0] sm:$0xff]
          %v2930 = vld [vmem:[%s2902 + $0xd8] sm:$0xff]
          %v2931 = vld [vmem:[%s2902 + $0xe0] sm:$0xff]
          %v2932 = vld [vmem:[%s2902 + $0xe8] sm:$0xff]
          %v2933 = vld [vmem:[%s2902 + $0xf0] sm:$0xff]
          %v2934 = vld [vmem:[%s2902 + $0xf8] sm:$0xff]
          %v2935 = vld [vmem:[%s2902 + $0x100] sm:$0xff]
          %v2936 = vld [vmem:[%s2902 + $0x108] sm:$0xff]
          %v2937 = vld [vmem:[%s2902 + $0x110] sm:$0xff]
          %v2938 = vld [vmem:[%s2902 + $0x118] sm:$0xff]
          %v2939 = vld [vmem:[%s2902 + $0x120] sm:$0xff]
          %v2940 = vld [vmem:[%s2902 + $0x128] sm:$0xff]
          %v2941 = vld [vmem:[%s2902 + $0x130] sm:$0xff]
          %v2942 = vld [vmem:[%s2902 + $0x138] sm:$0xff]
          %v2943 = vld [vmem:[%s2902 + $0x140] sm:$0xff]
          %v2944 = vld [vmem:[%s2902 + $0x148] sm:$0xff]
          %v2945 = vld [vmem:[%s2902 + $0x150] sm:$0xff]
          %v2946 = vld [vmem:[%s2902 + $0x158] sm:$0xff]
          %v2947 = vld [vmem:[%s2902 + $0x160] sm:$0xff]
          %v2948 = vld [vmem:[%s2902 + $0x168] sm:$0xff]
          %v2949 = vld [vmem:[%s2902 + $0x170] sm:$0xff]
          %v2950 = vld [vmem:[%s2902 + $0x178] sm:$0xff]
          %v2999 = vunpack.c.l.b16 %v2903
          %v3000 = vunpack.c.h.b16 %v2903
          %v3001 = vunpack.c.l.b16 %v2904
          %v3002 = vunpack.c.h.b16 %v2904
          %v3003 = vunpack.c.l.b16 %v2905
          %v3004 = vunpack.c.h.b16 %v2905
          %v3005 = vunpack.c.l.b16 %v2906
          %v3006 = vunpack.c.h.b16 %v2906
          %v3007 = vunpack.c.l.b16 %v2907
          %v3008 = vunpack.c.h.b16 %v2907
          %v3009 = vunpack.c.l.b16 %v2908
          %v3010 = vunpack.c.h.b16 %v2908
          %v3011 = vunpack.c.l.b16 %v2909
          %v3012 = vunpack.c.h.b16 %v2909
          %v3013 = vunpack.c.l.b16 %v2910
          %v3014 = vunpack.c.h.b16 %v2910
          %v3015 = vunpack.c.l.b16 %v2911
          %v3016 = vunpack.c.h.b16 %v2911
          %v3017 = vunpack.c.l.b16 %v2912
          %v3018 = vunpack.c.h.b16 %v2912
          %v3019 = vunpack.c.l.b16 %v2913
          %v3020 = vunpack.c.h.b16 %v2913
          %v3021 = vunpack.c.l.b16 %v2914
          %v3022 = vunpack.c.h.b16 %v2914
          %v3023 = vunpack.c.l.b16 %v2915
          %v3024 = vunpack.c.h.b16 %v2915
          %v3025 = vunpack.c.l.b16 %v2916
          %v3026 = vunpack.c.h.b16 %v2916
          %v3027 = vunpack.c.l.b16 %v2917
          %v3028 = vunpack.c.h.b16 %v2917
          %v3029 = vunpack.c.l.b16 %v2918
          %v3030 = vunpack.c.h.b16 %v2918
          %v3031 = vunpack.c.l.b16 %v2919
          %v3032 = vunpack.c.h.b16 %v2919
          %v3033 = vunpack.c.l.b16 %v2920
          %v3034 = vunpack.c.h.b16 %v2920
          %v3035 = vunpack.c.l.b16 %v2921
          %v3036 = vunpack.c.h.b16 %v2921
          %v3037 = vunpack.c.l.b16 %v2922
          %v3038 = vunpack.c.h.b16 %v2922
          %v3039 = vunpack.c.l.b16 %v2923
          %v3040 = vunpack.c.h.b16 %v2923
          %v3041 = vunpack.c.l.b16 %v2924
          %v3042 = vunpack.c.h.b16 %v2924
          %v3043 = vunpack.c.l.b16 %v2925
          %v3044 = vunpack.c.h.b16 %v2925
          %v3045 = vunpack.c.l.b16 %v2926
          %v3046 = vunpack.c.h.b16 %v2926
          %v3047 = vunpack.c.l.b16 %v2927
          %v3048 = vunpack.c.h.b16 %v2927
          %v3049 = vunpack.c.l.b16 %v2928
          %v3050 = vunpack.c.h.b16 %v2928
          %v3051 = vunpack.c.l.b16 %v2929
          %v3052 = vunpack.c.h.b16 %v2929
          %v3053 = vunpack.c.l.b16 %v2930
          %v3054 = vunpack.c.h.b16 %v2930
          %v3055 = vunpack.c.l.b16 %v2931
          %v3056 = vunpack.c.h.b16 %v2931
          %v3057 = vunpack.c.l.b16 %v2932
          %v3058 = vunpack.c.h.b16 %v2932
          %v3059 = vunpack.c.l.b16 %v2933
          %v3060 = vunpack.c.h.b16 %v2933
          %v3061 = vunpack.c.l.b16 %v2934
          %v3062 = vunpack.c.h.b16 %v2934
          %v3063 = vunpack.c.l.b16 %v2935
          %v3064 = vunpack.c.h.b16 %v2935
          %v3065 = vunpack.c.l.b16 %v2936
          %v3066 = vunpack.c.h.b16 %v2936
          %v3067 = vunpack.c.l.b16 %v2937
          %v3068 = vunpack.c.h.b16 %v2937
          %v3069 = vunpack.c.l.b16 %v2938
          %v3070 = vunpack.c.h.b16 %v2938
          %v3071 = vunpack.c.l.b16 %v2939
          %v3072 = vunpack.c.h.b16 %v2939
          %v3073 = vunpack.c.l.b16 %v2940
          %v3074 = vunpack.c.h.b16 %v2940
          %v3075 = vunpack.c.l.b16 %v2941
          %v3076 = vunpack.c.h.b16 %v2941
          %v3077 = vunpack.c.l.b16 %v2942
          %v3078 = vunpack.c.h.b16 %v2942
          %v3079 = vunpack.c.l.b16 %v2943
          %v3080 = vunpack.c.h.b16 %v2943
          %v3081 = vunpack.c.l.b16 %v2944
          %v3082 = vunpack.c.h.b16 %v2944
          %v3083 = vunpack.c.l.b16 %v2945
          %v3084 = vunpack.c.h.b16 %v2945
          %v3085 = vunpack.c.l.b16 %v2946
          %v3086 = vunpack.c.h.b16 %v2946
          %v3087 = vunpack.c.l.b16 %v2947
          %v3088 = vunpack.c.h.b16 %v2947
          %v3089 = vunpack.c.l.b16 %v2948
          %v3090 = vunpack.c.h.b16 %v2948
          %v3091 = vunpack.c.l.b16 %v2949
          %v3092 = vunpack.c.h.b16 %v2949
          %v3093 = vunpack.c.l.b16 %v2950
          %v3094 = vunpack.c.h.b16 %v2950
          %v3095 = vpack.c.b16 %v3001, %v2999
          %v3096 = vpack.c.b16 %v3002, %v3000
          %v3097 = vpack.c.b16 %v3005, %v3003
          %v3098 = vpack.c.b16 %v3006, %v3004
          %v3099 = vpack.c.b16 %v3009, %v3007
          %v3100 = vpack.c.b16 %v3010, %v3008
          %v3101 = vpack.c.b16 %v3013, %v3011
          %v3102 = vpack.c.b16 %v3014, %v3012
          %v3103 = vpack.c.b16 %v3017, %v3015
          %v3104 = vpack.c.b16 %v3018, %v3016
          %v3105 = vpack.c.b16 %v3021, %v3019
          %v3106 = vpack.c.b16 %v3022, %v3020
          %v3107 = vpack.c.b16 %v3025, %v3023
          %v3108 = vpack.c.b16 %v3026, %v3024
          %v3109 = vpack.c.b16 %v3029, %v3027
          %v3110 = vpack.c.b16 %v3030, %v3028
          %v3111 = vpack.c.b16 %v3033, %v3031
          %v3112 = vpack.c.b16 %v3034, %v3032
          %v3113 = vpack.c.b16 %v3037, %v3035
          %v3114 = vpack.c.b16 %v3038, %v3036
          %v3115 = vpack.c.b16 %v3041, %v3039
          %v3116 = vpack.c.b16 %v3042, %v3040
          %v3117 = vpack.c.b16 %v3045, %v3043
          %v3118 = vpack.c.b16 %v3046, %v3044
          %v3119 = vpack.c.b16 %v3049, %v3047
          %v3120 = vpack.c.b16 %v3050, %v3048
          %v3121 = vpack.c.b16 %v3053, %v3051
          %v3122 = vpack.c.b16 %v3054, %v3052
          %v3123 = vpack.c.b16 %v3057, %v3055
          %v3124 = vpack.c.b16 %v3058, %v3056
          %v3125 = vpack.c.b16 %v3061, %v3059
          %v3126 = vpack.c.b16 %v3062, %v3060
          %v3127 = vpack.c.b16 %v3065, %v3063
          %v3128 = vpack.c.b16 %v3066, %v3064
          %v3129 = vpack.c.b16 %v3069, %v3067
          %v3130 = vpack.c.b16 %v3070, %v3068
          %v3131 = vpack.c.b16 %v3073, %v3071
          %v3132 = vpack.c.b16 %v3074, %v3072
          %v3133 = vpack.c.b16 %v3077, %v3075
          %v3134 = vpack.c.b16 %v3078, %v3076
          %v3135 = vpack.c.b16 %v3081, %v3079
          %v3136 = vpack.c.b16 %v3082, %v3080
          %v3137 = vpack.c.b16 %v3085, %v3083
          %v3138 = vpack.c.b16 %v3086, %v3084
          %v3139 = vpack.c.b16 %v3089, %v3087
          %v3140 = vpack.c.b16 %v3090, %v3088
          %v3141 = vpack.c.b16 %v3093, %v3091
          %v3142 = vpack.c.b16 %v3094, %v3092
          %3191 = vmatprep.subr.bf16.mxu0 %v3110
          %3192 = vmatpush1.bf16.msra.mxu0 %v3109
          %3193 = vmatprep.subr.bf16.mxu0 %v3108
          %3194 = vmatpush1.bf16.msra.mxu0 %v3107
          %3195 = vmatprep.subr.bf16.mxu0 %v3106
          %3196 = vmatpush1.bf16.msra.mxu0 %v3105
          %3197 = vmatprep.subr.bf16.mxu0 %v3104
          %3198 = vmatpush1.bf16.msra.mxu0 %v3103
          %3199 = vmatprep.subr.bf16.mxu0 %v3102
          %3200 = vmatpush1.bf16.msra.mxu0 %v3101
          %3201 = vmatprep.subr.bf16.mxu0 %v3100
          %3202 = vmatpush1.bf16.msra.mxu0 %v3099
          %3203 = vmatprep.subr.bf16.mxu0 %v3098
          %3204 = vmatpush1.bf16.msra.mxu0 %v3097
          %3205 = vmatprep.subr.bf16.mxu0 %v3096
          %3206 = vmatpush1.bf16.msra.mxu0 %v3095
          %3207 = vmatprep.subr.bf16.mxu0 %v3126
          %3208 = vmatpush2.bf16.msra.mxu0 %v3125
          %3209 = vmatprep.subr.bf16.mxu0 %v3124
          %3210 = vmatpush2.bf16.msra.mxu0 %v3123
          %3211 = vmatprep.subr.bf16.mxu0 %v3122
          %3212 = vmatpush2.bf16.msra.mxu0 %v3121
          %3213 = vmatprep.subr.bf16.mxu0 %v3120
          %3214 = vmatpush2.bf16.msra.mxu0 %v3119
          %3215 = vmatprep.subr.bf16.mxu0 %v3118
          %3216 = vmatpush2.bf16.msra.mxu0 %v3117
          %3217 = vmatprep.subr.bf16.mxu0 %v3116
          %3218 = vmatpush2.bf16.msra.mxu0 %v3115
          %3219 = vmatprep.subr.bf16.mxu0 %v3114
          %3220 = vmatpush2.bf16.msra.mxu0 %v3113
          %3221 = vmatprep.subr.bf16.mxu0 %v3112
          %3222 = vmatpush2.bf16.msra.mxu0 %v3111
          %3223 = vmatprep.mubr.bf16.mxu0 %v2900
          %3224 = vmatmul.mubr.bf16.gmra.mxu0 %v2899
          %v3225 = vpop.f32.mrf.mxu0
          %v3226 = vadd.f32 0.0, %v3225
          %v3227 = vpop.f32.mrf.mxu0
          %v3228 = vadd.f32 0.0, %v3227
          %v3229 = vpop.f32.mrf.mxu0
          %v3230 = vpop.f32.mrf.mxu0
          %3231 = vdwg.mxu0
          %3232 = vmatprep.subr.bf16.mxu0 %v3142
          %3233 = vmatpush1.bf16.msra.mxu0 %v3141
          %3234 = vmatprep.subr.bf16.mxu0 %v3140
          %3235 = vmatpush1.bf16.msra.mxu0 %v3139
          %3236 = vmatprep.subr.bf16.mxu0 %v3138
          %3237 = vmatpush1.bf16.msra.mxu0 %v3137
          %3238 = vmatprep.subr.bf16.mxu0 %v3136
          %3239 = vmatpush1.bf16.msra.mxu0 %v3135
          %3240 = vmatprep.subr.bf16.mxu0 %v3134
          %3241 = vmatpush1.bf16.msra.mxu0 %v3133
          %3242 = vmatprep.subr.bf16.mxu0 %v3132
          %3243 = vmatpush1.bf16.msra.mxu0 %v3131
          %3244 = vmatprep.subr.bf16.mxu0 %v3130
          %3245 = vmatpush1.bf16.msra.mxu0 %v3129
          %3246 = vmatprep.subr.bf16.mxu0 %v3128
          %3247 = vmatpush1.bf16.msra.mxu0 %v3127
          %3248 = vmatprep.subr.bf16.mxu0 0
          %3249 = vmatpush2.bf16.msra.mxu0 0
          %3250 = vmatprep.subr.bf16.mxu0 0
          %3251 = vmatpush2.bf16.msra.mxu0 0
          %3252 = vmatprep.subr.bf16.mxu0 0
          %3253 = vmatpush2.bf16.msra.mxu0 0
          %3254 = vmatprep.subr.bf16.mxu0 0
          %3255 = vmatpush2.bf16.msra.mxu0 0
          %3256 = vmatprep.subr.bf16.mxu0 0
          %3257 = vmatpush2.bf16.msra.mxu0 0
          %3258 = vmatprep.subr.bf16.mxu0 0
          %3259 = vmatpush2.bf16.msra.mxu0 0
          %3260 = vmatprep.subr.bf16.mxu0 0
          %3261 = vmatpush2.bf16.msra.mxu0 0
          %3262 = vmatprep.subr.bf16.mxu0 0
          %3263 = vmatpush2.bf16.msra.mxu0 0
          %3264 = vmatprep.mubr.bf16.mxu0 0
          %3265 = vmatmul.mubr.bf16.gmra.mxu0 %v2901
          %v3266 = vpop.f32.mrf.mxu0
          %v3267 = vadd.f32 %v3226, %v3266
          %v3268 = vpop.f32.mrf.mxu0
          %v3269 = vadd.f32 %v3228, %v3268
          %v3270 = vpop.f32.mrf.mxu0
          %v3271 = vpop.f32.mrf.mxu0
          %3272 = vdwg.mxu0
          %v3321 = vunpack.c.l.b16 %v2851
          %v3322 = vunpack.c.h.b16 %v2851
          %v3323 = vunpack.c.l.b16 %v2852
          %v3324 = vunpack.c.h.b16 %v2852
          %v3325 = vunpack.c.l.b16 %v2853
          %v3326 = vunpack.c.h.b16 %v2853
          %v3327 = vunpack.c.l.b16 %v2854
          %v3328 = vunpack.c.h.b16 %v2854
          %v3329 = vunpack.c.l.b16 %v2855
          %v3330 = vunpack.c.h.b16 %v2855
          %v3331 = vunpack.c.l.b16 %v2856
          %v3332 = vunpack.c.h.b16 %v2856
          %v3333 = vunpack.c.l.b16 %v2857
          %v3334 = vunpack.c.h.b16 %v2857
          %v3335 = vunpack.c.l.b16 %v2858
          %v3336 = vunpack.c.h.b16 %v2858
          %v3337 = vunpack.c.l.b16 %v2859
          %v3338 = vunpack.c.h.b16 %v2859
          %v3339 = vunpack.c.l.b16 %v2860
          %v3340 = vunpack.c.h.b16 %v2860
          %v3341 = vunpack.c.l.b16 %v2861
          %v3342 = vunpack.c.h.b16 %v2861
          %v3343 = vunpack.c.l.b16 %v2862
          %v3344 = vunpack.c.h.b16 %v2862
          %v3345 = vunpack.c.l.b16 %v2863
          %v3346 = vunpack.c.h.b16 %v2863
          %v3347 = vunpack.c.l.b16 %v2864
          %v3348 = vunpack.c.h.b16 %v2864
          %v3349 = vunpack.c.l.b16 %v2865
          %v3350 = vunpack.c.h.b16 %v2865
          %v3351 = vunpack.c.l.b16 %v2866
          %v3352 = vunpack.c.h.b16 %v2866
          %v3353 = vunpack.c.l.b16 %v2867
          %v3354 = vunpack.c.h.b16 %v2867
          %v3355 = vunpack.c.l.b16 %v2868
          %v3356 = vunpack.c.h.b16 %v2868
          %v3357 = vunpack.c.l.b16 %v2869
          %v3358 = vunpack.c.h.b16 %v2869
          %v3359 = vunpack.c.l.b16 %v2870
          %v3360 = vunpack.c.h.b16 %v2870
          %v3361 = vunpack.c.l.b16 %v2871
          %v3362 = vunpack.c.h.b16 %v2871
          %v3363 = vunpack.c.l.b16 %v2872
          %v3364 = vunpack.c.h.b16 %v2872
          %v3365 = vunpack.c.l.b16 %v2873
          %v3366 = vunpack.c.h.b16 %v2873
          %v3367 = vunpack.c.l.b16 %v2874
          %v3368 = vunpack.c.h.b16 %v2874
          %v3369 = vunpack.c.l.b16 %v2875
          %v3370 = vunpack.c.h.b16 %v2875
          %v3371 = vunpack.c.l.b16 %v2876
          %v3372 = vunpack.c.h.b16 %v2876
          %v3373 = vunpack.c.l.b16 %v2877
          %v3374 = vunpack.c.h.b16 %v2877
          %v3375 = vunpack.c.l.b16 %v2878
          %v3376 = vunpack.c.h.b16 %v2878
          %v3377 = vunpack.c.l.b16 %v2879
          %v3378 = vunpack.c.h.b16 %v2879
          %v3379 = vunpack.c.l.b16 %v2880
          %v3380 = vunpack.c.h.b16 %v2880
          %v3381 = vunpack.c.l.b16 %v2881
          %v3382 = vunpack.c.h.b16 %v2881
          %v3383 = vunpack.c.l.b16 %v2882
          %v3384 = vunpack.c.h.b16 %v2882
          %v3385 = vunpack.c.l.b16 %v2883
          %v3386 = vunpack.c.h.b16 %v2883
          %v3387 = vunpack.c.l.b16 %v2884
          %v3388 = vunpack.c.h.b16 %v2884
          %v3389 = vunpack.c.l.b16 %v2885
          %v3390 = vunpack.c.h.b16 %v2885
          %v3391 = vunpack.c.l.b16 %v2886
          %v3392 = vunpack.c.h.b16 %v2886
          %v3393 = vunpack.c.l.b16 %v2887
          %v3394 = vunpack.c.h.b16 %v2887
          %v3395 = vunpack.c.l.b16 %v2888
          %v3396 = vunpack.c.h.b16 %v2888
          %v3397 = vunpack.c.l.b16 %v2889
          %v3398 = vunpack.c.h.b16 %v2889
          %v3399 = vunpack.c.l.b16 %v2890
          %v3400 = vunpack.c.h.b16 %v2890
          %v3401 = vunpack.c.l.b16 %v2891
          %v3402 = vunpack.c.h.b16 %v2891
          %v3403 = vunpack.c.l.b16 %v2892
          %v3404 = vunpack.c.h.b16 %v2892
          %v3405 = vunpack.c.l.b16 %v2893
          %v3406 = vunpack.c.h.b16 %v2893
          %v3407 = vunpack.c.l.b16 %v2894
          %v3408 = vunpack.c.h.b16 %v2894
          %v3409 = vunpack.c.l.b16 %v2895
          %v3410 = vunpack.c.h.b16 %v2895
          %v3411 = vunpack.c.l.b16 %v2896
          %v3412 = vunpack.c.h.b16 %v2896
          %v3413 = vunpack.c.l.b16 %v2897
          %v3414 = vunpack.c.h.b16 %v2897
          %v3415 = vunpack.c.l.b16 %v2898
          %v3416 = vunpack.c.h.b16 %v2898
          %v3417 = vpack.c.b16 %v3323, %v3321
          %v3418 = vpack.c.b16 %v3324, %v3322
          %v3419 = vpack.c.b16 %v3327, %v3325
          %v3420 = vpack.c.b16 %v3328, %v3326
          %v3421 = vpack.c.b16 %v3331, %v3329
          %v3422 = vpack.c.b16 %v3332, %v3330
          %v3423 = vpack.c.b16 %v3335, %v3333
          %v3424 = vpack.c.b16 %v3336, %v3334
          %v3425 = vpack.c.b16 %v3339, %v3337
          %v3426 = vpack.c.b16 %v3340, %v3338
          %v3427 = vpack.c.b16 %v3343, %v3341
          %v3428 = vpack.c.b16 %v3344, %v3342
          %v3429 = vpack.c.b16 %v3347, %v3345
          %v3430 = vpack.c.b16 %v3348, %v3346
          %v3431 = vpack.c.b16 %v3351, %v3349
          %v3432 = vpack.c.b16 %v3352, %v3350
          %v3433 = vpack.c.b16 %v3355, %v3353
          %v3434 = vpack.c.b16 %v3356, %v3354
          %v3435 = vpack.c.b16 %v3359, %v3357
          %v3436 = vpack.c.b16 %v3360, %v3358
          %v3437 = vpack.c.b16 %v3363, %v3361
          %v3438 = vpack.c.b16 %v3364, %v3362
          %v3439 = vpack.c.b16 %v3367, %v3365
          %v3440 = vpack.c.b16 %v3368, %v3366
          %v3441 = vpack.c.b16 %v3371, %v3369
          %v3442 = vpack.c.b16 %v3372, %v3370
          %v3443 = vpack.c.b16 %v3375, %v3373
          %v3444 = vpack.c.b16 %v3376, %v3374
          %v3445 = vpack.c.b16 %v3379, %v3377
          %v3446 = vpack.c.b16 %v3380, %v3378
          %v3447 = vpack.c.b16 %v3383, %v3381
          %v3448 = vpack.c.b16 %v3384, %v3382
          %v3449 = vpack.c.b16 %v3387, %v3385
          %v3450 = vpack.c.b16 %v3388, %v3386
          %v3451 = vpack.c.b16 %v3391, %v3389
          %v3452 = vpack.c.b16 %v3392, %v3390
          %v3453 = vpack.c.b16 %v3395, %v3393
          %v3454 = vpack.c.b16 %v3396, %v3394
          %v3455 = vpack.c.b16 %v3399, %v3397
          %v3456 = vpack.c.b16 %v3400, %v3398
          %v3457 = vpack.c.b16 %v3403, %v3401
          %v3458 = vpack.c.b16 %v3404, %v3402
          %v3459 = vpack.c.b16 %v3407, %v3405
          %v3460 = vpack.c.b16 %v3408, %v3406
          %v3461 = vpack.c.b16 %v3411, %v3409
          %v3462 = vpack.c.b16 %v3412, %v3410
          %v3463 = vpack.c.b16 %v3415, %v3413
          %v3464 = vpack.c.b16 %v3416, %v3414
          %3513 = vmatprep.subr.bf16.mxu0 %v3432
          %3514 = vmatpush1.bf16.msra.mxu0 %v3431
          %3515 = vmatprep.subr.bf16.mxu0 %v3430
          %3516 = vmatpush1.bf16.msra.mxu0 %v3429
          %3517 = vmatprep.subr.bf16.mxu0 %v3428
          %3518 = vmatpush1.bf16.msra.mxu0 %v3427
          %3519 = vmatprep.subr.bf16.mxu0 %v3426
          %3520 = vmatpush1.bf16.msra.mxu0 %v3425
          %3521 = vmatprep.subr.bf16.mxu0 %v3424
          %3522 = vmatpush1.bf16.msra.mxu0 %v3423
          %3523 = vmatprep.subr.bf16.mxu0 %v3422
          %3524 = vmatpush1.bf16.msra.mxu0 %v3421
          %3525 = vmatprep.subr.bf16.mxu0 %v3420
          %3526 = vmatpush1.bf16.msra.mxu0 %v3419
          %3527 = vmatprep.subr.bf16.mxu0 %v3418
          %3528 = vmatpush1.bf16.msra.mxu0 %v3417
          %3529 = vmatprep.subr.bf16.mxu0 %v3448
          %3530 = vmatpush2.bf16.msra.mxu0 %v3447
          %3531 = vmatprep.subr.bf16.mxu0 %v3446
          %3532 = vmatpush2.bf16.msra.mxu0 %v3445
          %3533 = vmatprep.subr.bf16.mxu0 %v3444
          %3534 = vmatpush2.bf16.msra.mxu0 %v3443
          %3535 = vmatprep.subr.bf16.mxu0 %v3442
          %3536 = vmatpush2.bf16.msra.mxu0 %v3441
          %3537 = vmatprep.subr.bf16.mxu0 %v3440
          %3538 = vmatpush2.bf16.msra.mxu0 %v3439
          %3539 = vmatprep.subr.bf16.mxu0 %v3438
          %3540 = vmatpush2.bf16.msra.mxu0 %v3437
          %3541 = vmatprep.subr.bf16.mxu0 %v3436
          %3542 = vmatpush2.bf16.msra.mxu0 %v3435
          %3543 = vmatprep.subr.bf16.mxu0 %v3434
          %3544 = vmatpush2.bf16.msra.mxu0 %v3433
          %3545 = vmatprep.mubr.bf16.mxu0 %v2849
          %3546 = vmatmul.mubr.bf16.gmra.mxu0 %v2848
          %v3547 = vpop.f32.mrf.mxu0
          %v3548 = vadd.f32 %v3267, %v3547
          %v3549 = vpop.f32.mrf.mxu0
          %v3550 = vadd.f32 %v3269, %v3549
          %v3551 = vpop.f32.mrf.mxu0
          %v3552 = vpop.f32.mrf.mxu0
          %3553 = vdwg.mxu0
          %3554 = vmatprep.subr.bf16.mxu0 %v3464
          %3555 = vmatpush1.bf16.msra.mxu0 %v3463
          %3556 = vmatprep.subr.bf16.mxu0 %v3462
          %3557 = vmatpush1.bf16.msra.mxu0 %v3461
          %3558 = vmatprep.subr.bf16.mxu0 %v3460
          %3559 = vmatpush1.bf16.msra.mxu0 %v3459
          %3560 = vmatprep.subr.bf16.mxu0 %v3458
          %3561 = vmatpush1.bf16.msra.mxu0 %v3457
          %3562 = vmatprep.subr.bf16.mxu0 %v3456
          %3563 = vmatpush1.bf16.msra.mxu0 %v3455
          %3564 = vmatprep.subr.bf16.mxu0 %v3454
          %3565 = vmatpush1.bf16.msra.mxu0 %v3453
          %3566 = vmatprep.subr.bf16.mxu0 %v3452
          %3567 = vmatpush1.bf16.msra.mxu0 %v3451
          %3568 = vmatprep.subr.bf16.mxu0 %v3450
          %3569 = vmatpush1.bf16.msra.mxu0 %v3449
          %3570 = vmatprep.subr.bf16.mxu0 0
          %3571 = vmatpush2.bf16.msra.mxu0 0
          %3572 = vmatprep.subr.bf16.mxu0 0
          %3573 = vmatpush2.bf16.msra.mxu0 0
          %3574 = vmatprep.subr.bf16.mxu0 0
          %3575 = vmatpush2.bf16.msra.mxu0 0
          %3576 = vmatprep.subr.bf16.mxu0 0
          %3577 = vmatpush2.bf16.msra.mxu0 0
          %3578 = vmatprep.subr.bf16.mxu0 0
          %3579 = vmatpush2.bf16.msra.mxu0 0
          %3580 = vmatprep.subr.bf16.mxu0 0
          %3581 = vmatpush2.bf16.msra.mxu0 0
          %3582 = vmatprep.subr.bf16.mxu0 0
          %3583 = vmatpush2.bf16.msra.mxu0 0
          %3584 = vmatprep.subr.bf16.mxu0 0
          %3585 = vmatpush2.bf16.msra.mxu0 0
          %3586 = vmatprep.mubr.bf16.mxu0 0
          %3587 = vmatmul.mubr.bf16.gmra.mxu0 %v2850
          %v3588 = vpop.f32.mrf.mxu0
          %v3589 = vadd.f32 %v3548, %v3588
          %v3590 = vpop.f32.mrf.mxu0
          %v3591 = vadd.f32 %v3550, %v3590
          %v3592 = vpop.f32.mrf.mxu0
          %v3593 = vpop.f32.mrf.mxu0
          %3594 = vdwg.mxu0
          %v3595 = vrot.slane %v2839, 1
          %v3596 = vrot.slane %v2840, 1
          %v3597 = vrot.slane %v2841, 1
          %v3598 = vmul.f32 %v3595, %v703
          %v3599 = vmul.f32 %v3596, %v703
          %v3600 = vmul.f32 %v3597, %v703
          %v3601 = vpack.c.bf16 %v3598, %v3598
          %v3602 = vpack.c.bf16 %v3599, %v3599
          %v3603 = vpack.c.bf16 %v3600, %v3600
          %s3604 = scalar_lea.vmem [#allocation9], 768
          %v3605 = vld [vmem:[%s3604] sm:$0xff]
          %v3606 = vld [vmem:[%s3604 + $0x8] sm:$0xff]
          %v3607 = vld [vmem:[%s3604 + $0x10] sm:$0xff]
          %v3608 = vld [vmem:[%s3604 + $0x18] sm:$0xff]
          %v3609 = vld [vmem:[%s3604 + $0x20] sm:$0xff]
          %v3610 = vld [vmem:[%s3604 + $0x28] sm:$0xff]
          %v3611 = vld [vmem:[%s3604 + $0x30] sm:$0xff]
          %v3612 = vld [vmem:[%s3604 + $0x38] sm:$0xff]
          %v3613 = vld [vmem:[%s3604 + $0x40] sm:$0xff]
          %v3614 = vld [vmem:[%s3604 + $0x48] sm:$0xff]
          %v3615 = vld [vmem:[%s3604 + $0x50] sm:$0xff]
          %v3616 = vld [vmem:[%s3604 + $0x58] sm:$0xff]
          %v3617 = vld [vmem:[%s3604 + $0x60] sm:$0xff]
          %v3618 = vld [vmem:[%s3604 + $0x68] sm:$0xff]
          %v3619 = vld [vmem:[%s3604 + $0x70] sm:$0xff]
          %v3620 = vld [vmem:[%s3604 + $0x78] sm:$0xff]
          %v3621 = vld [vmem:[%s3604 + $0x80] sm:$0xff]
          %v3622 = vld [vmem:[%s3604 + $0x88] sm:$0xff]
          %v3623 = vld [vmem:[%s3604 + $0x90] sm:$0xff]
          %v3624 = vld [vmem:[%s3604 + $0x98] sm:$0xff]
          %v3625 = vld [vmem:[%s3604 + $0xa0] sm:$0xff]
          %v3626 = vld [vmem:[%s3604 + $0xa8] sm:$0xff]
          %v3627 = vld [vmem:[%s3604 + $0xb0] sm:$0xff]
          %v3628 = vld [vmem:[%s3604 + $0xb8] sm:$0xff]
          %v3629 = vld [vmem:[%s3604 + $0xc0] sm:$0xff]
          %v3630 = vld [vmem:[%s3604 + $0xc8] sm:$0xff]
          %v3631 = vld [vmem:[%s3604 + $0xd0] sm:$0xff]
          %v3632 = vld [vmem:[%s3604 + $0xd8] sm:$0xff]
          %v3633 = vld [vmem:[%s3604 + $0xe0] sm:$0xff]
          %v3634 = vld [vmem:[%s3604 + $0xe8] sm:$0xff]
          %v3635 = vld [vmem:[%s3604 + $0xf0] sm:$0xff]
          %v3636 = vld [vmem:[%s3604 + $0xf8] sm:$0xff]
          %v3637 = vld [vmem:[%s3604 + $0x100] sm:$0xff]
          %v3638 = vld [vmem:[%s3604 + $0x108] sm:$0xff]
          %v3639 = vld [vmem:[%s3604 + $0x110] sm:$0xff]
          %v3640 = vld [vmem:[%s3604 + $0x118] sm:$0xff]
          %v3641 = vld [vmem:[%s3604 + $0x120] sm:$0xff]
          %v3642 = vld [vmem:[%s3604 + $0x128] sm:$0xff]
          %v3643 = vld [vmem:[%s3604 + $0x130] sm:$0xff]
          %v3644 = vld [vmem:[%s3604 + $0x138] sm:$0xff]
          %v3645 = vld [vmem:[%s3604 + $0x140] sm:$0xff]
          %v3646 = vld [vmem:[%s3604 + $0x148] sm:$0xff]
          %v3647 = vld [vmem:[%s3604 + $0x150] sm:$0xff]
          %v3648 = vld [vmem:[%s3604 + $0x158] sm:$0xff]
          %v3649 = vld [vmem:[%s3604 + $0x160] sm:$0xff]
          %v3650 = vld [vmem:[%s3604 + $0x168] sm:$0xff]
          %v3651 = vld [vmem:[%s3604 + $0x170] sm:$0xff]
          %v3652 = vld [vmem:[%s3604 + $0x178] sm:$0xff]
          %v3701 = vunpack.c.l.b16 %v3605
          %v3702 = vunpack.c.h.b16 %v3605
          %v3703 = vunpack.c.l.b16 %v3606
          %v3704 = vunpack.c.h.b16 %v3606
          %v3705 = vunpack.c.l.b16 %v3607
          %v3706 = vunpack.c.h.b16 %v3607
          %v3707 = vunpack.c.l.b16 %v3608
          %v3708 = vunpack.c.h.b16 %v3608
          %v3709 = vunpack.c.l.b16 %v3609
          %v3710 = vunpack.c.h.b16 %v3609
          %v3711 = vunpack.c.l.b16 %v3610
          %v3712 = vunpack.c.h.b16 %v3610
          %v3713 = vunpack.c.l.b16 %v3611
          %v3714 = vunpack.c.h.b16 %v3611
          %v3715 = vunpack.c.l.b16 %v3612
          %v3716 = vunpack.c.h.b16 %v3612
          %v3717 = vunpack.c.l.b16 %v3613
          %v3718 = vunpack.c.h.b16 %v3613
          %v3719 = vunpack.c.l.b16 %v3614
          %v3720 = vunpack.c.h.b16 %v3614
          %v3721 = vunpack.c.l.b16 %v3615
          %v3722 = vunpack.c.h.b16 %v3615
          %v3723 = vunpack.c.l.b16 %v3616
          %v3724 = vunpack.c.h.b16 %v3616
          %v3725 = vunpack.c.l.b16 %v3617
          %v3726 = vunpack.c.h.b16 %v3617
          %v3727 = vunpack.c.l.b16 %v3618
          %v3728 = vunpack.c.h.b16 %v3618
          %v3729 = vunpack.c.l.b16 %v3619
          %v3730 = vunpack.c.h.b16 %v3619
          %v3731 = vunpack.c.l.b16 %v3620
          %v3732 = vunpack.c.h.b16 %v3620
          %v3733 = vunpack.c.l.b16 %v3621
          %v3734 = vunpack.c.h.b16 %v3621
          %v3735 = vunpack.c.l.b16 %v3622
          %v3736 = vunpack.c.h.b16 %v3622
          %v3737 = vunpack.c.l.b16 %v3623
          %v3738 = vunpack.c.h.b16 %v3623
          %v3739 = vunpack.c.l.b16 %v3624
          %v3740 = vunpack.c.h.b16 %v3624
          %v3741 = vunpack.c.l.b16 %v3625
          %v3742 = vunpack.c.h.b16 %v3625
          %v3743 = vunpack.c.l.b16 %v3626
          %v3744 = vunpack.c.h.b16 %v3626
          %v3745 = vunpack.c.l.b16 %v3627
          %v3746 = vunpack.c.h.b16 %v3627
          %v3747 = vunpack.c.l.b16 %v3628
          %v3748 = vunpack.c.h.b16 %v3628
          %v3749 = vunpack.c.l.b16 %v3629
          %v3750 = vunpack.c.h.b16 %v3629
          %v3751 = vunpack.c.l.b16 %v3630
          %v3752 = vunpack.c.h.b16 %v3630
          %v3753 = vunpack.c.l.b16 %v3631
          %v3754 = vunpack.c.h.b16 %v3631
          %v3755 = vunpack.c.l.b16 %v3632
          %v3756 = vunpack.c.h.b16 %v3632
          %v3757 = vunpack.c.l.b16 %v3633
          %v3758 = vunpack.c.h.b16 %v3633
          %v3759 = vunpack.c.l.b16 %v3634
          %v3760 = vunpack.c.h.b16 %v3634
          %v3761 = vunpack.c.l.b16 %v3635
          %v3762 = vunpack.c.h.b16 %v3635
          %v3763 = vunpack.c.l.b16 %v3636
          %v3764 = vunpack.c.h.b16 %v3636
          %v3765 = vunpack.c.l.b16 %v3637
          %v3766 = vunpack.c.h.b16 %v3637
          %v3767 = vunpack.c.l.b16 %v3638
          %v3768 = vunpack.c.h.b16 %v3638
          %v3769 = vunpack.c.l.b16 %v3639
          %v3770 = vunpack.c.h.b16 %v3639
          %v3771 = vunpack.c.l.b16 %v3640
          %v3772 = vunpack.c.h.b16 %v3640
          %v3773 = vunpack.c.l.b16 %v3641
          %v3774 = vunpack.c.h.b16 %v3641
          %v3775 = vunpack.c.l.b16 %v3642
          %v3776 = vunpack.c.h.b16 %v3642
          %v3777 = vunpack.c.l.b16 %v3643
          %v3778 = vunpack.c.h.b16 %v3643
          %v3779 = vunpack.c.l.b16 %v3644
          %v3780 = vunpack.c.h.b16 %v3644
          %v3781 = vunpack.c.l.b16 %v3645
          %v3782 = vunpack.c.h.b16 %v3645
          %v3783 = vunpack.c.l.b16 %v3646
          %v3784 = vunpack.c.h.b16 %v3646
          %v3785 = vunpack.c.l.b16 %v3647
          %v3786 = vunpack.c.h.b16 %v3647
          %v3787 = vunpack.c.l.b16 %v3648
          %v3788 = vunpack.c.h.b16 %v3648
          %v3789 = vunpack.c.l.b16 %v3649
          %v3790 = vunpack.c.h.b16 %v3649
          %v3791 = vunpack.c.l.b16 %v3650
          %v3792 = vunpack.c.h.b16 %v3650
          %v3793 = vunpack.c.l.b16 %v3651
          %v3794 = vunpack.c.h.b16 %v3651
          %v3795 = vunpack.c.l.b16 %v3652
          %v3796 = vunpack.c.h.b16 %v3652
          %v3797 = vpack.c.b16 %v3703, %v3701
          %v3798 = vpack.c.b16 %v3704, %v3702
          %v3799 = vpack.c.b16 %v3707, %v3705
          %v3800 = vpack.c.b16 %v3708, %v3706
          %v3801 = vpack.c.b16 %v3711, %v3709
          %v3802 = vpack.c.b16 %v3712, %v3710
          %v3803 = vpack.c.b16 %v3715, %v3713
          %v3804 = vpack.c.b16 %v3716, %v3714
          %v3805 = vpack.c.b16 %v3719, %v3717
          %v3806 = vpack.c.b16 %v3720, %v3718
          %v3807 = vpack.c.b16 %v3723, %v3721
          %v3808 = vpack.c.b16 %v3724, %v3722
          %v3809 = vpack.c.b16 %v3727, %v3725
          %v3810 = vpack.c.b16 %v3728, %v3726
          %v3811 = vpack.c.b16 %v3731, %v3729
          %v3812 = vpack.c.b16 %v3732, %v3730
          %v3813 = vpack.c.b16 %v3735, %v3733
          %v3814 = vpack.c.b16 %v3736, %v3734
          %v3815 = vpack.c.b16 %v3739, %v3737
          %v3816 = vpack.c.b16 %v3740, %v3738
          %v3817 = vpack.c.b16 %v3743, %v3741
          %v3818 = vpack.c.b16 %v3744, %v3742
          %v3819 = vpack.c.b16 %v3747, %v3745
          %v3820 = vpack.c.b16 %v3748, %v3746
          %v3821 = vpack.c.b16 %v3751, %v3749
          %v3822 = vpack.c.b16 %v3752, %v3750
          %v3823 = vpack.c.b16 %v3755, %v3753
          %v3824 = vpack.c.b16 %v3756, %v3754
          %v3825 = vpack.c.b16 %v3759, %v3757
          %v3826 = vpack.c.b16 %v3760, %v3758
          %v3827 = vpack.c.b16 %v3763, %v3761
          %v3828 = vpack.c.b16 %v3764, %v3762
          %v3829 = vpack.c.b16 %v3767, %v3765
          %v3830 = vpack.c.b16 %v3768, %v3766
          %v3831 = vpack.c.b16 %v3771, %v3769
          %v3832 = vpack.c.b16 %v3772, %v3770
          %v3833 = vpack.c.b16 %v3775, %v3773
          %v3834 = vpack.c.b16 %v3776, %v3774
          %v3835 = vpack.c.b16 %v3779, %v3777
          %v3836 = vpack.c.b16 %v3780, %v3778
          %v3837 = vpack.c.b16 %v3783, %v3781
          %v3838 = vpack.c.b16 %v3784, %v3782
          %v3839 = vpack.c.b16 %v3787, %v3785
          %v3840 = vpack.c.b16 %v3788, %v3786
          %v3841 = vpack.c.b16 %v3791, %v3789
          %v3842 = vpack.c.b16 %v3792, %v3790
          %v3843 = vpack.c.b16 %v3795, %v3793
          %v3844 = vpack.c.b16 %v3796, %v3794
          %3893 = vmatprep.subr.bf16.mxu0 %v3812
          %3894 = vmatpush1.bf16.msra.mxu0 %v3811
          %3895 = vmatprep.subr.bf16.mxu0 %v3810
          %3896 = vmatpush1.bf16.msra.mxu0 %v3809
          %3897 = vmatprep.subr.bf16.mxu0 %v3808
          %3898 = vmatpush1.bf16.msra.mxu0 %v3807
          %3899 = vmatprep.subr.bf16.mxu0 %v3806
          %3900 = vmatpush1.bf16.msra.mxu0 %v3805
          %3901 = vmatprep.subr.bf16.mxu0 %v3804
          %3902 = vmatpush1.bf16.msra.mxu0 %v3803
          %3903 = vmatprep.subr.bf16.mxu0 %v3802
          %3904 = vmatpush1.bf16.msra.mxu0 %v3801
          %3905 = vmatprep.subr.bf16.mxu0 %v3800
          %3906 = vmatpush1.bf16.msra.mxu0 %v3799
          %3907 = vmatprep.subr.bf16.mxu0 %v3798
          %3908 = vmatpush1.bf16.msra.mxu0 %v3797
          %3909 = vmatprep.subr.bf16.mxu0 %v3828
          %3910 = vmatpush2.bf16.msra.mxu0 %v3827
          %3911 = vmatprep.subr.bf16.mxu0 %v3826
          %3912 = vmatpush2.bf16.msra.mxu0 %v3825
          %3913 = vmatprep.subr.bf16.mxu0 %v3824
          %3914 = vmatpush2.bf16.msra.mxu0 %v3823
          %3915 = vmatprep.subr.bf16.mxu0 %v3822
          %3916 = vmatpush2.bf16.msra.mxu0 %v3821
          %3917 = vmatprep.subr.bf16.mxu0 %v3820
          %3918 = vmatpush2.bf16.msra.mxu0 %v3819
          %3919 = vmatprep.subr.bf16.mxu0 %v3818
          %3920 = vmatpush2.bf16.msra.mxu0 %v3817
          %3921 = vmatprep.subr.bf16.mxu0 %v3816
          %3922 = vmatpush2.bf16.msra.mxu0 %v3815
          %3923 = vmatprep.subr.bf16.mxu0 %v3814
          %3924 = vmatpush2.bf16.msra.mxu0 %v3813
          %3925 = vmatprep.mubr.bf16.mxu0 %v3602
          %3926 = vmatmul.mubr.bf16.gmra.mxu0 %v3601
          %v3927 = vpop.f32.mrf.mxu0
          %v3928 = vadd.f32 0.0, %v3927
          %v3929 = vpop.f32.mrf.mxu0
          %v3930 = vadd.f32 0.0, %v3929
          %v3931 = vpop.f32.mrf.mxu0
          %v3932 = vpop.f32.mrf.mxu0
          %3933 = vdwg.mxu0
          %3934 = vmatprep.subr.bf16.mxu0 %v3844
          %3935 = vmatpush1.bf16.msra.mxu0 %v3843
          %3936 = vmatprep.subr.bf16.mxu0 %v3842
          %3937 = vmatpush1.bf16.msra.mxu0 %v3841
          %3938 = vmatprep.subr.bf16.mxu0 %v3840
          %3939 = vmatpush1.bf16.msra.mxu0 %v3839
          %3940 = vmatprep.subr.bf16.mxu0 %v3838
          %3941 = vmatpush1.bf16.msra.mxu0 %v3837
          %3942 = vmatprep.subr.bf16.mxu0 %v3836
          %3943 = vmatpush1.bf16.msra.mxu0 %v3835
          %3944 = vmatprep.subr.bf16.mxu0 %v3834
          %3945 = vmatpush1.bf16.msra.mxu0 %v3833
          %3946 = vmatprep.subr.bf16.mxu0 %v3832
          %3947 = vmatpush1.bf16.msra.mxu0 %v3831
          %3948 = vmatprep.subr.bf16.mxu0 %v3830
          %3949 = vmatpush1.bf16.msra.mxu0 %v3829
          %3950 = vmatprep.subr.bf16.mxu0 0
          %3951 = vmatpush2.bf16.msra.mxu0 0
          %3952 = vmatprep.subr.bf16.mxu0 0
          %3953 = vmatpush2.bf16.msra.mxu0 0
          %3954 = vmatprep.subr.bf16.mxu0 0
          %3955 = vmatpush2.bf16.msra.mxu0 0
          %3956 = vmatprep.subr.bf16.mxu0 0
          %3957 = vmatpush2.bf16.msra.mxu0 0
          %3958 = vmatprep.subr.bf16.mxu0 0
          %3959 = vmatpush2.bf16.msra.mxu0 0
          %3960 = vmatprep.subr.bf16.mxu0 0
          %3961 = vmatpush2.bf16.msra.mxu0 0
          %3962 = vmatprep.subr.bf16.mxu0 0
          %3963 = vmatpush2.bf16.msra.mxu0 0
          %3964 = vmatprep.subr.bf16.mxu0 0
          %3965 = vmatpush2.bf16.msra.mxu0 0
          %3966 = vmatprep.mubr.bf16.mxu0 0
          %3967 = vmatmul.mubr.bf16.gmra.mxu0 %v3603
          %v3968 = vpop.f32.mrf.mxu0
          %v3969 = vadd.f32 %v3928, %v3968
          %v3970 = vpop.f32.mrf.mxu0
          %v3971 = vadd.f32 %v3930, %v3970
          %v3972 = vpop.f32.mrf.mxu0
          %v3973 = vpop.f32.mrf.mxu0
          %3974 = vdwg.mxu0
          %v3975 = vadd.f32 %v3589, %v3969
          %v3976 = vadd.f32 %v3591, %v3971
          %v3977 = vlaneseq
          %v3978 = vshrl.u32 %v3977, 7
          %v3979 = vsub.s32 0, %v3978
          %v3980 = vrot.slane %v2837, %v3979
          %v3981 = vlaneseq
          %v3982 = vshrl.u32 %v3981, 7
          %v3983 = vsub.s32 0, %v3982
          %v3984 = vrot.slane %v2838, %v3983
          %v3985 = vadd.f32 %v3975, %v3980
          %v3986 = vadd.f32 %v3976, %v3984
          %v3987 = vmax.f32 %v3985, 0.0
          %v3988 = vmax.f32 %v3986, 0.0
          %v3989 = vadd.f32 %v3987, %v3988
          %3990 = vadd.xlane.f32.xlu0 %v3989
          %v3991 = vpop.xlane.xlu0 %3990
          %v3992 = vmul.f32 %v3991, %v1864
          %v3993 = vsub.f32 %v3987, %v3992
          %v3994 = vsub.f32 %v3988, %v3992
          %v3995 = vmul.f32 %v3993, %v3993
          %v3996 = vmul.f32 %v3994, %v3994
          %v3997 = vadd.f32 %v3995, %v3996
          %3998 = vadd.xlane.f32.xlu0 %v3997
          %v3999 = vpop.xlane.xlu0 %3998
          %v4000 = vmul.f32 %v3999, %v1864
          %v4001 = vadd.f32 %v4000, 1e-05
          %v4002 = vrsqrt.pop %v4001
          %v4003 = vmul.f32 %v3993, %v4002
          %v4004 = vmul.f32 %v3994, %v4002
          %v4005 = vlaneseq
          %v4006 = vshrl.u32 %v4005, 7
          %v4007 = vsub.s32 1, %v4006
          %v4008 = vrot.slane %v2837, %v4007
          %v4009 = vlaneseq
          %v4010 = vshrl.u32 %v4009, 7
          %v4011 = vsub.s32 1, %v4010
          %v4012 = vrot.slane %v2838, %v4011
          %v4013 = vmul.f32 %v4003, %v4008
          %v4014 = vmul.f32 %v4004, %v4012
          %v4015 = vlaneseq
          %v4016 = vshrl.u32 %v4015, 7
          %v4017 = vsub.s32 2, %v4016
          %v4018 = vrot.slane %v2837, %v4017
          %v4019 = vlaneseq
          %v4020 = vshrl.u32 %v4019, 7
          %v4021 = vsub.s32 2, %v4020
          %v4022 = vrot.slane %v2838, %v4021
          %v4023 = vadd.f32 %v4013, %v4018
          %v4024 = vadd.f32 %v4014, %v4022
          %v4025 = vrot.slane %v4023, 7
          %v4026 = vrot.slane %v4024, 7
          %v4027 = vmul.f32 %v4025, %v700
          %v4028 = vmul.f32 %v4026, %v700
          %v4029 = vpack.c.bf16 %v4027, %v4027
          %v4030 = vpack.c.bf16 %v4028, %v4028
          %v4031 = vld [vmem:[#allocation11] sm:$0xff]
          %v4032 = vld [vmem:[#allocation11 + $0x8] sm:$0xff]
          %v4033 = vld [vmem:[#allocation11 + $0x10] sm:$0xff]
          %v4034 = vld [vmem:[#allocation11 + $0x18] sm:$0xff]
          %v4035 = vld [vmem:[#allocation11 + $0x20] sm:$0xff]
          %v4036 = vld [vmem:[#allocation11 + $0x28] sm:$0xff]
          %v4037 = vld [vmem:[#allocation11 + $0x30] sm:$0xff]
          %v4038 = vld [vmem:[#allocation11 + $0x38] sm:$0xff]
          %v4039 = vld [vmem:[#allocation11 + $0x40] sm:$0xff]
          %v4040 = vld [vmem:[#allocation11 + $0x48] sm:$0xff]
          %v4041 = vld [vmem:[#allocation11 + $0x50] sm:$0xff]
          %v4042 = vld [vmem:[#allocation11 + $0x58] sm:$0xff]
          %v4043 = vld [vmem:[#allocation11 + $0x60] sm:$0xff]
          %v4044 = vld [vmem:[#allocation11 + $0x68] sm:$0xff]
          %v4045 = vld [vmem:[#allocation11 + $0x70] sm:$0xff]
          %v4046 = vld [vmem:[#allocation11 + $0x78] sm:$0xff]
          %v4047 = vld [vmem:[#allocation11 + $0x80] sm:$0xff]
          %v4048 = vld [vmem:[#allocation11 + $0x88] sm:$0xff]
          %v4049 = vld [vmem:[#allocation11 + $0x90] sm:$0xff]
          %v4050 = vld [vmem:[#allocation11 + $0x98] sm:$0xff]
          %v4051 = vld [vmem:[#allocation11 + $0xa0] sm:$0xff]
          %v4052 = vld [vmem:[#allocation11 + $0xa8] sm:$0xff]
          %v4053 = vld [vmem:[#allocation11 + $0xb0] sm:$0xff]
          %v4054 = vld [vmem:[#allocation11 + $0xb8] sm:$0xff]
          %v4055 = vld [vmem:[#allocation11 + $0xc0] sm:$0xff]
          %v4056 = vld [vmem:[#allocation11 + $0xc8] sm:$0xff]
          %v4057 = vld [vmem:[#allocation11 + $0xd0] sm:$0xff]
          %v4058 = vld [vmem:[#allocation11 + $0xd8] sm:$0xff]
          %v4059 = vld [vmem:[#allocation11 + $0xe0] sm:$0xff]
          %v4060 = vld [vmem:[#allocation11 + $0xe8] sm:$0xff]
          %v4061 = vld [vmem:[#allocation11 + $0xf0] sm:$0xff]
          %v4062 = vld [vmem:[#allocation11 + $0xf8] sm:$0xff]
          %v4063 = vpack.c.bf16 %v4023, %v4023
          %v4064 = vpack.c.bf16 %v4024, %v4024
          %s4065 = scalar_lea.vmem [#allocation11], 256
          %v4066 = vld [vmem:[%s4065] sm:$0xff]
          %v4067 = vld [vmem:[%s4065 + $0x8] sm:$0xff]
          %v4068 = vld [vmem:[%s4065 + $0x10] sm:$0xff]
          %v4069 = vld [vmem:[%s4065 + $0x18] sm:$0xff]
          %v4070 = vld [vmem:[%s4065 + $0x20] sm:$0xff]
          %v4071 = vld [vmem:[%s4065 + $0x28] sm:$0xff]
          %v4072 = vld [vmem:[%s4065 + $0x30] sm:$0xff]
          %v4073 = vld [vmem:[%s4065 + $0x38] sm:$0xff]
          %v4074 = vld [vmem:[%s4065 + $0x40] sm:$0xff]
          %v4075 = vld [vmem:[%s4065 + $0x48] sm:$0xff]
          %v4076 = vld [vmem:[%s4065 + $0x50] sm:$0xff]
          %v4077 = vld [vmem:[%s4065 + $0x58] sm:$0xff]
          %v4078 = vld [vmem:[%s4065 + $0x60] sm:$0xff]
          %v4079 = vld [vmem:[%s4065 + $0x68] sm:$0xff]
          %v4080 = vld [vmem:[%s4065 + $0x70] sm:$0xff]
          %v4081 = vld [vmem:[%s4065 + $0x78] sm:$0xff]
          %v4082 = vld [vmem:[%s4065 + $0x80] sm:$0xff]
          %v4083 = vld [vmem:[%s4065 + $0x88] sm:$0xff]
          %v4084 = vld [vmem:[%s4065 + $0x90] sm:$0xff]
          %v4085 = vld [vmem:[%s4065 + $0x98] sm:$0xff]
          %v4086 = vld [vmem:[%s4065 + $0xa0] sm:$0xff]
          %v4087 = vld [vmem:[%s4065 + $0xa8] sm:$0xff]
          %v4088 = vld [vmem:[%s4065 + $0xb0] sm:$0xff]
          %v4089 = vld [vmem:[%s4065 + $0xb8] sm:$0xff]
          %v4090 = vld [vmem:[%s4065 + $0xc0] sm:$0xff]
          %v4091 = vld [vmem:[%s4065 + $0xc8] sm:$0xff]
          %v4092 = vld [vmem:[%s4065 + $0xd0] sm:$0xff]
          %v4093 = vld [vmem:[%s4065 + $0xd8] sm:$0xff]
          %v4094 = vld [vmem:[%s4065 + $0xe0] sm:$0xff]
          %v4095 = vld [vmem:[%s4065 + $0xe8] sm:$0xff]
          %v4096 = vld [vmem:[%s4065 + $0xf0] sm:$0xff]
          %v4097 = vld [vmem:[%s4065 + $0xf8] sm:$0xff]
          %v4130 = vunpack.c.l.b16 %v4066
          %v4131 = vunpack.c.h.b16 %v4066
          %v4132 = vunpack.c.l.b16 %v4067
          %v4133 = vunpack.c.h.b16 %v4067
          %v4134 = vunpack.c.l.b16 %v4068
          %v4135 = vunpack.c.h.b16 %v4068
          %v4136 = vunpack.c.l.b16 %v4069
          %v4137 = vunpack.c.h.b16 %v4069
          %v4138 = vunpack.c.l.b16 %v4070
          %v4139 = vunpack.c.h.b16 %v4070
          %v4140 = vunpack.c.l.b16 %v4071
          %v4141 = vunpack.c.h.b16 %v4071
          %v4142 = vunpack.c.l.b16 %v4072
          %v4143 = vunpack.c.h.b16 %v4072
          %v4144 = vunpack.c.l.b16 %v4073
          %v4145 = vunpack.c.h.b16 %v4073
          %v4146 = vunpack.c.l.b16 %v4074
          %v4147 = vunpack.c.h.b16 %v4074
          %v4148 = vunpack.c.l.b16 %v4075
          %v4149 = vunpack.c.h.b16 %v4075
          %v4150 = vunpack.c.l.b16 %v4076
          %v4151 = vunpack.c.h.b16 %v4076
          %v4152 = vunpack.c.l.b16 %v4077
          %v4153 = vunpack.c.h.b16 %v4077
          %v4154 = vunpack.c.l.b16 %v4078
          %v4155 = vunpack.c.h.b16 %v4078
          %v4156 = vunpack.c.l.b16 %v4079
          %v4157 = vunpack.c.h.b16 %v4079
          %v4158 = vunpack.c.l.b16 %v4080
          %v4159 = vunpack.c.h.b16 %v4080
          %v4160 = vunpack.c.l.b16 %v4081
          %v4161 = vunpack.c.h.b16 %v4081
          %v4162 = vunpack.c.l.b16 %v4082
          %v4163 = vunpack.c.h.b16 %v4082
          %v4164 = vunpack.c.l.b16 %v4083
          %v4165 = vunpack.c.h.b16 %v4083
          %v4166 = vunpack.c.l.b16 %v4084
          %v4167 = vunpack.c.h.b16 %v4084
          %v4168 = vunpack.c.l.b16 %v4085
          %v4169 = vunpack.c.h.b16 %v4085
          %v4170 = vunpack.c.l.b16 %v4086
          %v4171 = vunpack.c.h.b16 %v4086
          %v4172 = vunpack.c.l.b16 %v4087
          %v4173 = vunpack.c.h.b16 %v4087
          %v4174 = vunpack.c.l.b16 %v4088
          %v4175 = vunpack.c.h.b16 %v4088
          %v4176 = vunpack.c.l.b16 %v4089
          %v4177 = vunpack.c.h.b16 %v4089
          %v4178 = vunpack.c.l.b16 %v4090
          %v4179 = vunpack.c.h.b16 %v4090
          %v4180 = vunpack.c.l.b16 %v4091
          %v4181 = vunpack.c.h.b16 %v4091
          %v4182 = vunpack.c.l.b16 %v4092
          %v4183 = vunpack.c.h.b16 %v4092
          %v4184 = vunpack.c.l.b16 %v4093
          %v4185 = vunpack.c.h.b16 %v4093
          %v4186 = vunpack.c.l.b16 %v4094
          %v4187 = vunpack.c.h.b16 %v4094
          %v4188 = vunpack.c.l.b16 %v4095
          %v4189 = vunpack.c.h.b16 %v4095
          %v4190 = vunpack.c.l.b16 %v4096
          %v4191 = vunpack.c.h.b16 %v4096
          %v4192 = vunpack.c.l.b16 %v4097
          %v4193 = vunpack.c.h.b16 %v4097
          %v4194 = vpack.c.b16 %v4132, %v4130
          %v4195 = vpack.c.b16 %v4133, %v4131
          %v4196 = vpack.c.b16 %v4136, %v4134
          %v4197 = vpack.c.b16 %v4137, %v4135
          %v4198 = vpack.c.b16 %v4140, %v4138
          %v4199 = vpack.c.b16 %v4141, %v4139
          %v4200 = vpack.c.b16 %v4144, %v4142
          %v4201 = vpack.c.b16 %v4145, %v4143
          %v4202 = vpack.c.b16 %v4148, %v4146
          %v4203 = vpack.c.b16 %v4149, %v4147
          %v4204 = vpack.c.b16 %v4152, %v4150
          %v4205 = vpack.c.b16 %v4153, %v4151
          %v4206 = vpack.c.b16 %v4156, %v4154
          %v4207 = vpack.c.b16 %v4157, %v4155
          %v4208 = vpack.c.b16 %v4160, %v4158
          %v4209 = vpack.c.b16 %v4161, %v4159
          %v4210 = vpack.c.b16 %v4164, %v4162
          %v4211 = vpack.c.b16 %v4165, %v4163
          %v4212 = vpack.c.b16 %v4168, %v4166
          %v4213 = vpack.c.b16 %v4169, %v4167
          %v4214 = vpack.c.b16 %v4172, %v4170
          %v4215 = vpack.c.b16 %v4173, %v4171
          %v4216 = vpack.c.b16 %v4176, %v4174
          %v4217 = vpack.c.b16 %v4177, %v4175
          %v4218 = vpack.c.b16 %v4180, %v4178
          %v4219 = vpack.c.b16 %v4181, %v4179
          %v4220 = vpack.c.b16 %v4184, %v4182
          %v4221 = vpack.c.b16 %v4185, %v4183
          %v4222 = vpack.c.b16 %v4188, %v4186
          %v4223 = vpack.c.b16 %v4189, %v4187
          %v4224 = vpack.c.b16 %v4192, %v4190
          %v4225 = vpack.c.b16 %v4193, %v4191
          %4258 = vmatprep.subr.bf16.mxu0 %v4209
          %4259 = vmatpush1.bf16.msra.mxu0 %v4208
          %4260 = vmatprep.subr.bf16.mxu0 %v4207
          %4261 = vmatpush1.bf16.msra.mxu0 %v4206
          %4262 = vmatprep.subr.bf16.mxu0 %v4205
          %4263 = vmatpush1.bf16.msra.mxu0 %v4204
          %4264 = vmatprep.subr.bf16.mxu0 %v4203
          %4265 = vmatpush1.bf16.msra.mxu0 %v4202
          %4266 = vmatprep.subr.bf16.mxu0 %v4201
          %4267 = vmatpush1.bf16.msra.mxu0 %v4200
          %4268 = vmatprep.subr.bf16.mxu0 %v4199
          %4269 = vmatpush1.bf16.msra.mxu0 %v4198
          %4270 = vmatprep.subr.bf16.mxu0 %v4197
          %4271 = vmatpush1.bf16.msra.mxu0 %v4196
          %4272 = vmatprep.subr.bf16.mxu0 %v4195
          %4273 = vmatpush1.bf16.msra.mxu0 %v4194
          %4274 = vmatprep.subr.bf16.mxu0 %v4225
          %4275 = vmatpush2.bf16.msra.mxu0 %v4224
          %4276 = vmatprep.subr.bf16.mxu0 %v4223
          %4277 = vmatpush2.bf16.msra.mxu0 %v4222
          %4278 = vmatprep.subr.bf16.mxu0 %v4221
          %4279 = vmatpush2.bf16.msra.mxu0 %v4220
          %4280 = vmatprep.subr.bf16.mxu0 %v4219
          %4281 = vmatpush2.bf16.msra.mxu0 %v4218
          %4282 = vmatprep.subr.bf16.mxu0 %v4217
          %4283 = vmatpush2.bf16.msra.mxu0 %v4216
          %4284 = vmatprep.subr.bf16.mxu0 %v4215
          %4285 = vmatpush2.bf16.msra.mxu0 %v4214
          %4286 = vmatprep.subr.bf16.mxu0 %v4213
          %4287 = vmatpush2.bf16.msra.mxu0 %v4212
          %4288 = vmatprep.subr.bf16.mxu0 %v4211
          %4289 = vmatpush2.bf16.msra.mxu0 %v4210
          %4290 = vmatprep.mubr.bf16.mxu0 %v4064
          %4291 = vmatmul.mubr.bf16.gmra.mxu0 %v4063
          %v4292 = vpop.f32.mrf.mxu0
          %v4293 = vadd.f32 0.0, %v4292
          %v4294 = vpop.f32.mrf.mxu0
          %v4295 = vadd.f32 0.0, %v4294
          %v4296 = vpop.f32.mrf.mxu0
          %v4297 = vpop.f32.mrf.mxu0
          %4298 = vdwg.mxu0
          %v4331 = vunpack.c.l.b16 %v4031
          %v4332 = vunpack.c.h.b16 %v4031
          %v4333 = vunpack.c.l.b16 %v4032
          %v4334 = vunpack.c.h.b16 %v4032
          %v4335 = vunpack.c.l.b16 %v4033
          %v4336 = vunpack.c.h.b16 %v4033
          %v4337 = vunpack.c.l.b16 %v4034
          %v4338 = vunpack.c.h.b16 %v4034
          %v4339 = vunpack.c.l.b16 %v4035
          %v4340 = vunpack.c.h.b16 %v4035
          %v4341 = vunpack.c.l.b16 %v4036
          %v4342 = vunpack.c.h.b16 %v4036
          %v4343 = vunpack.c.l.b16 %v4037
          %v4344 = vunpack.c.h.b16 %v4037
          %v4345 = vunpack.c.l.b16 %v4038
          %v4346 = vunpack.c.h.b16 %v4038
          %v4347 = vunpack.c.l.b16 %v4039
          %v4348 = vunpack.c.h.b16 %v4039
          %v4349 = vunpack.c.l.b16 %v4040
          %v4350 = vunpack.c.h.b16 %v4040
          %v4351 = vunpack.c.l.b16 %v4041
          %v4352 = vunpack.c.h.b16 %v4041
          %v4353 = vunpack.c.l.b16 %v4042
          %v4354 = vunpack.c.h.b16 %v4042
          %v4355 = vunpack.c.l.b16 %v4043
          %v4356 = vunpack.c.h.b16 %v4043
          %v4357 = vunpack.c.l.b16 %v4044
          %v4358 = vunpack.c.h.b16 %v4044
          %v4359 = vunpack.c.l.b16 %v4045
          %v4360 = vunpack.c.h.b16 %v4045
          %v4361 = vunpack.c.l.b16 %v4046
          %v4362 = vunpack.c.h.b16 %v4046
          %v4363 = vunpack.c.l.b16 %v4047
          %v4364 = vunpack.c.h.b16 %v4047
          %v4365 = vunpack.c.l.b16 %v4048
          %v4366 = vunpack.c.h.b16 %v4048
          %v4367 = vunpack.c.l.b16 %v4049
          %v4368 = vunpack.c.h.b16 %v4049
          %v4369 = vunpack.c.l.b16 %v4050
          %v4370 = vunpack.c.h.b16 %v4050
          %v4371 = vunpack.c.l.b16 %v4051
          %v4372 = vunpack.c.h.b16 %v4051
          %v4373 = vunpack.c.l.b16 %v4052
          %v4374 = vunpack.c.h.b16 %v4052
          %v4375 = vunpack.c.l.b16 %v4053
          %v4376 = vunpack.c.h.b16 %v4053
          %v4377 = vunpack.c.l.b16 %v4054
          %v4378 = vunpack.c.h.b16 %v4054
          %v4379 = vunpack.c.l.b16 %v4055
          %v4380 = vunpack.c.h.b16 %v4055
          %v4381 = vunpack.c.l.b16 %v4056
          %v4382 = vunpack.c.h.b16 %v4056
          %v4383 = vunpack.c.l.b16 %v4057
          %v4384 = vunpack.c.h.b16 %v4057
          %v4385 = vunpack.c.l.b16 %v4058
          %v4386 = vunpack.c.h.b16 %v4058
          %v4387 = vunpack.c.l.b16 %v4059
          %v4388 = vunpack.c.h.b16 %v4059
          %v4389 = vunpack.c.l.b16 %v4060
          %v4390 = vunpack.c.h.b16 %v4060
          %v4391 = vunpack.c.l.b16 %v4061
          %v4392 = vunpack.c.h.b16 %v4061
          %v4393 = vunpack.c.l.b16 %v4062
          %v4394 = vunpack.c.h.b16 %v4062
          %v4395 = vpack.c.b16 %v4333, %v4331
          %v4396 = vpack.c.b16 %v4334, %v4332
          %v4397 = vpack.c.b16 %v4337, %v4335
          %v4398 = vpack.c.b16 %v4338, %v4336
          %v4399 = vpack.c.b16 %v4341, %v4339
          %v4400 = vpack.c.b16 %v4342, %v4340
          %v4401 = vpack.c.b16 %v4345, %v4343
          %v4402 = vpack.c.b16 %v4346, %v4344
          %v4403 = vpack.c.b16 %v4349, %v4347
          %v4404 = vpack.c.b16 %v4350, %v4348
          %v4405 = vpack.c.b16 %v4353, %v4351
          %v4406 = vpack.c.b16 %v4354, %v4352
          %v4407 = vpack.c.b16 %v4357, %v4355
          %v4408 = vpack.c.b16 %v4358, %v4356
          %v4409 = vpack.c.b16 %v4361, %v4359
          %v4410 = vpack.c.b16 %v4362, %v4360
          %v4411 = vpack.c.b16 %v4365, %v4363
          %v4412 = vpack.c.b16 %v4366, %v4364
          %v4413 = vpack.c.b16 %v4369, %v4367
          %v4414 = vpack.c.b16 %v4370, %v4368
          %v4415 = vpack.c.b16 %v4373, %v4371
          %v4416 = vpack.c.b16 %v4374, %v4372
          %v4417 = vpack.c.b16 %v4377, %v4375
          %v4418 = vpack.c.b16 %v4378, %v4376
          %v4419 = vpack.c.b16 %v4381, %v4379
          %v4420 = vpack.c.b16 %v4382, %v4380
          %v4421 = vpack.c.b16 %v4385, %v4383
          %v4422 = vpack.c.b16 %v4386, %v4384
          %v4423 = vpack.c.b16 %v4389, %v4387
          %v4424 = vpack.c.b16 %v4390, %v4388
          %v4425 = vpack.c.b16 %v4393, %v4391
          %v4426 = vpack.c.b16 %v4394, %v4392
          %4459 = vmatprep.subr.bf16.mxu0 %v4410
          %4460 = vmatpush1.bf16.msra.mxu0 %v4409
          %4461 = vmatprep.subr.bf16.mxu0 %v4408
          %4462 = vmatpush1.bf16.msra.mxu0 %v4407
          %4463 = vmatprep.subr.bf16.mxu0 %v4406
          %4464 = vmatpush1.bf16.msra.mxu0 %v4405
          %4465 = vmatprep.subr.bf16.mxu0 %v4404
          %4466 = vmatpush1.bf16.msra.mxu0 %v4403
          %4467 = vmatprep.subr.bf16.mxu0 %v4402
          %4468 = vmatpush1.bf16.msra.mxu0 %v4401
          %4469 = vmatprep.subr.bf16.mxu0 %v4400
          %4470 = vmatpush1.bf16.msra.mxu0 %v4399
          %4471 = vmatprep.subr.bf16.mxu0 %v4398
          %4472 = vmatpush1.bf16.msra.mxu0 %v4397
          %4473 = vmatprep.subr.bf16.mxu0 %v4396
          %4474 = vmatpush1.bf16.msra.mxu0 %v4395
          %4475 = vmatprep.subr.bf16.mxu0 %v4426
          %4476 = vmatpush2.bf16.msra.mxu0 %v4425
          %4477 = vmatprep.subr.bf16.mxu0 %v4424
          %4478 = vmatpush2.bf16.msra.mxu0 %v4423
          %4479 = vmatprep.subr.bf16.mxu0 %v4422
          %4480 = vmatpush2.bf16.msra.mxu0 %v4421
          %4481 = vmatprep.subr.bf16.mxu0 %v4420
          %4482 = vmatpush2.bf16.msra.mxu0 %v4419
          %4483 = vmatprep.subr.bf16.mxu0 %v4418
          %4484 = vmatpush2.bf16.msra.mxu0 %v4417
          %4485 = vmatprep.subr.bf16.mxu0 %v4416
          %4486 = vmatpush2.bf16.msra.mxu0 %v4415
          %4487 = vmatprep.subr.bf16.mxu0 %v4414
          %4488 = vmatpush2.bf16.msra.mxu0 %v4413
          %4489 = vmatprep.subr.bf16.mxu0 %v4412
          %4490 = vmatpush2.bf16.msra.mxu0 %v4411
          %4491 = vmatprep.mubr.bf16.mxu0 %v4030
          %4492 = vmatmul.mubr.bf16.gmra.mxu0 %v4029
          %v4493 = vpop.f32.mrf.mxu0
          %v4494 = vadd.f32 %v4293, %v4493
          %v4495 = vpop.f32.mrf.mxu0
          %v4496 = vadd.f32 %v4295, %v4495
          %v4497 = vpop.f32.mrf.mxu0
          %v4498 = vpop.f32.mrf.mxu0
          %4499 = vdwg.mxu0
          %v4500 = vrot.slane %v4023, 1
          %v4501 = vrot.slane %v4024, 1
          %v4502 = vmul.f32 %v4500, %v703
          %v4503 = vmul.f32 %v4501, %v703
          %v4504 = vpack.c.bf16 %v4502, %v4502
          %v4505 = vpack.c.bf16 %v4503, %v4503
          %s4506 = scalar_lea.vmem [#allocation11], 512
          %v4507 = vld [vmem:[%s4506] sm:$0xff]
          %v4508 = vld [vmem:[%s4506 + $0x8] sm:$0xff]
          %v4509 = vld [vmem:[%s4506 + $0x10] sm:$0xff]
          %v4510 = vld [vmem:[%s4506 + $0x18] sm:$0xff]
          %v4511 = vld [vmem:[%s4506 + $0x20] sm:$0xff]
          %v4512 = vld [vmem:[%s4506 + $0x28] sm:$0xff]
          %v4513 = vld [vmem:[%s4506 + $0x30] sm:$0xff]
          %v4514 = vld [vmem:[%s4506 + $0x38] sm:$0xff]
          %v4515 = vld [vmem:[%s4506 + $0x40] sm:$0xff]
          %v4516 = vld [vmem:[%s4506 + $0x48] sm:$0xff]
          %v4517 = vld [vmem:[%s4506 + $0x50] sm:$0xff]
          %v4518 = vld [vmem:[%s4506 + $0x58] sm:$0xff]
          %v4519 = vld [vmem:[%s4506 + $0x60] sm:$0xff]
          %v4520 = vld [vmem:[%s4506 + $0x68] sm:$0xff]
          %v4521 = vld [vmem:[%s4506 + $0x70] sm:$0xff]
          %v4522 = vld [vmem:[%s4506 + $0x78] sm:$0xff]
          %v4523 = vld [vmem:[%s4506 + $0x80] sm:$0xff]
          %v4524 = vld [vmem:[%s4506 + $0x88] sm:$0xff]
          %v4525 = vld [vmem:[%s4506 + $0x90] sm:$0xff]
          %v4526 = vld [vmem:[%s4506 + $0x98] sm:$0xff]
          %v4527 = vld [vmem:[%s4506 + $0xa0] sm:$0xff]
          %v4528 = vld [vmem:[%s4506 + $0xa8] sm:$0xff]
          %v4529 = vld [vmem:[%s4506 + $0xb0] sm:$0xff]
          %v4530 = vld [vmem:[%s4506 + $0xb8] sm:$0xff]
          %v4531 = vld [vmem:[%s4506 + $0xc0] sm:$0xff]
          %v4532 = vld [vmem:[%s4506 + $0xc8] sm:$0xff]
          %v4533 = vld [vmem:[%s4506 + $0xd0] sm:$0xff]
          %v4534 = vld [vmem:[%s4506 + $0xd8] sm:$0xff]
          %v4535 = vld [vmem:[%s4506 + $0xe0] sm:$0xff]
          %v4536 = vld [vmem:[%s4506 + $0xe8] sm:$0xff]
          %v4537 = vld [vmem:[%s4506 + $0xf0] sm:$0xff]
          %v4538 = vld [vmem:[%s4506 + $0xf8] sm:$0xff]
          %v4571 = vunpack.c.l.b16 %v4507
          %v4572 = vunpack.c.h.b16 %v4507
          %v4573 = vunpack.c.l.b16 %v4508
          %v4574 = vunpack.c.h.b16 %v4508
          %v4575 = vunpack.c.l.b16 %v4509
          %v4576 = vunpack.c.h.b16 %v4509
          %v4577 = vunpack.c.l.b16 %v4510
          %v4578 = vunpack.c.h.b16 %v4510
          %v4579 = vunpack.c.l.b16 %v4511
          %v4580 = vunpack.c.h.b16 %v4511
          %v4581 = vunpack.c.l.b16 %v4512
          %v4582 = vunpack.c.h.b16 %v4512
          %v4583 = vunpack.c.l.b16 %v4513
          %v4584 = vunpack.c.h.b16 %v4513
          %v4585 = vunpack.c.l.b16 %v4514
          %v4586 = vunpack.c.h.b16 %v4514
          %v4587 = vunpack.c.l.b16 %v4515
          %v4588 = vunpack.c.h.b16 %v4515
          %v4589 = vunpack.c.l.b16 %v4516
          %v4590 = vunpack.c.h.b16 %v4516
          %v4591 = vunpack.c.l.b16 %v4517
          %v4592 = vunpack.c.h.b16 %v4517
          %v4593 = vunpack.c.l.b16 %v4518
          %v4594 = vunpack.c.h.b16 %v4518
          %v4595 = vunpack.c.l.b16 %v4519
          %v4596 = vunpack.c.h.b16 %v4519
          %v4597 = vunpack.c.l.b16 %v4520
          %v4598 = vunpack.c.h.b16 %v4520
          %v4599 = vunpack.c.l.b16 %v4521
          %v4600 = vunpack.c.h.b16 %v4521
          %v4601 = vunpack.c.l.b16 %v4522
          %v4602 = vunpack.c.h.b16 %v4522
          %v4603 = vunpack.c.l.b16 %v4523
          %v4604 = vunpack.c.h.b16 %v4523
          %v4605 = vunpack.c.l.b16 %v4524
          %v4606 = vunpack.c.h.b16 %v4524
          %v4607 = vunpack.c.l.b16 %v4525
          %v4608 = vunpack.c.h.b16 %v4525
          %v4609 = vunpack.c.l.b16 %v4526
          %v4610 = vunpack.c.h.b16 %v4526
          %v4611 = vunpack.c.l.b16 %v4527
          %v4612 = vunpack.c.h.b16 %v4527
          %v4613 = vunpack.c.l.b16 %v4528
          %v4614 = vunpack.c.h.b16 %v4528
          %v4615 = vunpack.c.l.b16 %v4529
          %v4616 = vunpack.c.h.b16 %v4529
          %v4617 = vunpack.c.l.b16 %v4530
          %v4618 = vunpack.c.h.b16 %v4530
          %v4619 = vunpack.c.l.b16 %v4531
          %v4620 = vunpack.c.h.b16 %v4531
          %v4621 = vunpack.c.l.b16 %v4532
          %v4622 = vunpack.c.h.b16 %v4532
          %v4623 = vunpack.c.l.b16 %v4533
          %v4624 = vunpack.c.h.b16 %v4533
          %v4625 = vunpack.c.l.b16 %v4534
          %v4626 = vunpack.c.h.b16 %v4534
          %v4627 = vunpack.c.l.b16 %v4535
          %v4628 = vunpack.c.h.b16 %v4535
          %v4629 = vunpack.c.l.b16 %v4536
          %v4630 = vunpack.c.h.b16 %v4536
          %v4631 = vunpack.c.l.b16 %v4537
          %v4632 = vunpack.c.h.b16 %v4537
          %v4633 = vunpack.c.l.b16 %v4538
          %v4634 = vunpack.c.h.b16 %v4538
          %v4635 = vpack.c.b16 %v4573, %v4571
          %v4636 = vpack.c.b16 %v4574, %v4572
          %v4637 = vpack.c.b16 %v4577, %v4575
          %v4638 = vpack.c.b16 %v4578, %v4576
          %v4639 = vpack.c.b16 %v4581, %v4579
          %v4640 = vpack.c.b16 %v4582, %v4580
          %v4641 = vpack.c.b16 %v4585, %v4583
          %v4642 = vpack.c.b16 %v4586, %v4584
          %v4643 = vpack.c.b16 %v4589, %v4587
          %v4644 = vpack.c.b16 %v4590, %v4588
          %v4645 = vpack.c.b16 %v4593, %v4591
          %v4646 = vpack.c.b16 %v4594, %v4592
          %v4647 = vpack.c.b16 %v4597, %v4595
          %v4648 = vpack.c.b16 %v4598, %v4596
          %v4649 = vpack.c.b16 %v4601, %v4599
          %v4650 = vpack.c.b16 %v4602, %v4600
          %v4651 = vpack.c.b16 %v4605, %v4603
          %v4652 = vpack.c.b16 %v4606, %v4604
          %v4653 = vpack.c.b16 %v4609, %v4607
          %v4654 = vpack.c.b16 %v4610, %v4608
          %v4655 = vpack.c.b16 %v4613, %v4611
          %v4656 = vpack.c.b16 %v4614, %v4612
          %v4657 = vpack.c.b16 %v4617, %v4615
          %v4658 = vpack.c.b16 %v4618, %v4616
          %v4659 = vpack.c.b16 %v4621, %v4619
          %v4660 = vpack.c.b16 %v4622, %v4620
          %v4661 = vpack.c.b16 %v4625, %v4623
          %v4662 = vpack.c.b16 %v4626, %v4624
          %v4663 = vpack.c.b16 %v4629, %v4627
          %v4664 = vpack.c.b16 %v4630, %v4628
          %v4665 = vpack.c.b16 %v4633, %v4631
          %v4666 = vpack.c.b16 %v4634, %v4632
          %4699 = vmatprep.subr.bf16.mxu0 %v4650
          %4700 = vmatpush1.bf16.msra.mxu0 %v4649
          %4701 = vmatprep.subr.bf16.mxu0 %v4648
          %4702 = vmatpush1.bf16.msra.mxu0 %v4647
          %4703 = vmatprep.subr.bf16.mxu0 %v4646
          %4704 = vmatpush1.bf16.msra.mxu0 %v4645
          %4705 = vmatprep.subr.bf16.mxu0 %v4644
          %4706 = vmatpush1.bf16.msra.mxu0 %v4643
          %4707 = vmatprep.subr.bf16.mxu0 %v4642
          %4708 = vmatpush1.bf16.msra.mxu0 %v4641
          %4709 = vmatprep.subr.bf16.mxu0 %v4640
          %4710 = vmatpush1.bf16.msra.mxu0 %v4639
          %4711 = vmatprep.subr.bf16.mxu0 %v4638
          %4712 = vmatpush1.bf16.msra.mxu0 %v4637
          %4713 = vmatprep.subr.bf16.mxu0 %v4636
          %4714 = vmatpush1.bf16.msra.mxu0 %v4635
          %4715 = vmatprep.subr.bf16.mxu0 %v4666
          %4716 = vmatpush2.bf16.msra.mxu0 %v4665
          %4717 = vmatprep.subr.bf16.mxu0 %v4664
          %4718 = vmatpush2.bf16.msra.mxu0 %v4663
          %4719 = vmatprep.subr.bf16.mxu0 %v4662
          %4720 = vmatpush2.bf16.msra.mxu0 %v4661
          %4721 = vmatprep.subr.bf16.mxu0 %v4660
          %4722 = vmatpush2.bf16.msra.mxu0 %v4659
          %4723 = vmatprep.subr.bf16.mxu0 %v4658
          %4724 = vmatpush2.bf16.msra.mxu0 %v4657
          %4725 = vmatprep.subr.bf16.mxu0 %v4656
          %4726 = vmatpush2.bf16.msra.mxu0 %v4655
          %4727 = vmatprep.subr.bf16.mxu0 %v4654
          %4728 = vmatpush2.bf16.msra.mxu0 %v4653
          %4729 = vmatprep.subr.bf16.mxu0 %v4652
          %4730 = vmatpush2.bf16.msra.mxu0 %v4651
          %4731 = vmatprep.mubr.bf16.mxu0 %v4505
          %4732 = vmatmul.mubr.bf16.gmra.mxu0 %v4504
          %v4733 = vpop.f32.mrf.mxu0
          %v4734 = vadd.f32 0.0, %v4733
          %v4735 = vpop.f32.mrf.mxu0
          %v4736 = vadd.f32 0.0, %v4735
          %v4737 = vpop.f32.mrf.mxu0
          %v4738 = vpop.f32.mrf.mxu0
          %4739 = vdwg.mxu0
          %v4740 = vadd.f32 %v4494, %v4734
          %v4741 = vadd.f32 %v4496, %v4736
          %v4742 = vlaneseq
          %v4743 = vshrl.u32 %v4742, 7
          %v4744 = vsub.s32 3, %v4743
          %v4745 = vrot.slane %v2837, %v4744
          %v4746 = vlaneseq
          %v4747 = vshrl.u32 %v4746, 7
          %v4748 = vsub.s32 3, %v4747
          %v4749 = vrot.slane %v2838, %v4748
          %v4750 = vadd.f32 %v4740, %v4745
          %v4751 = vadd.f32 %v4741, %v4749
          %v4752 = vmax.f32 %v4750, 0.0
          %v4753 = vmax.f32 %v4751, 0.0
          %v4754 = vadd.f32 %v4752, %v4753
          %4755 = vadd.xlane.f32.xlu0 %v4754
          %v4756 = vpop.xlane.xlu0 %4755
          %v4757 = vmul.f32 %v4756, %v1864
          %v4758 = vsub.f32 %v4752, %v4757
          %v4759 = vsub.f32 %v4753, %v4757
          %v4760 = vmul.f32 %v4758, %v4758
          %v4761 = vmul.f32 %v4759, %v4759
          %v4762 = vadd.f32 %v4760, %v4761
          %4763 = vadd.xlane.f32.xlu0 %v4762
          %v4764 = vpop.xlane.xlu0 %4763
          %v4765 = vmul.f32 %v4764, %v1864
          %v4766 = vadd.f32 %v4765, 1e-05
          %v4767 = vrsqrt.pop %v4766
          %v4768 = vmul.f32 %v4758, %v4767
          %v4769 = vmul.f32 %v4759, %v4767
          %v4770 = vlaneseq
          %v4771 = vshrl.u32 %v4770, 7
          %v4772 = vsub.s32 4, %v4771
          %v4773 = vrot.slane %v2837, %v4772
          %v4774 = vlaneseq
          %v4775 = vshrl.u32 %v4774, 7
          %v4776 = vsub.s32 4, %v4775
          %v4777 = vrot.slane %v2838, %v4776
          %v4778 = vmul.f32 %v4768, %v4773
          %v4779 = vmul.f32 %v4769, %v4777
          %v4780 = vlaneseq
          %v4781 = vshrl.u32 %v4780, 7
          %v4782 = vsub.s32 5, %v4781
          %v4783 = vrot.slane %v2837, %v4782
          %v4784 = vlaneseq
          %v4785 = vshrl.u32 %v4784, 7
          %v4786 = vsub.s32 5, %v4785
          %v4787 = vrot.slane %v2838, %v4786
          %v4788 = vadd.f32 %v4778, %v4783
          %v4789 = vadd.f32 %v4779, %v4787
          %v4790 = vlaneseq
          %v4791 = vshrl.u32 %v4790, 7
          %v4792 = vsub.s32 6, %v4791
          %v4793 = vrot.slane %v2837, %v4792
          %v4794 = vlaneseq
          %v4795 = vshrl.u32 %v4794, 7
          %v4796 = vsub.s32 6, %v4795
          %v4797 = vrot.slane %v2838, %v4796
          %v4798 = vmul.f32 %v4788, %v4793
          %v4799 = vmul.f32 %v4789, %v4797
          %v4800 = vadd.f32 %v4798, %v4799
          %4801 = vadd.xlane.f32.xlu0 %v4800
          %v4802 = vpop.xlane.xlu0 %4801
          %v4803 = vlaneseq
          %v4804 = vshrl.u32 %v4803, 7
          %v4805 = vsub.s32 7, %v4804
          %v4806 = vrot.slane %v2837, %v4805
          %v4807 = vadd.f32 %v4802, %v4806
          %v4808 = vmul.f32 %v4807, %v695
          %4810 = vrot.lane.b32.xlu0 %v4808, 1
          %v4811 = vpop.permute.xlu0 %4810
          %vm4813 = vcmask 7168
          %v4814 = vsel %vm4813, %v2681, %v4811
          %vm4815 = vcmask 15360
          %4816 = vst.msk [vmem:[%s684] sm:$0xff] %vm4815, %v4814
          %4817 = vset.pattern.permute.xlu0 1
          %4818 = vperm.xlu0 %4817, %v2684
          %v4819 = vpop.permute.xlu0 %4818
          %v4823 = vlaneseq
          %v4824 = vshrl.u32 %v4823, 7
          %v4825 = vsub.s32 0, %v4824
          %v4826 = vrot.slane %v2689, %v4825
          %v4827 = vlaneseq
          %v4828 = vshrl.u32 %v4827, 7
          %v4829 = vsub.s32 4, %v4828
          %v4830 = vrot.slane %v2689, %v4829
          %v4831 = vlaneseq
          %v4832 = vshrl.u32 %v4831, 7
          %v4833 = vsub.s32 0, %v4832
          %v4834 = vrot.slane %v2690, %v4833
          %v4838 = vlaneseq
          %v4839 = vshrl.u32 %v4838, 7
          %v4840 = vsub.s32 0, %v4839
          %v4841 = vrot.slane %v4826, %v4840
          %v4842 = vlaneseq
          %v4843 = vshrl.u32 %v4842, 7
          %v4844 = vsub.s32 0, %v4843
          %v4845 = vrot.slane %v4830, %v4844
          %v4846 = vlaneseq
          %v4847 = vshrl.u32 %v4846, 7
          %v4848 = vsub.s32 0, %v4847
          %v4849 = vrot.slane %v4834, %v4848
          %v4850 = vmul.f32 %v4819, %v4841
          %v4851 = vmul.f32 %v4819, %v4845
          %v4852 = vmul.f32 %v4819, %v4849
          %4853 = vset.pattern.permute.xlu0 1
          %4854 = vperm.xlu0 %4853, %v2682
          %v4855 = vpop.permute.xlu0 %4854
          %v4857 = vlaneseq
          %v4858 = vshrl.u32 %v4857, 7
          %v4859 = vsub.s32 1, %v4858
          %v4860 = vrot.slane %v2689, %v4859
          %v4861 = vlaneseq
          %v4862 = vshrl.u32 %v4861, 7
          %v4863 = vsub.s32 5, %v4862
          %v4864 = vrot.slane %v2689, %v4863
          %v4865 = vlaneseq
          %v4866 = vshrl.u32 %v4865, 7
          %v4867 = vsub.s32 1, %v4866
          %v4868 = vrot.slane %v2690, %v4867
          %v4872 = vlaneseq
          %v4873 = vshrl.u32 %v4872, 7
          %v4874 = vsub.s32 1, %v4873
          %v4875 = vrot.slane %v4860, %v4874
          %v4876 = vlaneseq
          %v4877 = vshrl.u32 %v4876, 7
          %v4878 = vsub.s32 1, %v4877
          %v4879 = vrot.slane %v4864, %v4878
          %v4880 = vlaneseq
          %v4881 = vshrl.u32 %v4880, 7
          %v4882 = vsub.s32 1, %v4881
          %v4883 = vrot.slane %v4868, %v4882
          %v4884 = vmul.f32 %v4855, %v4875
          %v4885 = vmul.f32 %v4855, %v4879
          %v4886 = vmul.f32 %v4855, %v4883
          %v4887 = vadd.f32 %v4850, %v4884
          %v4888 = vadd.f32 %v4851, %v4885
          %v4889 = vadd.f32 %v4852, %v4886
          %4890 = vset.pattern.permute.xlu0 1
          %4891 = vperm.xlu0 %4890, %v2686
          %v4892 = vpop.permute.xlu0 %4891
          %v4894 = vlaneseq
          %v4895 = vshrl.u32 %v4894, 7
          %v4896 = vsub.s32 2, %v4895
          %v4897 = vrot.slane %v2689, %v4896
          %v4898 = vlaneseq
          %v4899 = vshrl.u32 %v4898, 7
          %v4900 = vsub.s32 6, %v4899
          %v4901 = vrot.slane %v2689, %v4900
          %v4902 = vlaneseq
          %v4903 = vshrl.u32 %v4902, 7
          %v4904 = vsub.s32 2, %v4903
          %v4905 = vrot.slane %v2690, %v4904
          %v4909 = vlaneseq
          %v4910 = vshrl.u32 %v4909, 7
          %v4911 = vsub.s32 2, %v4910
          %v4912 = vrot.slane %v4897, %v4911
          %v4913 = vlaneseq
          %v4914 = vshrl.u32 %v4913, 7
          %v4915 = vsub.s32 2, %v4914
          %v4916 = vrot.slane %v4901, %v4915
          %v4917 = vlaneseq
          %v4918 = vshrl.u32 %v4917, 7
          %v4919 = vsub.s32 2, %v4918
          %v4920 = vrot.slane %v4905, %v4919
          %v4921 = vmul.f32 %v4892, %v4912
          %v4922 = vmul.f32 %v4892, %v4916
          %v4923 = vmul.f32 %v4892, %v4920
          %v4924 = vadd.f32 %v4887, %v4921
          %v4925 = vadd.f32 %v4888, %v4922
          %v4926 = vadd.f32 %v4889, %v4923
          %v4927 = vlaneseq
          %v4928 = vshrl.u32 %v4927, 7
          %v4929 = vsub.s32 3, %v4928
          %v4930 = vrot.slane %v2689, %v4929
          %v4931 = vlaneseq
          %v4932 = vshrl.u32 %v4931, 7
          %v4933 = vsub.s32 7, %v4932
          %v4934 = vrot.slane %v2689, %v4933
          %v4935 = vlaneseq
          %v4936 = vshrl.u32 %v4935, 7
          %v4937 = vsub.s32 3, %v4936
          %v4938 = vrot.slane %v2690, %v4937
          %v4942 = vlaneseq
          %v4943 = vshrl.u32 %v4942, 7
          %v4944 = vsub.s32 3, %v4943
          %v4945 = vrot.slane %v4930, %v4944
          %v4946 = vlaneseq
          %v4947 = vshrl.u32 %v4946, 7
          %v4948 = vsub.s32 3, %v4947
          %v4949 = vrot.slane %v4934, %v4948
          %v4950 = vlaneseq
          %v4951 = vshrl.u32 %v4950, 7
          %v4952 = vsub.s32 3, %v4951
          %v4953 = vrot.slane %v4938, %v4952
          %v4954 = vadd.f32 %v4924, %v4945
          %v4955 = vadd.f32 %v4925, %v4949
          %v4956 = vadd.f32 %v4926, %v4953
          %v4957 = vadd.f32 %v2834, %v4954
          %v4958 = vadd.f32 %v2835, %v4955
          %v4959 = vadd.f32 %v2836, %v4956
          %v4960 = vpack.c.bf16 %v4957, %v4957
          %v4961 = vpack.c.bf16 %v4958, %v4958
          %v4962 = vpack.c.bf16 %v4959, %v4959
          %v4963 = vld [vmem:[#allocation15] sm:$0xf]
          %v4964 = vld [vmem:[#allocation15 + $0x4] sm:$0xf]
          %v4965 = vld [vmem:[#allocation15 + $0x8] sm:$0xf]
          %v4966 = vld [vmem:[#allocation15 + $0xc] sm:$0xf]
          %v4967 = vld [vmem:[#allocation15 + $0x10] sm:$0xf]
          %v4968 = vld [vmem:[#allocation15 + $0x14] sm:$0xf]
          %v4969 = vld [vmem:[#allocation15 + $0x18] sm:$0xf]
          %v4970 = vld [vmem:[#allocation15 + $0x1c] sm:$0xf]
          %v4971 = vld [vmem:[#allocation15 + $0x20] sm:$0xf]
          %v4972 = vld [vmem:[#allocation15 + $0x24] sm:$0xf]
          %v4973 = vld [vmem:[#allocation15 + $0x28] sm:$0xf]
          %v4974 = vld [vmem:[#allocation15 + $0x2c] sm:$0xf]
          %v4975 = vld [vmem:[#allocation15 + $0x30] sm:$0xf]
          %v4976 = vld [vmem:[#allocation15 + $0x34] sm:$0xf]
          %v4977 = vld [vmem:[#allocation15 + $0x38] sm:$0xf]
          %v4978 = vld [vmem:[#allocation15 + $0x3c] sm:$0xf]
          %v4979 = vld [vmem:[#allocation15 + $0x40] sm:$0xf]
          %v4980 = vld [vmem:[#allocation15 + $0x44] sm:$0xf]
          %v4981 = vld [vmem:[#allocation15 + $0x48] sm:$0xf]
          %v4982 = vld [vmem:[#allocation15 + $0x4c] sm:$0xf]
          %v4983 = vld [vmem:[#allocation15 + $0x50] sm:$0xf]
          %v4984 = vld [vmem:[#allocation15 + $0x54] sm:$0xf]
          %v4985 = vld [vmem:[#allocation15 + $0x58] sm:$0xf]
          %v4986 = vld [vmem:[#allocation15 + $0x5c] sm:$0xf]
          %v4987 = vld [vmem:[#allocation15 + $0x60] sm:$0xf]
          %v4988 = vld [vmem:[#allocation15 + $0x64] sm:$0xf]
          %v4989 = vld [vmem:[#allocation15 + $0x68] sm:$0xf]
          %v4990 = vld [vmem:[#allocation15 + $0x6c] sm:$0xf]
          %v4991 = vld [vmem:[#allocation15 + $0x70] sm:$0xf]
          %v4992 = vld [vmem:[#allocation15 + $0x74] sm:$0xf]
          %v4993 = vld [vmem:[#allocation15 + $0x78] sm:$0xf]
          %v4994 = vld [vmem:[#allocation15 + $0x7c] sm:$0xf]
          %v4995 = vld [vmem:[#allocation15 + $0x80] sm:$0xf]
          %v4996 = vld [vmem:[#allocation15 + $0x84] sm:$0xf]
          %v4997 = vld [vmem:[#allocation15 + $0x88] sm:$0xf]
          %v4998 = vld [vmem:[#allocation15 + $0x8c] sm:$0xf]
          %v4999 = vld [vmem:[#allocation15 + $0x90] sm:$0xf]
          %v5000 = vld [vmem:[#allocation15 + $0x94] sm:$0xf]
          %v5001 = vld [vmem:[#allocation15 + $0x98] sm:$0xf]
          %v5002 = vld [vmem:[#allocation15 + $0x9c] sm:$0xf]
          %v5003 = vld [vmem:[#allocation15 + $0xa0] sm:$0xf]
          %v5004 = vld [vmem:[#allocation15 + $0xa4] sm:$0xf]
          %v5005 = vld [vmem:[#allocation15 + $0xa8] sm:$0xf]
          %v5006 = vld [vmem:[#allocation15 + $0xac] sm:$0xf]
          %v5007 = vld [vmem:[#allocation15 + $0xb0] sm:$0xf]
          %v5008 = vld [vmem:[#allocation15 + $0xb4] sm:$0xf]
          %v5009 = vld [vmem:[#allocation15 + $0xb8] sm:$0xf]
          %v5010 = vld [vmem:[#allocation15 + $0xbc] sm:$0xf]
          %v5059 = vunpack.c.l.b16 %v4963
          %v5060 = vunpack.c.l.b16 %v4964
          %v5061 = vunpack.c.l.b16 %v4965
          %v5062 = vunpack.c.l.b16 %v4966
          %v5063 = vunpack.c.l.b16 %v4967
          %v5064 = vunpack.c.l.b16 %v4968
          %v5065 = vunpack.c.l.b16 %v4969
          %v5066 = vunpack.c.l.b16 %v4970
          %v5067 = vunpack.c.l.b16 %v4971
          %v5068 = vunpack.c.l.b16 %v4972
          %v5069 = vunpack.c.l.b16 %v4973
          %v5070 = vunpack.c.l.b16 %v4974
          %v5071 = vunpack.c.l.b16 %v4975
          %v5072 = vunpack.c.l.b16 %v4976
          %v5073 = vunpack.c.l.b16 %v4977
          %v5074 = vunpack.c.l.b16 %v4978
          %v5075 = vunpack.c.l.b16 %v4979
          %v5076 = vunpack.c.l.b16 %v4980
          %v5077 = vunpack.c.l.b16 %v4981
          %v5078 = vunpack.c.l.b16 %v4982
          %v5079 = vunpack.c.l.b16 %v4983
          %v5080 = vunpack.c.l.b16 %v4984
          %v5081 = vunpack.c.l.b16 %v4985
          %v5082 = vunpack.c.l.b16 %v4986
          %v5083 = vunpack.c.l.b16 %v4987
          %v5084 = vunpack.c.l.b16 %v4988
          %v5085 = vunpack.c.l.b16 %v4989
          %v5086 = vunpack.c.l.b16 %v4990
          %v5087 = vunpack.c.l.b16 %v4991
          %v5088 = vunpack.c.l.b16 %v4992
          %v5089 = vunpack.c.l.b16 %v4993
          %v5090 = vunpack.c.l.b16 %v4994
          %v5091 = vunpack.c.l.b16 %v4995
          %v5092 = vunpack.c.l.b16 %v4996
          %v5093 = vunpack.c.l.b16 %v4997
          %v5094 = vunpack.c.l.b16 %v4998
          %v5095 = vunpack.c.l.b16 %v4999
          %v5096 = vunpack.c.l.b16 %v5000
          %v5097 = vunpack.c.l.b16 %v5001
          %v5098 = vunpack.c.l.b16 %v5002
          %v5099 = vunpack.c.l.b16 %v5003
          %v5100 = vunpack.c.l.b16 %v5004
          %v5101 = vunpack.c.l.b16 %v5005
          %v5102 = vunpack.c.l.b16 %v5006
          %v5103 = vunpack.c.l.b16 %v5007
          %v5104 = vunpack.c.l.b16 %v5008
          %v5105 = vunpack.c.l.b16 %v5009
          %v5106 = vunpack.c.l.b16 %v5010
          %v5107 = vpack.c.b16 %v5060, %v5059
          %v5108 = vpack.c.b16 %v5062, %v5061
          %v5109 = vpack.c.b16 %v5064, %v5063
          %v5110 = vpack.c.b16 %v5066, %v5065
          %v5111 = vpack.c.b16 %v5068, %v5067
          %v5112 = vpack.c.b16 %v5070, %v5069
          %v5113 = vpack.c.b16 %v5072, %v5071
          %v5114 = vpack.c.b16 %v5074, %v5073
          %v5115 = vpack.c.b16 %v5076, %v5075
          %v5116 = vpack.c.b16 %v5078, %v5077
          %v5117 = vpack.c.b16 %v5080, %v5079
          %v5118 = vpack.c.b16 %v5082, %v5081
          %v5119 = vpack.c.b16 %v5084, %v5083
          %v5120 = vpack.c.b16 %v5086, %v5085
          %v5121 = vpack.c.b16 %v5088, %v5087
          %v5122 = vpack.c.b16 %v5090, %v5089
          %v5123 = vpack.c.b16 %v5092, %v5091
          %v5124 = vpack.c.b16 %v5094, %v5093
          %v5125 = vpack.c.b16 %v5096, %v5095
          %v5126 = vpack.c.b16 %v5098, %v5097
          %v5127 = vpack.c.b16 %v5100, %v5099
          %v5128 = vpack.c.b16 %v5102, %v5101
          %v5129 = vpack.c.b16 %v5104, %v5103
          %v5130 = vpack.c.b16 %v5106, %v5105
          %5155 = vmatprep.subr.bf16.mxu0 0
          %5156 = vmatpush1.bf16.msra.mxu0 %v5114
          %5157 = vmatprep.subr.bf16.mxu0 0
          %5158 = vmatpush1.bf16.msra.mxu0 %v5113
          %5159 = vmatprep.subr.bf16.mxu0 0
          %5160 = vmatpush1.bf16.msra.mxu0 %v5112
          %5161 = vmatprep.subr.bf16.mxu0 0
          %5162 = vmatpush1.bf16.msra.mxu0 %v5111
          %5163 = vmatprep.subr.bf16.mxu0 0
          %5164 = vmatpush1.bf16.msra.mxu0 %v5110
          %5165 = vmatprep.subr.bf16.mxu0 0
          %5166 = vmatpush1.bf16.msra.mxu0 %v5109
          %5167 = vmatprep.subr.bf16.mxu0 0
          %5168 = vmatpush1.bf16.msra.mxu0 %v5108
          %5169 = vmatprep.subr.bf16.mxu0 0
          %5170 = vmatpush1.bf16.msra.mxu0 %v5107
          %5171 = vmatprep.subr.bf16.mxu0 0
          %5172 = vmatpush2.bf16.msra.mxu0 %v5122
          %5173 = vmatprep.subr.bf16.mxu0 0
          %5174 = vmatpush2.bf16.msra.mxu0 %v5121
          %5175 = vmatprep.subr.bf16.mxu0 0
          %5176 = vmatpush2.bf16.msra.mxu0 %v5120
          %5177 = vmatprep.subr.bf16.mxu0 0
          %5178 = vmatpush2.bf16.msra.mxu0 %v5119
          %5179 = vmatprep.subr.bf16.mxu0 0
          %5180 = vmatpush2.bf16.msra.mxu0 %v5118
          %5181 = vmatprep.subr.bf16.mxu0 0
          %5182 = vmatpush2.bf16.msra.mxu0 %v5117
          %5183 = vmatprep.subr.bf16.mxu0 0
          %5184 = vmatpush2.bf16.msra.mxu0 %v5116
          %5185 = vmatprep.subr.bf16.mxu0 0
          %5186 = vmatpush2.bf16.msra.mxu0 %v5115
          %5187 = vmatprep.mubr.bf16.mxu0 %v4961
          %5188 = vmatmul.mubr.bf16.gmra.mxu0 %v4960
          %v5189 = vpop.f32.mrf.mxu0
          %v5190 = vadd.f32 0.0, %v5189
          %v5191 = vpop.f32.mrf.mxu0
          %v5192 = vpop.f32.mrf.mxu0
          %v5193 = vpop.f32.mrf.mxu0
          %5194 = vdwg.mxu0
          %5195 = vmatprep.subr.bf16.mxu0 0
          %5196 = vmatpush1.bf16.msra.mxu0 %v5130
          %5197 = vmatprep.subr.bf16.mxu0 0
          %5198 = vmatpush1.bf16.msra.mxu0 %v5129
          %5199 = vmatprep.subr.bf16.mxu0 0
          %5200 = vmatpush1.bf16.msra.mxu0 %v5128
          %5201 = vmatprep.subr.bf16.mxu0 0
          %5202 = vmatpush1.bf16.msra.mxu0 %v5127
          %5203 = vmatprep.subr.bf16.mxu0 0
          %5204 = vmatpush1.bf16.msra.mxu0 %v5126
          %5205 = vmatprep.subr.bf16.mxu0 0
          %5206 = vmatpush1.bf16.msra.mxu0 %v5125
          %5207 = vmatprep.subr.bf16.mxu0 0
          %5208 = vmatpush1.bf16.msra.mxu0 %v5124
          %5209 = vmatprep.subr.bf16.mxu0 0
          %5210 = vmatpush1.bf16.msra.mxu0 %v5123
          %5211 = vmatprep.subr.bf16.mxu0 0
          %5212 = vmatpush2.bf16.msra.mxu0 0
          %5213 = vmatprep.subr.bf16.mxu0 0
          %5214 = vmatpush2.bf16.msra.mxu0 0
          %5215 = vmatprep.subr.bf16.mxu0 0
          %5216 = vmatpush2.bf16.msra.mxu0 0
          %5217 = vmatprep.subr.bf16.mxu0 0
          %5218 = vmatpush2.bf16.msra.mxu0 0
          %5219 = vmatprep.subr.bf16.mxu0 0
          %5220 = vmatpush2.bf16.msra.mxu0 0
          %5221 = vmatprep.subr.bf16.mxu0 0
          %5222 = vmatpush2.bf16.msra.mxu0 0
          %5223 = vmatprep.subr.bf16.mxu0 0
          %5224 = vmatpush2.bf16.msra.mxu0 0
          %5225 = vmatprep.subr.bf16.mxu0 0
          %5226 = vmatpush2.bf16.msra.mxu0 0
          %5227 = vmatprep.mubr.bf16.mxu0 0
          %5228 = vmatmul.mubr.bf16.gmra.mxu0 %v4962
          %v5229 = vpop.f32.mrf.mxu0
          %v5230 = vadd.f32 %v5190, %v5229
          %v5231 = vpop.f32.mrf.mxu0
          %v5232 = vpop.f32.mrf.mxu0
          %v5233 = vpop.f32.mrf.mxu0
          %5234 = vdwg.mxu0
          %v5235 = vpack.c.bf16 %v5230, %v5230
          %5236 = vst [vmem:[#allocation2] sm:$0xf] %v5235
        $region112: #{tpu_custom_call.1} parent=75 // pred_fallthru
          _
        %v5237 = vld [vmem:[%s576] sm:$0x1]
        %s5238 = smul.u32 %s42, 16
        %v5239 = vlaneseq
        %v5240 = vshrl.u32 %v5239, 7
        %v5241 = vadd.s32 %v5240, 8
        %v5242 = vstv %s5238
        %v5243 = vadd.s32 %v5242, %v5240
        %v5244 = vadd.s32 %v5242, %v5241
        %v5245 = vlaneseq
        %v5246 = vshrl.u32 %v5245, 7
        %v5247 = vsub.s32 0, %v5246
        %v5248 = vrot.slane %v5237, %v5247
        %vm5249 = vcmp.le.s32.totalorder %v5248, %v5243
        %vm5250 = vcmp.le.s32.totalorder %v5248, %v5244
        %vm5251 = vcmp.gt.s32.totalorder %v5248, %v5243
        %vm5252 = vcmp.gt.s32.totalorder %v5248, %v5244
        %v5253 = vsel %vm5251, 1, 0
        %v5254 = vsel %vm5252, 1, 0
        %5255 = vrot.lane.b32.xlu0 %v5253, 127
        %v5256 = vpop.permute.xlu0 %5255
        %5257 = vrot.lane.b32.xlu0 %v5254, 127
        %v5258 = vpop.permute.xlu0 %5257
        %vm5259 = vcmp.ne.s32.totalorder %v5256, 0
        %vm5260 = vcmp.ne.s32.totalorder %v5258, 0
        %vm5261 = vmand %vm5249, %vm5259
        %vm5262 = vmand %vm5250, %vm5260
        %v5263 = vsel %vm5261, 1, 0
        %v5264 = vsel %vm5262, 1, 0
        %v5265 = vcvt.s32.f32 %v5263
        %v5266 = vcvt.s32.f32 %v5264
        %v5267 = vpack.c.bf16 %v5266, %v5265
        %v5268 = vld [vmem:[#allocation2] sm:$0xf]
        %v5269 = vld [vmem:[%s13] sm:$0x1]
        %v5271 = vlaneseq
        %v5272 = vshrl.u32 %v5271, 7
        %v5273 = vsub.s32 0, %v5272
        %v5274 = vrot.slane %v5269, %v5273
        %vm5276 = vcmask 64512
        %v5278 = vsel %vm5276, %v5267, 0
        %vm5280 = vcmask 1043456
        %v5282 = vsel %vm5280, %v5268, 0
        %5284 = vmatprep.subr.bf16.mxu0 0
        %5285 = vmatpush1.bf16.msra.mxu0 0
        %5286 = vmatprep.subr.bf16.mxu0 0
        %5287 = vmatpush1.bf16.msra.mxu0 0
        %5288 = vmatprep.subr.bf16.mxu0 0
        %5289 = vmatpush1.bf16.msra.mxu0 0
        %5290 = vmatprep.subr.bf16.mxu0 0
        %5291 = vmatpush1.bf16.msra.mxu0 0
        %5292 = vmatprep.subr.bf16.mxu0 0
        %5293 = vmatpush1.bf16.msra.mxu0 0
        %5294 = vmatprep.subr.bf16.mxu0 0
        %5295 = vmatpush1.bf16.msra.mxu0 0
        %5296 = vmatprep.subr.bf16.mxu0 0
        %5297 = vmatpush1.bf16.msra.mxu0 0
        %5298 = vmatprep.subr.bf16.mxu0 0
        %5299 = vmatpush1.bf16.msra.mxu0 %v5282
        %5300 = vmatprep.subr.bf16.mxu0 0
        %5301 = vmatpush2.bf16.msra.mxu0 0
        %5302 = vmatprep.subr.bf16.mxu0 0
        %5303 = vmatpush2.bf16.msra.mxu0 0
        %5304 = vmatprep.subr.bf16.mxu0 0
        %5305 = vmatpush2.bf16.msra.mxu0 0
        %5306 = vmatprep.subr.bf16.mxu0 0
        %5307 = vmatpush2.bf16.msra.mxu0 0
        %5308 = vmatprep.subr.bf16.mxu0 0
        %5309 = vmatpush2.bf16.msra.mxu0 0
        %5310 = vmatprep.subr.bf16.mxu0 0
        %5311 = vmatpush2.bf16.msra.mxu0 0
        %5312 = vmatprep.subr.bf16.mxu0 0
        %5313 = vmatpush2.bf16.msra.mxu0 0
        %5314 = vmatprep.subr.bf16.mxu0 0
        %5315 = vmatpush2.bf16.msra.mxu0 0
        %5316 = vmatprep.mubr.bf16.mxu0 0
        %5317 = vmatmul.mubr.bf16.gmra.mxu0 %v5278
        %v5318 = vpop.f32.mrf.mxu0
        %v5319 = vadd.f32 %v5274, %v5318
        %v5320 = vpop.f32.mrf.mxu0
        %v5321 = vpop.f32.mrf.mxu0
        %v5322 = vadd.f32 %v5274, %v5321
        %v5323 = vpop.f32.mrf.mxu0
        %5324 = vdwg.mxu0
        %v5325 = vpack.c.bf16 %v5322, %v5319
        %v5327 = vunpack.c.l.b16 %v5325
        %v5328 = vunpack.c.h.b16 %v5325
        %v5329 = vpack.c.b16 %v5327, %v5327
        %v5330 = vpack.c.b16 %v5328, %v5328
        %5333 = vst [vmem:[%s660] sm:$0xf] %v5329
        %5334 = vst [vmem:[%s660 + $0x4] sm:$0xf] %v5330
        %s5335 = sand.u32 %s373, 1
        %s5336 = scalar_lea.sflag [#allocation5], %s5335
        %s5337 = sand.u32 %s373, 1
        %s5338 = smul.addr %s5337, 8
        %s5339 = scalar_lea.vmem [#allocation17], %s5338
        %p5340 = scmp.lt.s32.totalorder %s41, 1
        %s5341 = scalar_select %p5340, %s41, 1
        %s5342 = smul.addr %s5341, 8
        %s5343 = scalar_lea.vmem %s15, %s5342
        // Predicated region
        $region113: #{tpu_custom_call.1} parent=75 // pred_check
          %p5344 = pneg %p383
        $region114: #{tpu_custom_call.1} parent=75 // pred_check_branch
          %5346 = sbr.rel (%p5344) target = $region116
        $region115: #{tpu_custom_call.1} parent=75 // pred_region
          %s5347 = smul.u32 2, %s42
          %s5349 = ssub.s32 128, 128
          %5350 = vsyncadd %s5336, %s5349
          %s5351 = smul.addr %s41, 2
          %s5352 = sadd.s32 %s5347, %s5351
          %s5353 = smul.addr %s5352, 64
          %s5354 = scalar_lea.hbm %s14, %s5353
          %s5355 = sshll.u32 %s5339, 4
          %s5356 = int_to_ptr.vmem [resolvable:$true] %s5355
          %5361 = dma.vmem_to_hbm [thread:$0]  %s5356, 128, %s5354, %s5336, 64, 64, 4
        $region116: #{tpu_custom_call.1} parent=75 // pred_fallthru
          _
        // Predicated region
        $region117: #{tpu_custom_call.1} parent=75 // pred_check
          %p5362 = pneg %p409
        $region118: #{tpu_custom_call.1} parent=75 // pred_check_branch
          %5364 = sbr.rel (%p5362) target = $region120
        $region119: #{tpu_custom_call.1} parent=75 // pred_region
          _
        $region120: #{tpu_custom_call.1} parent=75 // pred_fallthru
          _
      $region76: #{tpu_custom_call.1} parent=5 // pred_fallthru
        _
      %p5365 = scmp.le.s32.totalorder 2, %s32
      // Predicated region
      $region121: #{tpu_custom_call.1} parent=5 // pred_check
        %p5366 = pneg %p5365
      $region122: #{tpu_custom_call.1} parent=5 // pred_check_branch
        %5368 = sbr.rel (%p5366) target = $region124
      $region123: #{tpu_custom_call.1} parent=5 // pred_region
        %s5369 = ssub.s32 %s32, 2
        // Predicated region
        $region125: #{tpu_custom_call.1} parent=123 // pred_check
          %p5370 = pneg %p389
        $region126: #{tpu_custom_call.1} parent=123 // pred_check_branch
          %5372 = sbr.rel (%p5370) target = $region128
        $region127: #{tpu_custom_call.1} parent=123 // pred_region
          %s5373 = sand.u32 %s374, 1
          %s5374 = scalar_lea.sflag [#allocation5], %s5373
          %s5375 = sand.u32 %s374, 1
          %s5376 = smul.addr %s5375, 8
          %s5377 = scalar_lea.vmem [#allocation17], %s5376
          %5378 = dma.done %s5374, 128
        $region128: #{tpu_custom_call.1} parent=123 // pred_fallthru
          _
        // Predicated region
        $region129: #{tpu_custom_call.1} parent=123 // pred_check
          %p5379 = pneg %p415
        $region130: #{tpu_custom_call.1} parent=123 // pred_check_branch
          %5381 = sbr.rel (%p5379) target = $region132
        $region131: #{tpu_custom_call.1} parent=123 // pred_region
          %p5382 = scmp.lt.s32.totalorder %s43, 1
          %s5383 = scalar_select %p5382, %s43, 1
          %s5384 = smul.addr %s5383, 8
          %s5385 = scalar_lea.vmem %s15, %s5384
        $region132: #{tpu_custom_call.1} parent=123 // pred_fallthru
          _
      $region124: #{tpu_custom_call.1} parent=5 // pred_fallthru
        _
    $region6: #{tpu_custom_call.1} parent=1 // loop_footer
      %s36 = sadd.s32 1, %s32
    $region7: #{tpu_custom_call.1} parent=1 // loop_footer_branch
      %31 = sbr.rel target = $region3
    $region8: #{tpu_custom_call.1} parent=1 // loop_exit
      _
    %5386 = vsyncpa [#allocation4], 1
    %s5387 = scalar_lea.sflag [#allocation4], 1
    %5388 = vsyncpa %s5387, 1
    %5389 = vsyncpa [#allocation7], 1
    %5390 = vsyncpa [#allocation10], 1
    %5391 = vsyncpa [#allocation13], 1
    %5392 = vsyncpa [#allocation16], 1
    %5393 = vsyncpa [#allocation5], 1
    %s5394 = scalar_lea.sflag [#allocation5], 1
    %5395 = vsyncpa %s5394, 1

</llo_original>
